<compile_context>
chip_gen: v7x
topology: tpu7x:2x2x1
jax: 0.10.0
libtpu: 0.0.40
codegen_flags: <defaults>
</compile_context>

<pallas_src>
import functools

import jax
import jax.numpy as jnp
from jax import lax
from jax.experimental import pallas as pl
from jax.experimental.pallas import tpu as pltpu


def _round_up(x: int, m: int) -> int:
    return (x + m - 1) // m * m


# ---------------------------------------------------------------------------
# Pallas kernel: out = act(x @ w + b)   (bf16 operands, f32 accumulate)
# ---------------------------------------------------------------------------
def _matmul_bias_act_kernel(x_ref, w_ref, b_ref, o_ref, *, act: str):
    acc = jnp.dot(x_ref[...], w_ref[...], preferred_element_type=jnp.float32)
    acc = acc + b_ref[...]                      # (1, N) broadcasts over (TM, N)
    if act == "relu":
        acc = jnp.maximum(acc, 0.0)
    elif act == "sigmoid":
        acc = pl.reciprocal(1.0 + jnp.exp(-acc), approx=True)   # EUP slot
    o_ref[...] = acc.astype(o_ref.dtype)


def matmul_bias_act(x, w, b_row, act="none", out_dtype=jnp.bfloat16):
    """act(x @ w + b).  x:(M,K) bf16, w:(K,N) bf16 pre-padded, b:(1,N) f32.

    K and N must already be multiples of 128 (weights are padded once at init
    time); only the ragged M edge is padded here.
    """
    M, K = x.shape
    Kw, N = w.shape
    assert K == Kw and K % 128 == 0 and N % 128 == 0

    if M <= 1024:
        TM = _round_up(M, 8)                          # single grid step
    else:
        TM = min(_round_up((M + 1) // 2, 8), 2048)    # >=2 steps -> both v7x TCs
    M_pad = _round_up(M, TM)

    x = x.astype(jnp.bfloat16)
    if M_pad != M:
        x = jnp.pad(x, ((0, M_pad - M), (0, 0)))

    out = pl.pallas_call(
        functools.partial(_matmul_bias_act_kernel, act=act),
        out_shape=jax.ShapeDtypeStruct((M_pad, N), out_dtype),
        grid_spec=pltpu.PrefetchScalarGridSpec(
            num_scalar_prefetch=0,
            grid=(M_pad // TM,),
            in_specs=[
                pl.BlockSpec((TM, K), lambda i: (i, 0)),
                pl.BlockSpec((K, N), lambda i: (0, 0)),
                pl.BlockSpec((1, N), lambda i: (0, 0)),
            ],
            out_specs=pl.BlockSpec((TM, N), lambda i: (i, 0)),
        ),
        compiler_params=pltpu.CompilerParams(dimension_semantics=("parallel",)),
    )(x, w, b_row)
    return out[:M] if M_pad != M else out


# ---------------------------------------------------------------------------
# Fused head kernel: t = relu(relu([h, z@Wz+bz] @ W1 + b1) @ W2 + b2)
# (concat folded into W1h / W1z split; everything resident in VMEM)
# ---------------------------------------------------------------------------
def _head_kernel(h_ref, z_ref, wz_ref, bz_ref, w1h_ref, w1z_ref, b1_ref,
                 w2_ref, b2_ref, o_ref):
    f32 = jnp.float32
    hz = jnp.dot(z_ref[...], wz_ref[...], preferred_element_type=f32) + bz_ref[...]
    t = (jnp.dot(h_ref[...], w1h_ref[...], preferred_element_type=f32)
         + jnp.dot(hz.astype(jnp.bfloat16), w1z_ref[...], preferred_element_type=f32)
         + b1_ref[...])
    t = jnp.maximum(t, 0.0)
    t = jnp.dot(t.astype(jnp.bfloat16), w2_ref[...], preferred_element_type=f32)
    t = jnp.maximum(t + b2_ref[...], 0.0)
    o_ref[...] = t.astype(o_ref.dtype)


# ---------------------------------------------------------------------------
# ConvTranspose2d(k=4, s=2, p=1) via sub-pixel decomposition (NHWC).
#   y[2q]   = x[q-1]*w[3] + x[q]*w[1]        (per spatial dim)
#   y[2q+1] = x[q]  *w[2] + x[q+1]*w[0]
# Window w over the 1-zero-padded input produces the output pair
# (row 2w-1, row 2w); interleave then trim one row/col on each side.
# ---------------------------------------------------------------------------
def _make_patches(x_nhwc):
    B, H, W, C = x_nhwc.shape
    xp = jnp.pad(x_nhwc, ((0, 0), (1, 1), (1, 1), (0, 0)))
    return jnp.concatenate(
        [xp[:, i:i + H + 1, j:j + W + 1, :] for i in range(2) for j in range(2)],
        axis=-1,
    )  # (B, H+1, W+1, 4*C) -- K order (i, j, ci)


def deconv_layer(x_nhwc, w_mat, b_row, c_out, act, out_dtype=jnp.bfloat16):
    B, H, W, C = x_nhwc.shape
    patches = _make_patches(x_nhwc).reshape(B * (H + 1) * (W + 1), 4 * C)
    y = matmul_bias_act(patches, w_mat, b_row, act=act, out_dtype=out_dtype)
    y = y[:, : 4 * c_out]                                      # drop N padding
    y = y.reshape(B, H + 1, W + 1, 2, 2, c_out)
    y = y.transpose(0, 1, 3, 2, 4, 5).reshape(B, 2 * H + 2, 2 * W + 2, c_out)
    return y[:, 1:2 * H + 1, 1:2 * W + 1, :]                   # (B, 2H, 2W, c_out)


# ---------------------------------------------------------------------------
# Parameter init (deterministic, PyTorch-like uniform fan-in init)
# ---------------------------------------------------------------------------
def init_params(key, x_channels, h_dim, z_dim):
    ks = jax.random.split(key, 7)

    def lin(k, fan_in, fan_out):
        k1, k2 = jax.random.split(k)
        bound = 1.0 / jnp.sqrt(fan_in)
        w = jax.random.uniform(k1, (fan_in, fan_out), jnp.float32, -bound, bound)
        b = jax.random.uniform(k2, (fan_out,), jnp.float32, -bound, bound)
        return w, b

    def deconv(k, c_in, c_out):
        k1, k2 = jax.random.split(k)
        bound = 1.0 / jnp.sqrt(c_in * 16)
        w = jax.random.uniform(k1, (c_in, c_out, 4, 4), jnp.float32, -bound, bound)
        b = jax.random.uniform(k2, (c_out,), jnp.float32, -bound, bound)
        return w, b

    return {
        "fz": lin(ks[0], z_dim, h_dim),
        "fc1": lin(ks[1], h_dim * 2, 256),
        "fc2": lin(ks[2], 256, 1024),
        "dc1": deconv(ks[3], 64, 64),
        "dc2": deconv(ks[4], 64, 32),
        "dc3": deconv(ks[5], 32, 32),
        "dc4": deconv(ks[6], 32, x_channels),
    }


def _deconv_weight_matrix(w_t):
    """(C_in, C_out, 4, 4) ConvTranspose2d weight -> (4*C_in, 4*C_out) matmul
    weight for the sub-pixel decomposition. K order (i, j, ci);
    N order (slot_r, slot_c, co), slot 0 -> output row 2w-1, slot 1 -> 2w."""
    taps = ((2, 0), (3, 1))        # taps[slot][window_element]
    k_blocks = []
    for i in range(2):
        for j in range(2):
            n_blocks = [w_t[:, :, taps[sr][i], taps[sc][j]]
                        for sr in range(2) for sc in range(2)]
            k_blocks.append(jnp.concatenate(n_blocks, axis=1))   # (C_in, 4*C_out)
    return jnp.concatenate(k_blocks, axis=0)                     # (4*C_in, 4*C_out)


def prepare_params(raw, h_dim, z_dim):
    """One-time weight re-layout: bf16 matmul weights, 128-aligned K/N."""
    kh = _round_up(h_dim, 128)
    kz = _round_up(z_dim, 128)

    def padw(a, r, c):
        return jnp.zeros((r, c), jnp.float32).at[:a.shape[0], :a.shape[1]].set(a)

    wz, bz = raw["fz"]
    w1, b1 = raw["fc1"]
    w2, b2 = raw["fc2"]

    head = dict(
        wz=padw(wz, kz, kh).astype(jnp.bfloat16),
        bz=padw(bz[None, :], 1, kh),
        w1h=padw(w1[:h_dim], kh, 256).astype(jnp.bfloat16),
        w1z=padw(w1[h_dim:], kh, 256).astype(jnp.bfloat16),
        b1=b1[None, :].astype(jnp.float32),
        w2=w2.astype(jnp.bfloat16),
        b2=b2[None, :].astype(jnp.float32),
    )

    def deconv(name):
        w_t, b = raw[name]
        c_out = w_t.shape[1]
        wm = _deconv_weight_matrix(w_t)                 # (4*C_in, 4*C_out)
        b_row = jnp.tile(b, 4)[None, :]                 # (1, 4*C_out)
        n_pad = _round_up(4 * c_out, 128)
        if n_pad != 4 * c_out:
            wm = jnp.pad(wm, ((0, 0), (0, n_pad - 4 * c_out)))
            b_row = jnp.pad(b_row, ((0, 0), (0, n_pad - 4 * c_out)))
        return (wm.astype(jnp.bfloat16), b_row.astype(jnp.float32))

    return dict(head=head, dc1=deconv("dc1"), dc2=deconv("dc2"),
                dc3=deconv("dc3"), dc4=deconv("dc4"))


# ---------------------------------------------------------------------------
# Generator forward: p(x | h, z)
# ---------------------------------------------------------------------------
@functools.partial(jax.jit, static_argnames=("x_channels",))
def generator_forward(prep, h, z, *, x_channels):
    B = h.shape[0]
    hd = prep["head"]
    kz_pad, kh_pad = hd["wz"].shape
    M_pad = _round_up(B, 8)

    h_p = jnp.pad(h.astype(jnp.bfloat16),
                  ((0, M_pad - B), (0, kh_pad - h.shape[1])))
    z_p = jnp.pad(z.astype(jnp.bfloat16),
                  ((0, M_pad - B), (0, kz_pad - z.shape[1])))

    t = pl.pallas_call(
        _head_kernel,
        out_shape=jax.ShapeDtypeStruct((M_pad, 1024), jnp.bfloat16),
    )(h_p, z_p, hd["wz"], hd["bz"], hd["w1h"], hd["w1z"], hd["b1"],
      hd["w2"], hd["b2"])[:B]                                   # (B, 1024)

    # torch .view(-1, 64, 4, 4) is channel-major; convert once to NHWC.
    x = t.reshape(B, 64, 4, 4).transpose(0, 2, 3, 1)            # (B, 4, 4, 64)
    x = deconv_layer(x, *prep["dc1"], 64, act="relu")           # (B, 8, 8, 64)
    x = deconv_layer(x, *prep["dc2"], 32, act="relu")           # (B, 16, 16, 32)
    x = deconv_layer(x, *prep["dc3"], 32, act="relu")           # (B, 32, 32, 32)
    x = deconv_layer(x, *prep["dc4"], x_channels, act="sigmoid",
                     out_dtype=jnp.float32)                     # (B, 64, 64, C)
    return x.transpose(0, 3, 1, 2)                              # NCHW, f32


# ---------------------------------------------------------------------------
# Pure-JAX f32 reference (correctness check)
# ---------------------------------------------------------------------------
def _ref_conv_t(x, w_t, b, act):
    w_conv = jnp.transpose(jnp.flip(w_t, axis=(2, 3)), (1, 0, 2, 3))  # OIHW
    y = lax.conv_general_dilated(
        x, w_conv, window_strides=(1, 1), padding=((2, 2), (2, 2)),
        lhs_dilation=(2, 2),
        dimension_numbers=("NCHW", "OIHW", "NCHW"),
    ) + b[None, :, None, None]
    if act == "relu":
        return jnp.maximum(y, 0.0)
    return 1.0 / (1.0 + jnp.exp(-y))


def generator_reference(params, h, z):
    B = h.shape[0]
    hz = z @ params["fz"][0] + params["fz"][1]
    hc = jnp.concatenate([h, hz], axis=1)
    t = jnp.maximum(hc @ params["fc1"][0] + params["fc1"][1], 0.0)
    t = jnp.maximum(t @ params["fc2"][0] + params["fc2"][1], 0.0)
    x = t.reshape(B, 64, 4, 4)
    x = _ref_conv_t(x, *params["dc1"], "relu")
    x = _ref_conv_t(x, *params["dc2"], "relu")
    x = _ref_conv_t(x, *params["dc3"], "relu")
    x = _ref_conv_t(x, *params["dc4"], "sigmoid")
    return x


if __name__ == "__main__":
    B, x_channels, h_dim, z_dim = 2, 3, 32, 16

    key = jax.random.PRNGKey(0)
    k_params, k_h, k_z = jax.random.split(key, 3)
    raw = init_params(k_params, x_channels, h_dim, z_dim)
    prep = prepare_params(raw, h_dim, z_dim)       # one-time weight re-layout
    h = jax.random.normal(k_h, (B, h_dim), jnp.float32)
    z = jax.random.normal(k_z, (B, z_dim), jnp.float32)

    out = generator_forward(prep, h, z, x_channels=x_channels)
    out = jax.block_until_ready(out)
    assert out.shape == (B, x_channels, 64, 64), out.shape
    assert out.dtype == jnp.float32

    ref = jax.block_until_ready(generator_reference(raw, h, z))
    # bf16 MXU operands (f32 accumulation) => loosened tolerance vs f32 ref.
    assert jnp.allclose(out, ref, atol=3e-2, rtol=3e-2), float(
        jnp.max(jnp.abs(out - ref))
    )

    print("KERNEL_OK")
</pallas_src>

<mosaic_0001>
module attributes {stable_mosaic.version = 11 : i64} {
  func.func @_head_kernel(%arg0: memref<8x128xbf16, #tpu.memory_space<vmem>>, %arg1: memref<8x128xbf16, #tpu.memory_space<vmem>>, %arg2: memref<128x128xbf16, #tpu.memory_space<vmem>>, %arg3: memref<1x128xf32, #tpu.memory_space<vmem>>, %arg4: memref<128x256xbf16, #tpu.memory_space<vmem>>, %arg5: memref<128x256xbf16, #tpu.memory_space<vmem>>, %arg6: memref<1x256xf32, #tpu.memory_space<vmem>>, %arg7: memref<256x1024xbf16, #tpu.memory_space<vmem>>, %arg8: memref<1x1024xf32, #tpu.memory_space<vmem>>, %arg9: memref<8x1024xbf16, #tpu.memory_space<vmem>>) attributes {dimension_semantics = [], scalar_prefetch = 0 : i64, scratch_operands = 0 : i64, tpu.core_type = #tpu.core_type<tc>} {
    %c0 = arith.constant 0 : index
    %c0_0 = arith.constant 0 : index
    %0 = vector.load %arg1[%c0, %c0_0] : memref<8x128xbf16, #tpu.memory_space<vmem>>, vector<8x128xbf16>
    %c0_1 = arith.constant 0 : index
    %c0_2 = arith.constant 0 : index
    %1 = vector.load %arg2[%c0_1, %c0_2] : memref<128x128xbf16, #tpu.memory_space<vmem>>, vector<128x128xbf16>
    %cst = arith.constant dense<0.000000e+00> : vector<8x128xf32>
    %2 = tpu.matmul %0, %1, %cst {dimension_numbers = #tpu.dot_dimension_numbers<[1], [0], [0], [1], [0, 0, 1, 1], [], []>} : vector<8x128xbf16>, vector<128x128xbf16>, vector<8x128xf32> -> vector<8x128xf32>
    %c0_3 = arith.constant 0 : index
    %c0_4 = arith.constant 0 : index
    %3 = vector.load %arg3[%c0_3, %c0_4] : memref<1x128xf32, #tpu.memory_space<vmem>>, vector<1x128xf32>
    %4 = vector.broadcast %3 : vector<1x128xf32> to vector<8x128xf32>
    %5 = arith.addf %2, %4 : vector<8x128xf32>
    %c0_5 = arith.constant 0 : index
    %c0_6 = arith.constant 0 : index
    %6 = vector.load %arg0[%c0_5, %c0_6] : memref<8x128xbf16, #tpu.memory_space<vmem>>, vector<8x128xbf16>
    %c0_7 = arith.constant 0 : index
    %c0_8 = arith.constant 0 : index
    %7 = vector.load %arg4[%c0_7, %c0_8] : memref<128x256xbf16, #tpu.memory_space<vmem>>, vector<128x256xbf16>
    %cst_9 = arith.constant dense<0.000000e+00> : vector<8x256xf32>
    %8 = tpu.matmul %6, %7, %cst_9 {dimension_numbers = #tpu.dot_dimension_numbers<[1], [0], [0], [1], [0, 0, 1, 1], [], []>} : vector<8x128xbf16>, vector<128x256xbf16>, vector<8x256xf32> -> vector<8x256xf32>
    %9 = arith.truncf %5 : vector<8x128xf32> to vector<8x128xbf16>
    %c0_10 = arith.constant 0 : index
    %c0_11 = arith.constant 0 : index
    %10 = vector.load %arg5[%c0_10, %c0_11] : memref<128x256xbf16, #tpu.memory_space<vmem>>, vector<128x256xbf16>
    %cst_12 = arith.constant dense<0.000000e+00> : vector<8x256xf32>
    %11 = tpu.matmul %9, %10, %cst_12 {dimension_numbers = #tpu.dot_dimension_numbers<[1], [0], [0], [1], [0, 0, 1, 1], [], []>} : vector<8x128xbf16>, vector<128x256xbf16>, vector<8x256xf32> -> vector<8x256xf32>
    %12 = arith.addf %8, %11 : vector<8x256xf32>
    %c0_13 = arith.constant 0 : index
    %c0_14 = arith.constant 0 : index
    %13 = vector.load %arg6[%c0_13, %c0_14] : memref<1x256xf32, #tpu.memory_space<vmem>>, vector<1x256xf32>
    %14 = vector.broadcast %13 : vector<1x256xf32> to vector<8x256xf32>
    %15 = arith.addf %12, %14 : vector<8x256xf32>
    %cst_15 = arith.constant 0.000000e+00 : f32
    %16 = vector.broadcast %cst_15 : f32 to vector<8x256xf32>
    %17 = arith.maximumf %15, %16 : vector<8x256xf32>
    %18 = arith.truncf %17 : vector<8x256xf32> to vector<8x256xbf16>
    %c0_16 = arith.constant 0 : index
    %c0_17 = arith.constant 0 : index
    %19 = vector.load %arg7[%c0_16, %c0_17] : memref<256x1024xbf16, #tpu.memory_space<vmem>>, vector<256x1024xbf16>
    %cst_18 = arith.constant dense<0.000000e+00> : vector<8x1024xf32>
    %20 = tpu.matmul %18, %19, %cst_18 {dimension_numbers = #tpu.dot_dimension_numbers<[1], [0], [0], [1], [0, 0, 1, 1], [], []>} : vector<8x256xbf16>, vector<256x1024xbf16>, vector<8x1024xf32> -> vector<8x1024xf32>
    %c0_19 = arith.constant 0 : index
    %c0_20 = arith.constant 0 : index
    %21 = vector.load %arg8[%c0_19, %c0_20] : memref<1x1024xf32, #tpu.memory_space<vmem>>, vector<1x1024xf32>
    %22 = vector.broadcast %21 : vector<1x1024xf32> to vector<8x1024xf32>
    %23 = arith.addf %20, %22 : vector<8x1024xf32>
    %cst_21 = arith.constant 0.000000e+00 : f32
    %24 = vector.broadcast %cst_21 : f32 to vector<8x1024xf32>
    %25 = arith.maximumf %23, %24 : vector<8x1024xf32>
    %26 = arith.truncf %25 : vector<8x1024xf32> to vector<8x1024xbf16>
    %c0_22 = arith.constant 0 : index
    %c0_23 = arith.constant 0 : index
    %27 = vector.load %arg9[%c0_22, %c0_23] : memref<8x1024xbf16, #tpu.memory_space<vmem>>, vector<8x1024xbf16>
    tpu.vector_store %arg9[%c0_22, %c0_23], %26 {strides = array<i32>} : memref<8x1024xbf16, #tpu.memory_space<vmem>>, vector<8x1024xbf16>,
    return
  }
}

module attributes {stable_mosaic.version = 11 : i64} {
  func.func @_matmul_bias_act_kernel(%arg0: i32, %arg1: memref<56x256xbf16, #tpu.memory_space<vmem>>, %arg2: memref<256x256xbf16, #tpu.memory_space<vmem>>, %arg3: memref<1x256xf32, #tpu.memory_space<vmem>>, %arg4: memref<56x256xbf16, #tpu.memory_space<vmem>>) attributes {dimension_semantics = [#tpu.dimension_semantics<parallel>], iteration_bounds = array<i64: 1>, scalar_prefetch = 0 : i64, scratch_operands = 0 : i64, tpu.core_type = #tpu.core_type<tc>, window_params = [{transform_indices = @transform_0, window_bounds = array<i64: 56, 256>}, {pipeline_mode = #tpu.pipeline_mode<synchronous>, transform_indices = @transform_1, window_bounds = array<i64: 256, 256>}, {pipeline_mode = #tpu.pipeline_mode<synchronous>, transform_indices = @transform_2, window_bounds = array<i64: 1, 256>}, {transform_indices = @transform_3, window_bounds = array<i64: 56, 256>}]} {
    %c0 = arith.constant 0 : index
    %c0_0 = arith.constant 0 : index
    %0 = vector.load %arg1[%c0, %c0_0] : memref<56x256xbf16, #tpu.memory_space<vmem>>, vector<56x256xbf16>
    %c0_1 = arith.constant 0 : index
    %c0_2 = arith.constant 0 : index
    %1 = vector.load %arg2[%c0_1, %c0_2] : memref<256x256xbf16, #tpu.memory_space<vmem>>, vector<256x256xbf16>
    %cst = arith.constant dense<0.000000e+00> : vector<56x256xf32>
    %2 = tpu.matmul %0, %1, %cst {dimension_numbers = #tpu.dot_dimension_numbers<[1], [0], [0], [1], [0, 0, 1, 1], [], []>} : vector<56x256xbf16>, vector<256x256xbf16>, vector<56x256xf32> -> vector<56x256xf32>
    %c0_3 = arith.constant 0 : index
    %c0_4 = arith.constant 0 : index
    %3 = vector.load %arg3[%c0_3, %c0_4] : memref<1x256xf32, #tpu.memory_space<vmem>>, vector<1x256xf32>
    %4 = vector.broadcast %3 : vector<1x256xf32> to vector<56x256xf32>
    %5 = arith.addf %2, %4 : vector<56x256xf32>
    %cst_5 = arith.constant 0.000000e+00 : f32
    %6 = vector.broadcast %cst_5 : f32 to vector<56x256xf32>
    %7 = arith.maximumf %5, %6 : vector<56x256xf32>
    %8 = arith.truncf %7 : vector<56x256xf32> to vector<56x256xbf16>
    %c0_6 = arith.constant 0 : index
    %c0_7 = arith.constant 0 : index
    %9 = vector.load %arg4[%c0_6, %c0_7] : memref<56x256xbf16, #tpu.memory_space<vmem>>, vector<56x256xbf16>
    tpu.vector_store %arg4[%c0_6, %c0_7], %8 {strides = array<i32>} : memref<56x256xbf16, #tpu.memory_space<vmem>>, vector<56x256xbf16>,
    return
  }
  func.func @transform_0(%arg0: i32) -> (i32, i32) {
    %c0_i32 = arith.constant 0 : i32
    %c0_i32_0 = arith.constant 0 : i32
    return %arg0, %c0_i32 : i32, i32
  }
  func.func @transform_1(%arg0: i32) -> (i32, i32) {
    %c0_i32 = arith.constant 0 : i32
    %c0_i32_0 = arith.constant 0 : i32
    %c0_i32_1 = arith.constant 0 : i32
    return %c0_i32, %c0_i32_0 : i32, i32
  }
  func.func @transform_2(%arg0: i32) -> (i32, i32) {
    %c0_i32 = arith.constant 0 : i32
    %c0_i32_0 = arith.constant 0 : i32
    %c0_i32_1 = arith.constant 0 : i32
    return %c0_i32, %c0_i32_0 : i32, i32
  }
  func.func @transform_3(%arg0: i32) -> (i32, i32) {
    %c0_i32 = arith.constant 0 : i32
    %c0_i32_0 = arith.constant 0 : i32
    return %arg0, %c0_i32 : i32, i32
  }
}

module attributes {stable_mosaic.version = 11 : i64} {
  func.func @_matmul_bias_act_kernel(%arg0: i32, %arg1: memref<168x256xbf16, #tpu.memory_space<vmem>>, %arg2: memref<256x128xbf16, #tpu.memory_space<vmem>>, %arg3: memref<1x128xf32, #tpu.memory_space<vmem>>, %arg4: memref<168x128xbf16, #tpu.memory_space<vmem>>) attributes {dimension_semantics = [#tpu.dimension_semantics<parallel>], iteration_bounds = array<i64: 1>, scalar_prefetch = 0 : i64, scratch_operands = 0 : i64, tpu.core_type = #tpu.core_type<tc>, window_params = [{transform_indices = @transform_0, window_bounds = array<i64: 168, 256>}, {pipeline_mode = #tpu.pipeline_mode<synchronous>, transform_indices = @transform_1, window_bounds = array<i64: 256, 128>}, {pipeline_mode = #tpu.pipeline_mode<synchronous>, transform_indices = @transform_2, window_bounds = array<i64: 1, 128>}, {transform_indices = @transform_3, window_bounds = array<i64: 168, 128>}]} {
    %c0 = arith.constant 0 : index
    %c0_0 = arith.constant 0 : index
    %0 = vector.load %arg1[%c0, %c0_0] : memref<168x256xbf16, #tpu.memory_space<vmem>>, vector<168x256xbf16>
    %c0_1 = arith.constant 0 : index
    %c0_2 = arith.constant 0 : index
    %1 = vector.load %arg2[%c0_1, %c0_2] : memref<256x128xbf16, #tpu.memory_space<vmem>>, vector<256x128xbf16>
    %cst = arith.constant dense<0.000000e+00> : vector<168x128xf32>
    %2 = tpu.matmul %0, %1, %cst {dimension_numbers = #tpu.dot_dimension_numbers<[1], [0], [0], [1], [0, 0, 1, 1], [], []>} : vector<168x256xbf16>, vector<256x128xbf16>, vector<168x128xf32> -> vector<168x128xf32>
    %c0_3 = arith.constant 0 : index
    %c0_4 = arith.constant 0 : index
    %3 = vector.load %arg3[%c0_3, %c0_4] : memref<1x128xf32, #tpu.memory_space<vmem>>, vector<1x128xf32>
    %4 = vector.broadcast %3 : vector<1x128xf32> to vector<168x128xf32>
    %5 = arith.addf %2, %4 : vector<168x128xf32>
    %cst_5 = arith.constant 0.000000e+00 : f32
    %6 = vector.broadcast %cst_5 : f32 to vector<168x128xf32>
    %7 = arith.maximumf %5, %6 : vector<168x128xf32>
    %8 = arith.truncf %7 : vector<168x128xf32> to vector<168x128xbf16>
    %c0_6 = arith.constant 0 : index
    %c0_7 = arith.constant 0 : index
    %9 = vector.load %arg4[%c0_6, %c0_7] : memref<168x128xbf16, #tpu.memory_space<vmem>>, vector<168x128xbf16>
    tpu.vector_store %arg4[%c0_6, %c0_7], %8 {strides = array<i32>} : memref<168x128xbf16, #tpu.memory_space<vmem>>, vector<168x128xbf16>,
    return
  }
  func.func @transform_0(%arg0: i32) -> (i32, i32) {
    %c0_i32 = arith.constant 0 : i32
    %c0_i32_0 = arith.constant 0 : i32
    return %arg0, %c0_i32 : i32, i32
  }
  func.func @transform_1(%arg0: i32) -> (i32, i32) {
    %c0_i32 = arith.constant 0 : i32
    %c0_i32_0 = arith.constant 0 : i32
    %c0_i32_1 = arith.constant 0 : i32
    return %c0_i32, %c0_i32_0 : i32, i32
  }
  func.func @transform_2(%arg0: i32) -> (i32, i32) {
    %c0_i32 = arith.constant 0 : i32
    %c0_i32_0 = arith.constant 0 : i32
    %c0_i32_1 = arith.constant 0 : i32
    return %c0_i32, %c0_i32_0 : i32, i32
  }
  func.func @transform_3(%arg0: i32) -> (i32, i32) {
    %c0_i32 = arith.constant 0 : i32
    %c0_i32_0 = arith.constant 0 : i32
    return %arg0, %c0_i32 : i32, i32
  }
}

module attributes {stable_mosaic.version = 11 : i64} {
  func.func @_matmul_bias_act_kernel(%arg0: i32, %arg1: memref<584x128xbf16, #tpu.memory_space<vmem>>, %arg2: memref<128x128xbf16, #tpu.memory_space<vmem>>, %arg3: memref<1x128xf32, #tpu.memory_space<vmem>>, %arg4: memref<584x128xbf16, #tpu.memory_space<vmem>>) attributes {dimension_semantics = [#tpu.dimension_semantics<parallel>], iteration_bounds = array<i64: 1>, scalar_prefetch = 0 : i64, scratch_operands = 0 : i64, tpu.core_type = #tpu.core_type<tc>, window_params = [{transform_indices = @transform_0, window_bounds = array<i64: 584, 128>}, {pipeline_mode = #tpu.pipeline_mode<synchronous>, transform_indices = @transform_1, window_bounds = array<i64: 128, 128>}, {pipeline_mode = #tpu.pipeline_mode<synchronous>, transform_indices = @transform_2, window_bounds = array<i64: 1, 128>}, {transform_indices = @transform_3, window_bounds = array<i64: 584, 128>}]} {
    %c0 = arith.constant 0 : index
    %c0_0 = arith.constant 0 : index
    %0 = vector.load %arg1[%c0, %c0_0] : memref<584x128xbf16, #tpu.memory_space<vmem>>, vector<584x128xbf16>
    %c0_1 = arith.constant 0 : index
    %c0_2 = arith.constant 0 : index
    %1 = vector.load %arg2[%c0_1, %c0_2] : memref<128x128xbf16, #tpu.memory_space<vmem>>, vector<128x128xbf16>
    %cst = arith.constant dense<0.000000e+00> : vector<584x128xf32>
    %2 = tpu.matmul %0, %1, %cst {dimension_numbers = #tpu.dot_dimension_numbers<[1], [0], [0], [1], [0, 0, 1, 1], [], []>} : vector<584x128xbf16>, vector<128x128xbf16>, vector<584x128xf32> -> vector<584x128xf32>
    %c0_3 = arith.constant 0 : index
    %c0_4 = arith.constant 0 : index
    %3 = vector.load %arg3[%c0_3, %c0_4] : memref<1x128xf32, #tpu.memory_space<vmem>>, vector<1x128xf32>
    %4 = vector.broadcast %3 : vector<1x128xf32> to vector<584x128xf32>
    %5 = arith.addf %2, %4 : vector<584x128xf32>
    %cst_5 = arith.constant 0.000000e+00 : f32
    %6 = vector.broadcast %cst_5 : f32 to vector<584x128xf32>
    %7 = arith.maximumf %5, %6 : vector<584x128xf32>
    %8 = arith.truncf %7 : vector<584x128xf32> to vector<584x128xbf16>
    %c0_6 = arith.constant 0 : index
    %c0_7 = arith.constant 0 : index
    %9 = vector.load %arg4[%c0_6, %c0_7] : memref<584x128xbf16, #tpu.memory_space<vmem>>, vector<584x128xbf16>
    tpu.vector_store %arg4[%c0_6, %c0_7], %8 {strides = array<i32>} : memref<584x128xbf16, #tpu.memory_space<vmem>>, vector<584x128xbf16>,
    return
  }
  func.func @transform_0(%arg0: i32) -> (i32, i32) {
    %c0_i32 = arith.constant 0 : i32
    %c0_i32_0 = arith.constant 0 : i32
    return %arg0, %c0_i32 : i32, i32
  }
  func.func @transform_1(%arg0: i32) -> (i32, i32) {
    %c0_i32 = arith.constant 0 : i32
    %c0_i32_0 = arith.constant 0 : i32
    %c0_i32_1 = arith.constant 0 : i32
    return %c0_i32, %c0_i32_0 : i32, i32
  }
  func.func @transform_2(%arg0: i32) -> (i32, i32) {
    %c0_i32 = arith.constant 0 : i32
    %c0_i32_0 = arith.constant 0 : i32
    %c0_i32_1 = arith.constant 0 : i32
    return %c0_i32, %c0_i32_0 : i32, i32
  }
  func.func @transform_3(%arg0: i32) -> (i32, i32) {
    %c0_i32 = arith.constant 0 : i32
    %c0_i32_0 = arith.constant 0 : i32
    return %arg0, %c0_i32 : i32, i32
  }
}

module attributes {stable_mosaic.version = 11 : i64} {
  func.func @_matmul_bias_act_kernel(%arg0: i32, %arg1: memref<1096x128xbf16, #tpu.memory_space<vmem>>, %arg2: memref<128x128xbf16, #tpu.memory_space<vmem>>, %arg3: memref<1x128xf32, #tpu.memory_space<vmem>>, %arg4: memref<1096x128xf32, #tpu.memory_space<vmem>>) attributes {dimension_semantics = [#tpu.dimension_semantics<parallel>], iteration_bounds = array<i64: 2>, scalar_prefetch = 0 : i64, scratch_operands = 0 : i64, tpu.core_type = #tpu.core_type<tc>, window_params = [{transform_indices = @transform_0, window_bounds = array<i64: 1096, 128>}, {pipeline_mode = #tpu.pipeline_mode<synchronous>, transform_indices = @transform_1, window_bounds = array<i64: 128, 128>}, {pipeline_mode = #tpu.pipeline_mode<synchronous>, transform_indices = @transform_2, window_bounds = array<i64: 1, 128>}, {transform_indices = @transform_3, window_bounds = array<i64: 1096, 128>}]} {
    %c0 = arith.constant 0 : index
    %c0_0 = arith.constant 0 : index
    %0 = vector.load %arg1[%c0, %c0_0] : memref<1096x128xbf16, #tpu.memory_space<vmem>>, vector<1096x128xbf16>
    %c0_1 = arith.constant 0 : index
    %c0_2 = arith.constant 0 : index
    %1 = vector.load %arg2[%c0_1, %c0_2] : memref<128x128xbf16, #tpu.memory_space<vmem>>, vector<128x128xbf16>
    %cst = arith.constant dense<0.000000e+00> : vector<1096x128xf32>
    %2 = tpu.matmul %0, %1, %cst {dimension_numbers = #tpu.dot_dimension_numbers<[1], [0], [0], [1], [0, 0, 1, 1], [], []>} : vector<1096x128xbf16>, vector<128x128xbf16>, vector<1096x128xf32> -> vector<1096x128xf32>
    %c0_3 = arith.constant 0 : index
    %c0_4 = arith.constant 0 : index
    %3 = vector.load %arg3[%c0_3, %c0_4] : memref<1x128xf32, #tpu.memory_space<vmem>>, vector<1x128xf32>
    %4 = vector.broadcast %3 : vector<1x128xf32> to vector<1096x128xf32>
    %5 = arith.addf %2, %4 : vector<1096x128xf32>
    %cst_5 = arith.constant 0.000000e+00 : f32
    %6 = vector.broadcast %cst_5 : f32 to vector<1096x128xf32>
    %7 = arith.subf %6, %5 : vector<1096x128xf32>
    %8 = math.exp %7 : vector<1096x128xf32>
    %cst_6 = arith.constant 1.000000e+00 : f32
    %9 = vector.broadcast %cst_6 : f32 to vector<1096x128xf32>
    %10 = arith.addf %9, %8 : vector<1096x128xf32>
    %11 = tpu.reciprocal %10 {approx = true} : vector<1096x128xf32> -> vector<1096x128xf32>
    %c0_7 = arith.constant 0 : index
    %c0_8 = arith.constant 0 : index
    %12 = vector.load %arg4[%c0_7, %c0_8] : memref<1096x128xf32, #tpu.memory_space<vmem>>, vector<1096x128xf32>
    tpu.vector_store %arg4[%c0_7, %c0_8], %11 {strides = array<i32>} : memref<1096x128xf32, #tpu.memory_space<vmem>>, vector<1096x128xf32>,
    return
  }
  func.func @transform_0(%arg0: i32) -> (i32, i32) {
    %c0_i32 = arith.constant 0 : i32
    %c0_i32_0 = arith.constant 0 : i32
    return %arg0, %c0_i32 : i32, i32
  }
  func.func @transform_1(%arg0: i32) -> (i32, i32) {
    %c0_i32 = arith.constant 0 : i32
    %c0_i32_0 = arith.constant 0 : i32
    %c0_i32_1 = arith.constant 0 : i32
    return %c0_i32, %c0_i32_0 : i32, i32
  }
  func.func @transform_2(%arg0: i32) -> (i32, i32) {
    %c0_i32 = arith.constant 0 : i32
    %c0_i32_0 = arith.constant 0 : i32
    %c0_i32_1 = arith.constant 0 : i32
    return %c0_i32, %c0_i32_0 : i32, i32
  }
  func.func @transform_3(%arg0: i32) -> (i32, i32) {
    %c0_i32 = arith.constant 0 : i32
    %c0_i32_0 = arith.constant 0 : i32
    return %arg0, %c0_i32 : i32, i32
  }
}

</mosaic_0001>

<llo_original>
// kernel: generator_forward.5
$region0: #{generator_forward.5}
  #allocation0 [shape = 'u32[]', space=smem, size = 0x4, offset = 0x4, fixed_abs, tag = 'smem constant byte address 0x4 - core index']
  #allocation1 [shape = 'u32[144,128]{1,0:T(1,128)}', space=vmem, size = 0x12000, scoped, tag = 'internal scratch']
  %s0 = inlined_call_operand.vmem [shape: bf16[8,128], index: 0, kind: input, shape index: {}]
  %s1 = inlined_call_operand.vmem [shape: bf16[8,128], index: 1, kind: input, shape index: {}]
  %s2 = inlined_call_operand.hbm [shape: bf16[128,128], index: 2, kind: input, shape index: {}]
  %s3 = inlined_call_operand.hbm [shape: f32[1,128], index: 3, kind: input, shape index: {}]
  %s4 = inlined_call_operand.hbm [shape: bf16[128,256], index: 4, kind: input, shape index: {}]
  %s5 = inlined_call_operand.hbm [shape: bf16[128,256], index: 5, kind: input, shape index: {}]
  %s6 = inlined_call_operand.hbm [shape: f32[1,256], index: 6, kind: input, shape index: {}]
  %s7 = inlined_call_operand.hbm [shape: bf16[256,1024], index: 7, kind: input, shape index: {}]
  %s8 = inlined_call_operand.hbm [shape: f32[1,1024], index: 8, kind: input, shape index: {}]
  %s9 = inlined_call_operand.vmem [shape: bf16[8,1024], index: 9, kind: output, shape index: {}]
  %s10 = sld [smem:[#allocation0]]
  $region74: #{generator_forward.5} parent=0
    _
  %s12 = ssub.s32 1, %s10
  %s13 = scalar_select 0, %s12, %s10
  $region1: #{generator_forward.5} parent=0
    #allocation2 [shape = 'u8[32768]{0}', space=vmem, size = 0x8000, scoped, tag = 'input window, operand 2, single buffered']
    #allocation3 [shape = 's32[1]{0}', space=sflag, size = 0x4, scoped, tag = 'scoped memory for generator_forward.5']
    #allocation4 [shape = 'u8[512]{0}', space=vmem, size = 0x400, scoped, tag = 'input window, operand 3, single buffered']
    #allocation5 [shape = 's32[1]{0}', space=sflag, size = 0x4, scoped, tag = 'scoped memory for generator_forward.5']
    #allocation6 [shape = 'u8[65536]{0}', space=vmem, size = 0x10000, scoped, tag = 'input window, operand 4, single buffered']
    #allocation7 [shape = 'u8[65536]{0}', space=vmem, size = 0x10000, scoped, tag = 'input window, operand 5, single buffered']
    #allocation8 [shape = 's32[1]{0}', space=sflag, size = 0x4, scoped, tag = 'scoped memory for generator_forward.5']
    #allocation9 [shape = 'u8[1024]{0}', space=vmem, size = 0x400, scoped, tag = 'input window, operand 6, single buffered']
    #allocation10 [shape = 'u8[524288]{0}', space=vmem, size = 0x80000, scoped, tag = 'input window, operand 7, single buffered']
    #allocation11 [shape = 's32[1]{0}', space=sflag, size = 0x4, scoped, tag = 'scoped memory for generator_forward.5']
    #allocation12 [shape = 'u8[4096]{0}', space=vmem, size = 0x1000, scoped, tag = 'input window, operand 8, single buffered']
    %14 = vsyncpa [#allocation3], 0
    %15 = vsyncpa [#allocation5], 0
    %16 = vsyncpa [#allocation8], 0
    %17 = vsyncpa [#allocation11], 0
    // Predicated region
    $region2: #{generator_forward.5} parent=1 // pred_check
      _
    $region3: #{generator_forward.5} parent=1 // pred_check_branch
      %19 = sbr.rel (0) target = $region5
    $region4: #{generator_forward.5} parent=1 // pred_region
      _
    $region5: #{generator_forward.5} parent=1 // pred_fallthru
      _
    // Predicated region
    $region6: #{generator_forward.5} parent=1 // pred_check
      _
    $region7: #{generator_forward.5} parent=1 // pred_check_branch
      %21 = sbr.rel (0) target = $region9
    $region8: #{generator_forward.5} parent=1 // pred_region
      _
    $region9: #{generator_forward.5} parent=1 // pred_fallthru
      _
    // Predicated region
    $region10: #{generator_forward.5} parent=1 // pred_check
      _
    $region11: #{generator_forward.5} parent=1 // pred_check_branch
      %23 = sbr.rel (0) target = $region13
    $region12: #{generator_forward.5} parent=1 // pred_region
      %s25 = ssub.s32 1024, 1024
      %26 = vsyncadd [#allocation3], %s25
      %s27 = sshll.u32 [#allocation2], 4
      %s28 = int_to_ptr.vmem [resolvable:$true] %s27
      %33 = dma.hbm_to_vmem [thread:$0]  %s2, 1024, %s28, [#allocation3], 64, 64, 4
    $region13: #{generator_forward.5} parent=1 // pred_fallthru
      _
    // Predicated region
    $region14: #{generator_forward.5} parent=1 // pred_check
      _
    $region15: #{generator_forward.5} parent=1 // pred_check_branch
      %35 = sbr.rel (0) target = $region17
    $region16: #{generator_forward.5} parent=1 // pred_region
      %s37 = ssub.s32 16, 16
      %38 = vsyncadd [#allocation5], %s37
      %s40 = sshll.u32 [#allocation4], 4
      %s41 = int_to_ptr.vmem [resolvable:$true] %s40
      %43 = dma.hbm_to_vmem [thread:$0]  %s3, 16, %s41, [#allocation5]
    $region17: #{generator_forward.5} parent=1 // pred_fallthru
      _
    // Predicated region
    $region18: #{generator_forward.5} parent=1 // pred_check
      _
    $region19: #{generator_forward.5} parent=1 // pred_check_branch
      %45 = sbr.rel (0) target = $region21
    $region20: #{generator_forward.5} parent=1 // pred_region
      %s47 = ssub.s32 2048, 2048
      %48 = vsyncadd [#allocation5], %s47
      %s49 = sshll.u32 [#allocation6], 4
      %s50 = int_to_ptr.vmem [resolvable:$true] %s49
      %55 = dma.hbm_to_vmem [thread:$0]  %s4, 2048, %s50, [#allocation5], 128, 128, 8
    $region21: #{generator_forward.5} parent=1 // pred_fallthru
      _
    // Predicated region
    $region22: #{generator_forward.5} parent=1 // pred_check
      _
    $region23: #{generator_forward.5} parent=1 // pred_check_branch
      %57 = sbr.rel (0) target = $region25
    $region24: #{generator_forward.5} parent=1 // pred_region
      %s59 = ssub.s32 2048, 2048
      %60 = vsyncadd [#allocation8], %s59
      %s61 = sshll.u32 [#allocation7], 4
      %s62 = int_to_ptr.vmem [resolvable:$true] %s61
      %67 = dma.hbm_to_vmem [thread:$0]  %s5, 2048, %s62, [#allocation8], 128, 128, 8
    $region25: #{generator_forward.5} parent=1 // pred_fallthru
      _
    // Predicated region
    $region26: #{generator_forward.5} parent=1 // pred_check
      _
    $region27: #{generator_forward.5} parent=1 // pred_check_branch
      %69 = sbr.rel (0) target = $region29
    $region28: #{generator_forward.5} parent=1 // pred_region
      %s71 = ssub.s32 32, 32
      %72 = vsyncadd [#allocation8], %s71
      %s74 = sshll.u32 [#allocation9], 4
      %s75 = int_to_ptr.vmem [resolvable:$true] %s74
      %77 = dma.hbm_to_vmem [thread:$0]  %s6, 32, %s75, [#allocation8]
    $region29: #{generator_forward.5} parent=1 // pred_fallthru
      _
    // Predicated region
    $region30: #{generator_forward.5} parent=1 // pred_check
      _
    $region31: #{generator_forward.5} parent=1 // pred_check_branch
      %79 = sbr.rel (0) target = $region33
    $region32: #{generator_forward.5} parent=1 // pred_region
      %s81 = ssub.s32 16384, 16384
      %82 = vsyncadd [#allocation11], %s81
      %s83 = sshll.u32 [#allocation10], 4
      %s84 = int_to_ptr.vmem [resolvable:$true] %s83
      %89 = dma.hbm_to_vmem [thread:$0]  %s7, 16384, %s84, [#allocation11], 512, 512, 32
    $region33: #{generator_forward.5} parent=1 // pred_fallthru
      _
    // Predicated region
    $region34: #{generator_forward.5} parent=1 // pred_check
      _
    $region35: #{generator_forward.5} parent=1 // pred_check_branch
      %91 = sbr.rel (0) target = $region37
    $region36: #{generator_forward.5} parent=1 // pred_region
      %s93 = ssub.s32 128, 128
      %94 = vsyncadd [#allocation11], %s93
      %s96 = sshll.u32 [#allocation12], 4
      %s97 = int_to_ptr.vmem [resolvable:$true] %s96
      %99 = dma.hbm_to_vmem [thread:$0]  %s8, 128, %s97, [#allocation11]
    $region37: #{generator_forward.5} parent=1 // pred_fallthru
      _
    // Predicated region
    $region38: #{generator_forward.5} parent=1 // pred_check
      _
    $region39: #{generator_forward.5} parent=1 // pred_check_branch
      %101 = sbr.rel (0) target = $region41
    $region40: #{generator_forward.5} parent=1 // pred_region
      %102 = dma.done [#allocation3], 1024
    $region41: #{generator_forward.5} parent=1 // pred_fallthru
      _
    // Predicated region
    $region42: #{generator_forward.5} parent=1 // pred_check
      _
    $region43: #{generator_forward.5} parent=1 // pred_check_branch
      %104 = sbr.rel (0) target = $region45
    $region44: #{generator_forward.5} parent=1 // pred_region
      %105 = dma.done [#allocation5], 16
    $region45: #{generator_forward.5} parent=1 // pred_fallthru
      _
    // Predicated region
    $region46: #{generator_forward.5} parent=1 // pred_check
      _
    $region47: #{generator_forward.5} parent=1 // pred_check_branch
      %107 = sbr.rel (0) target = $region49
    $region48: #{generator_forward.5} parent=1 // pred_region
      %108 = dma.done [#allocation5], 2048
    $region49: #{generator_forward.5} parent=1 // pred_fallthru
      _
    // Predicated region
    $region50: #{generator_forward.5} parent=1 // pred_check
      _
    $region51: #{generator_forward.5} parent=1 // pred_check_branch
      %110 = sbr.rel (0) target = $region53
    $region52: #{generator_forward.5} parent=1 // pred_region
      %111 = dma.done [#allocation8], 2048
    $region53: #{generator_forward.5} parent=1 // pred_fallthru
      _
    // Predicated region
    $region54: #{generator_forward.5} parent=1 // pred_check
      _
    $region55: #{generator_forward.5} parent=1 // pred_check_branch
      %113 = sbr.rel (0) target = $region57
    $region56: #{generator_forward.5} parent=1 // pred_region
      %114 = dma.done [#allocation8], 32
    $region57: #{generator_forward.5} parent=1 // pred_fallthru
      _
    // Predicated region
    $region58: #{generator_forward.5} parent=1 // pred_check
      _
    $region59: #{generator_forward.5} parent=1 // pred_check_branch
      %116 = sbr.rel (0) target = $region61
    $region60: #{generator_forward.5} parent=1 // pred_region
      %117 = dma.done [#allocation11], 16384
    $region61: #{generator_forward.5} parent=1 // pred_fallthru
      _
    // Predicated region
    $region62: #{generator_forward.5} parent=1 // pred_check
      _
    $region63: #{generator_forward.5} parent=1 // pred_check_branch
      %119 = sbr.rel (0) target = $region65
    $region64: #{generator_forward.5} parent=1 // pred_region
      %120 = dma.done [#allocation11], 128
    $region65: #{generator_forward.5} parent=1 // pred_fallthru
      _
    %v122 = vld [vmem:[%s1] sm:$0xf]
    %v123 = vld [vmem:[#allocation2] sm:$0xf]
    %v124 = vld [vmem:[#allocation2 + $0x4] sm:$0xf]
    %v125 = vld [vmem:[#allocation2 + $0x8] sm:$0xf]
    %v126 = vld [vmem:[#allocation2 + $0xc] sm:$0xf]
    %v127 = vld [vmem:[#allocation2 + $0x10] sm:$0xf]
    %v128 = vld [vmem:[#allocation2 + $0x14] sm:$0xf]
    %v129 = vld [vmem:[#allocation2 + $0x18] sm:$0xf]
    %v130 = vld [vmem:[#allocation2 + $0x1c] sm:$0xf]
    %v131 = vld [vmem:[#allocation2 + $0x20] sm:$0xf]
    %v132 = vld [vmem:[#allocation2 + $0x24] sm:$0xf]
    %v133 = vld [vmem:[#allocation2 + $0x28] sm:$0xf]
    %v134 = vld [vmem:[#allocation2 + $0x2c] sm:$0xf]
    %v135 = vld [vmem:[#allocation2 + $0x30] sm:$0xf]
    %v136 = vld [vmem:[#allocation2 + $0x34] sm:$0xf]
    %v137 = vld [vmem:[#allocation2 + $0x38] sm:$0xf]
    %v138 = vld [vmem:[#allocation2 + $0x3c] sm:$0xf]
    %v139 = vld [vmem:[#allocation4] sm:$0x1]
    %v141 = vlaneseq
    %v142 = vshrl.u32 %v141, 7
    %v143 = vsub.s32 0, %v142
    %v144 = vrot.slane %v139, %v143
    %v162 = vunpack.c.l.b16 %v123
    %v163 = vunpack.c.l.b16 %v124
    %v164 = vunpack.c.l.b16 %v125
    %v165 = vunpack.c.l.b16 %v126
    %v166 = vunpack.c.l.b16 %v127
    %v167 = vunpack.c.l.b16 %v128
    %v168 = vunpack.c.l.b16 %v129
    %v169 = vunpack.c.l.b16 %v130
    %v170 = vunpack.c.l.b16 %v131
    %v171 = vunpack.c.l.b16 %v132
    %v172 = vunpack.c.l.b16 %v133
    %v173 = vunpack.c.l.b16 %v134
    %v174 = vunpack.c.l.b16 %v135
    %v175 = vunpack.c.l.b16 %v136
    %v176 = vunpack.c.l.b16 %v137
    %v177 = vunpack.c.l.b16 %v138
    %v178 = vpack.c.b16 %v163, %v162
    %v179 = vpack.c.b16 %v165, %v164
    %v180 = vpack.c.b16 %v167, %v166
    %v181 = vpack.c.b16 %v169, %v168
    %v182 = vpack.c.b16 %v171, %v170
    %v183 = vpack.c.b16 %v173, %v172
    %v184 = vpack.c.b16 %v175, %v174
    %v185 = vpack.c.b16 %v177, %v176
    %194 = vmatprep.subr.bf16.mxu0 0
    %195 = vmatpush1.bf16.msra.mxu0 %v178
    %196 = vmatprep.subr.bf16.mxu0 0
    %197 = vmatpush1.bf16.msra.mxu0 %v179
    %198 = vmatprep.subr.bf16.mxu0 0
    %199 = vmatpush1.bf16.msra.mxu0 %v180
    %200 = vmatprep.subr.bf16.mxu0 0
    %201 = vmatpush1.bf16.msra.mxu0 %v181
    %202 = vmatprep.subr.bf16.mxu0 0
    %203 = vmatpush1.bf16.msra.mxu0 %v182
    %204 = vmatprep.subr.bf16.mxu0 0
    %205 = vmatpush1.bf16.msra.mxu0 %v183
    %206 = vmatprep.subr.bf16.mxu0 0
    %207 = vmatpush1.bf16.msra.mxu0 %v184
    %208 = vmatprep.subr.bf16.mxu0 0
    %209 = vmatpush1.bf16.msra.mxu0 %v185
    %210 = vmatprep.subr.bf16.mxu0 0
    %211 = vmatpush1.bf16.msra.mxu0 0
    %212 = vmatprep.subr.bf16.mxu0 0
    %213 = vmatpush1.bf16.msra.mxu0 0
    %214 = vmatprep.subr.bf16.mxu0 0
    %215 = vmatpush1.bf16.msra.mxu0 0
    %216 = vmatprep.subr.bf16.mxu0 0
    %217 = vmatpush1.bf16.msra.mxu0 0
    %218 = vmatprep.subr.bf16.mxu0 0
    %219 = vmatpush1.bf16.msra.mxu0 0
    %220 = vmatprep.subr.bf16.mxu0 0
    %221 = vmatpush1.bf16.msra.mxu0 0
    %222 = vmatprep.subr.bf16.mxu0 0
    %223 = vmatpush1.bf16.msra.mxu0 0
    %224 = vmatprep.subr.bf16.mxu0 0
    %225 = vmatpush1.bf16.msra.mxu0 0
    %226 = vmatprep.mubr.bf16.mxu0 0
    %227 = vmatmul.mubr.bf16.gmra.mrb[0].mxu0 %v122
    %v228 = vpop.f32.mrb[0].mxu0
    %v229 = vadd.f32 %v144, %v228
    %v230 = vpop.f32.mrb[0].mxu0
    %v231 = vpop.f32.mrb[0].mxu0
    %v232 = vpop.f32.mrb[0].mxu0
    %233 = vdwg.mxu0
    %v234 = vld [vmem:[%s0] sm:$0xf]
    %v235 = vld [vmem:[#allocation6] sm:$0xff]
    %v236 = vld [vmem:[#allocation6 + $0x8] sm:$0xff]
    %v237 = vld [vmem:[#allocation6 + $0x10] sm:$0xff]
    %v238 = vld [vmem:[#allocation6 + $0x18] sm:$0xff]
    %v239 = vld [vmem:[#allocation6 + $0x20] sm:$0xff]
    %v240 = vld [vmem:[#allocation6 + $0x28] sm:$0xff]
    %v241 = vld [vmem:[#allocation6 + $0x30] sm:$0xff]
    %v242 = vld [vmem:[#allocation6 + $0x38] sm:$0xff]
    %v243 = vld [vmem:[#allocation6 + $0x40] sm:$0xff]
    %v244 = vld [vmem:[#allocation6 + $0x48] sm:$0xff]
    %v245 = vld [vmem:[#allocation6 + $0x50] sm:$0xff]
    %v246 = vld [vmem:[#allocation6 + $0x58] sm:$0xff]
    %v247 = vld [vmem:[#allocation6 + $0x60] sm:$0xff]
    %v248 = vld [vmem:[#allocation6 + $0x68] sm:$0xff]
    %v249 = vld [vmem:[#allocation6 + $0x70] sm:$0xff]
    %v250 = vld [vmem:[#allocation6 + $0x78] sm:$0xff]
    %v251 = vpack.c.bf16 %v229, %v229
    %v252 = vld [vmem:[#allocation7] sm:$0xff]
    %v253 = vld [vmem:[#allocation7 + $0x8] sm:$0xff]
    %v254 = vld [vmem:[#allocation7 + $0x10] sm:$0xff]
    %v255 = vld [vmem:[#allocation7 + $0x18] sm:$0xff]
    %v256 = vld [vmem:[#allocation7 + $0x20] sm:$0xff]
    %v257 = vld [vmem:[#allocation7 + $0x28] sm:$0xff]
    %v258 = vld [vmem:[#allocation7 + $0x30] sm:$0xff]
    %v259 = vld [vmem:[#allocation7 + $0x38] sm:$0xff]
    %v260 = vld [vmem:[#allocation7 + $0x40] sm:$0xff]
    %v261 = vld [vmem:[#allocation7 + $0x48] sm:$0xff]
    %v262 = vld [vmem:[#allocation7 + $0x50] sm:$0xff]
    %v263 = vld [vmem:[#allocation7 + $0x58] sm:$0xff]
    %v264 = vld [vmem:[#allocation7 + $0x60] sm:$0xff]
    %v265 = vld [vmem:[#allocation7 + $0x68] sm:$0xff]
    %v266 = vld [vmem:[#allocation7 + $0x70] sm:$0xff]
    %v267 = vld [vmem:[#allocation7 + $0x78] sm:$0xff]
    %v284 = vunpack.c.l.b16 %v252
    %v285 = vunpack.c.h.b16 %v252
    %v286 = vunpack.c.l.b16 %v253
    %v287 = vunpack.c.h.b16 %v253
    %v288 = vunpack.c.l.b16 %v254
    %v289 = vunpack.c.h.b16 %v254
    %v290 = vunpack.c.l.b16 %v255
    %v291 = vunpack.c.h.b16 %v255
    %v292 = vunpack.c.l.b16 %v256
    %v293 = vunpack.c.h.b16 %v256
    %v294 = vunpack.c.l.b16 %v257
    %v295 = vunpack.c.h.b16 %v257
    %v296 = vunpack.c.l.b16 %v258
    %v297 = vunpack.c.h.b16 %v258
    %v298 = vunpack.c.l.b16 %v259
    %v299 = vunpack.c.h.b16 %v259
    %v300 = vunpack.c.l.b16 %v260
    %v301 = vunpack.c.h.b16 %v260
    %v302 = vunpack.c.l.b16 %v261
    %v303 = vunpack.c.h.b16 %v261
    %v304 = vunpack.c.l.b16 %v262
    %v305 = vunpack.c.h.b16 %v262
    %v306 = vunpack.c.l.b16 %v263
    %v307 = vunpack.c.h.b16 %v263
    %v308 = vunpack.c.l.b16 %v264
    %v309 = vunpack.c.h.b16 %v264
    %v310 = vunpack.c.l.b16 %v265
    %v311 = vunpack.c.h.b16 %v265
    %v312 = vunpack.c.l.b16 %v266
    %v313 = vunpack.c.h.b16 %v266
    %v314 = vunpack.c.l.b16 %v267
    %v315 = vunpack.c.h.b16 %v267
    %v316 = vpack.c.b16 %v286, %v284
    %v317 = vpack.c.b16 %v287, %v285
    %v318 = vpack.c.b16 %v290, %v288
    %v319 = vpack.c.b16 %v291, %v289
    %v320 = vpack.c.b16 %v294, %v292
    %v321 = vpack.c.b16 %v295, %v293
    %v322 = vpack.c.b16 %v298, %v296
    %v323 = vpack.c.b16 %v299, %v297
    %v324 = vpack.c.b16 %v302, %v300
    %v325 = vpack.c.b16 %v303, %v301
    %v326 = vpack.c.b16 %v306, %v304
    %v327 = vpack.c.b16 %v307, %v305
    %v328 = vpack.c.b16 %v310, %v308
    %v329 = vpack.c.b16 %v311, %v309
    %v330 = vpack.c.b16 %v314, %v312
    %v331 = vpack.c.b16 %v315, %v313
    %348 = vmatprep.subr.bf16.mxu0 %v317
    %349 = vmatpush1.bf16.msra.mxu0 %v316
    %350 = vmatprep.subr.bf16.mxu0 %v319
    %351 = vmatpush1.bf16.msra.mxu0 %v318
    %352 = vmatprep.subr.bf16.mxu0 %v321
    %353 = vmatpush1.bf16.msra.mxu0 %v320
    %354 = vmatprep.subr.bf16.mxu0 %v323
    %355 = vmatpush1.bf16.msra.mxu0 %v322
    %356 = vmatprep.subr.bf16.mxu0 %v325
    %357 = vmatpush1.bf16.msra.mxu0 %v324
    %358 = vmatprep.subr.bf16.mxu0 %v327
    %359 = vmatpush1.bf16.msra.mxu0 %v326
    %360 = vmatprep.subr.bf16.mxu0 %v329
    %361 = vmatpush1.bf16.msra.mxu0 %v328
    %362 = vmatprep.subr.bf16.mxu0 %v331
    %363 = vmatpush1.bf16.msra.mxu0 %v330
    %364 = vmatprep.subr.bf16.mxu0 0
    %365 = vmatpush1.bf16.msra.mxu0 0
    %366 = vmatprep.subr.bf16.mxu0 0
    %367 = vmatpush1.bf16.msra.mxu0 0
    %368 = vmatprep.subr.bf16.mxu0 0
    %369 = vmatpush1.bf16.msra.mxu0 0
    %370 = vmatprep.subr.bf16.mxu0 0
    %371 = vmatpush1.bf16.msra.mxu0 0
    %372 = vmatprep.subr.bf16.mxu0 0
    %373 = vmatpush1.bf16.msra.mxu0 0
    %374 = vmatprep.subr.bf16.mxu0 0
    %375 = vmatpush1.bf16.msra.mxu0 0
    %376 = vmatprep.subr.bf16.mxu0 0
    %377 = vmatpush1.bf16.msra.mxu0 0
    %378 = vmatprep.subr.bf16.mxu0 0
    %379 = vmatpush1.bf16.msra.mxu0 0
    %380 = vmatprep.mubr.bf16.mxu0 0
    %381 = vmatmul.mubr.bf16.gmra.mrb[0].mxu0 %v251
    %v382 = vpop.f32.mrb[0].mxu0
    %v383 = vadd.f32 0.0, %v382
    %v384 = vpop.f32.mrb[0].mxu0
    %v385 = vadd.f32 0.0, %v384
    %v386 = vpop.f32.mrb[0].mxu0
    %v387 = vpop.f32.mrb[0].mxu0
    %388 = vdwg.mxu0
    %v405 = vunpack.c.l.b16 %v235
    %v406 = vunpack.c.h.b16 %v235
    %v407 = vunpack.c.l.b16 %v236
    %v408 = vunpack.c.h.b16 %v236
    %v409 = vunpack.c.l.b16 %v237
    %v410 = vunpack.c.h.b16 %v237
    %v411 = vunpack.c.l.b16 %v238
    %v412 = vunpack.c.h.b16 %v238
    %v413 = vunpack.c.l.b16 %v239
    %v414 = vunpack.c.h.b16 %v239
    %v415 = vunpack.c.l.b16 %v240
    %v416 = vunpack.c.h.b16 %v240
    %v417 = vunpack.c.l.b16 %v241
    %v418 = vunpack.c.h.b16 %v241
    %v419 = vunpack.c.l.b16 %v242
    %v420 = vunpack.c.h.b16 %v242
    %v421 = vunpack.c.l.b16 %v243
    %v422 = vunpack.c.h.b16 %v243
    %v423 = vunpack.c.l.b16 %v244
    %v424 = vunpack.c.h.b16 %v244
    %v425 = vunpack.c.l.b16 %v245
    %v426 = vunpack.c.h.b16 %v245
    %v427 = vunpack.c.l.b16 %v246
    %v428 = vunpack.c.h.b16 %v246
    %v429 = vunpack.c.l.b16 %v247
    %v430 = vunpack.c.h.b16 %v247
    %v431 = vunpack.c.l.b16 %v248
    %v432 = vunpack.c.h.b16 %v248
    %v433 = vunpack.c.l.b16 %v249
    %v434 = vunpack.c.h.b16 %v249
    %v435 = vunpack.c.l.b16 %v250
    %v436 = vunpack.c.h.b16 %v250
    %v437 = vpack.c.b16 %v407, %v405
    %v438 = vpack.c.b16 %v408, %v406
    %v439 = vpack.c.b16 %v411, %v409
    %v440 = vpack.c.b16 %v412, %v410
    %v441 = vpack.c.b16 %v415, %v413
    %v442 = vpack.c.b16 %v416, %v414
    %v443 = vpack.c.b16 %v419, %v417
    %v444 = vpack.c.b16 %v420, %v418
    %v445 = vpack.c.b16 %v423, %v421
    %v446 = vpack.c.b16 %v424, %v422
    %v447 = vpack.c.b16 %v427, %v425
    %v448 = vpack.c.b16 %v428, %v426
    %v449 = vpack.c.b16 %v431, %v429
    %v450 = vpack.c.b16 %v432, %v430
    %v451 = vpack.c.b16 %v435, %v433
    %v452 = vpack.c.b16 %v436, %v434
    %469 = vmatprep.subr.bf16.mxu0 %v438
    %470 = vmatpush1.bf16.msra.mxu0 %v437
    %471 = vmatprep.subr.bf16.mxu0 %v440
    %472 = vmatpush1.bf16.msra.mxu0 %v439
    %473 = vmatprep.subr.bf16.mxu0 %v442
    %474 = vmatpush1.bf16.msra.mxu0 %v441
    %475 = vmatprep.subr.bf16.mxu0 %v444
    %476 = vmatpush1.bf16.msra.mxu0 %v443
    %477 = vmatprep.subr.bf16.mxu0 %v446
    %478 = vmatpush1.bf16.msra.mxu0 %v445
    %479 = vmatprep.subr.bf16.mxu0 %v448
    %480 = vmatpush1.bf16.msra.mxu0 %v447
    %481 = vmatprep.subr.bf16.mxu0 %v450
    %482 = vmatpush1.bf16.msra.mxu0 %v449
    %483 = vmatprep.subr.bf16.mxu0 %v452
    %484 = vmatpush1.bf16.msra.mxu0 %v451
    %485 = vmatprep.subr.bf16.mxu0 0
    %486 = vmatpush1.bf16.msra.mxu0 0
    %487 = vmatprep.subr.bf16.mxu0 0
    %488 = vmatpush1.bf16.msra.mxu0 0
    %489 = vmatprep.subr.bf16.mxu0 0
    %490 = vmatpush1.bf16.msra.mxu0 0
    %491 = vmatprep.subr.bf16.mxu0 0
    %492 = vmatpush1.bf16.msra.mxu0 0
    %493 = vmatprep.subr.bf16.mxu0 0
    %494 = vmatpush1.bf16.msra.mxu0 0
    %495 = vmatprep.subr.bf16.mxu0 0
    %496 = vmatpush1.bf16.msra.mxu0 0
    %497 = vmatprep.subr.bf16.mxu0 0
    %498 = vmatpush1.bf16.msra.mxu0 0
    %499 = vmatprep.subr.bf16.mxu0 0
    %500 = vmatpush1.bf16.msra.mxu0 0
    %501 = vmatprep.mubr.bf16.mxu0 0
    %502 = vmatmul.mubr.bf16.gmra.mrb[0].mxu0 %v234
    %v503 = vpop.f32.mrb[0].mxu0
    %v504 = vadd.f32 %v383, %v503
    %v505 = vpop.f32.mrb[0].mxu0
    %v506 = vadd.f32 %v385, %v505
    %v507 = vpop.f32.mrb[0].mxu0
    %v508 = vpop.f32.mrb[0].mxu0
    %509 = vdwg.mxu0
    %v510 = vld [vmem:[#allocation9] sm:$0x3]
    %v512 = vlaneseq
    %v513 = vshrl.u32 %v512, 7
    %v514 = vsub.s32 0, %v513
    %v515 = vrot.slane %v510, %v514
    %v516 = vlaneseq
    %v517 = vshrl.u32 %v516, 7
    %v518 = vsub.s32 1, %v517
    %v519 = vrot.slane %v510, %v518
    %v522 = vadd.f32 %v504, %v515
    %v523 = vadd.f32 %v506, %v519
    %v524 = vmax.f32 %v522, 0.0
    %v525 = vmax.f32 %v523, 0.0
    %v526 = vpack.c.bf16 %v524, %v524
    %v527 = vpack.c.bf16 %v525, %v525
    %v528 = vld [vmem:[#allocation10] sm:$0xff]
    %v529 = vld [vmem:[#allocation10 + $0x8] sm:$0xff]
    %v530 = vld [vmem:[#allocation10 + $0x10] sm:$0xff]
    %v531 = vld [vmem:[#allocation10 + $0x18] sm:$0xff]
    %v532 = vld [vmem:[#allocation10 + $0x20] sm:$0xff]
    %v533 = vld [vmem:[#allocation10 + $0x28] sm:$0xff]
    %v534 = vld [vmem:[#allocation10 + $0x30] sm:$0xff]
    %v535 = vld [vmem:[#allocation10 + $0x38] sm:$0xff]
    %v536 = vld [vmem:[#allocation10 + $0x40] sm:$0xff]
    %v537 = vld [vmem:[#allocation10 + $0x48] sm:$0xff]
    %v538 = vld [vmem:[#allocation10 + $0x50] sm:$0xff]
    %v539 = vld [vmem:[#allocation10 + $0x58] sm:$0xff]
    %v540 = vld [vmem:[#allocation10 + $0x60] sm:$0xff]
    %v541 = vld [vmem:[#allocation10 + $0x68] sm:$0xff]
    %v542 = vld [vmem:[#allocation10 + $0x70] sm:$0xff]
    %v543 = vld [vmem:[#allocation10 + $0x78] sm:$0xff]
    %v544 = vld [vmem:[#allocation10 + $0x80] sm:$0xff]
    %v545 = vld [vmem:[#allocation10 + $0x88] sm:$0xff]
    %v546 = vld [vmem:[#allocation10 + $0x90] sm:$0xff]
    %v547 = vld [vmem:[#allocation10 + $0x98] sm:$0xff]
    %v548 = vld [vmem:[#allocation10 + $0xa0] sm:$0xff]
    %v549 = vld [vmem:[#allocation10 + $0xa8] sm:$0xff]
    %v550 = vld [vmem:[#allocation10 + $0xb0] sm:$0xff]
    %v551 = vld [vmem:[#allocation10 + $0xb8] sm:$0xff]
    %v552 = vld [vmem:[#allocation10 + $0xc0] sm:$0xff]
    %v553 = vld [vmem:[#allocation10 + $0xc8] sm:$0xff]
    %v554 = vld [vmem:[#allocation10 + $0xd0] sm:$0xff]
    %v555 = vld [vmem:[#allocation10 + $0xd8] sm:$0xff]
    %v556 = vld [vmem:[#allocation10 + $0xe0] sm:$0xff]
    %v557 = vld [vmem:[#allocation10 + $0xe8] sm:$0xff]
    %v558 = vld [vmem:[#allocation10 + $0xf0] sm:$0xff]
    %v559 = vld [vmem:[#allocation10 + $0xf8] sm:$0xff]
    %v560 = vld [vmem:[#allocation10 + $0x100] sm:$0xff]
    %v561 = vld [vmem:[#allocation10 + $0x108] sm:$0xff]
    %v562 = vld [vmem:[#allocation10 + $0x110] sm:$0xff]
    %v563 = vld [vmem:[#allocation10 + $0x118] sm:$0xff]
    %v564 = vld [vmem:[#allocation10 + $0x120] sm:$0xff]
    %v565 = vld [vmem:[#allocation10 + $0x128] sm:$0xff]
    %v566 = vld [vmem:[#allocation10 + $0x130] sm:$0xff]
    %v567 = vld [vmem:[#allocation10 + $0x138] sm:$0xff]
    %v568 = vld [vmem:[#allocation10 + $0x140] sm:$0xff]
    %v569 = vld [vmem:[#allocation10 + $0x148] sm:$0xff]
    %v570 = vld [vmem:[#allocation10 + $0x150] sm:$0xff]
    %v571 = vld [vmem:[#allocation10 + $0x158] sm:$0xff]
    %v572 = vld [vmem:[#allocation10 + $0x160] sm:$0xff]
    %v573 = vld [vmem:[#allocation10 + $0x168] sm:$0xff]
    %v574 = vld [vmem:[#allocation10 + $0x170] sm:$0xff]
    %v575 = vld [vmem:[#allocation10 + $0x178] sm:$0xff]
    %v576 = vld [vmem:[#allocation10 + $0x180] sm:$0xff]
    %v577 = vld [vmem:[#allocation10 + $0x188] sm:$0xff]
    %v578 = vld [vmem:[#allocation10 + $0x190] sm:$0xff]
    %v579 = vld [vmem:[#allocation10 + $0x198] sm:$0xff]
    %v580 = vld [vmem:[#allocation10 + $0x1a0] sm:$0xff]
    %v581 = vld [vmem:[#allocation10 + $0x1a8] sm:$0xff]
    %v582 = vld [vmem:[#allocation10 + $0x1b0] sm:$0xff]
    %v583 = vld [vmem:[#allocation10 + $0x1b8] sm:$0xff]
    %v584 = vld [vmem:[#allocation10 + $0x1c0] sm:$0xff]
    %v585 = vld [vmem:[#allocation10 + $0x1c8] sm:$0xff]
    %v586 = vld [vmem:[#allocation10 + $0x1d0] sm:$0xff]
    %v587 = vld [vmem:[#allocation10 + $0x1d8] sm:$0xff]
    %v588 = vld [vmem:[#allocation10 + $0x1e0] sm:$0xff]
    %v589 = vld [vmem:[#allocation10 + $0x1e8] sm:$0xff]
    %v590 = vld [vmem:[#allocation10 + $0x1f0] sm:$0xff]
    %v591 = vld [vmem:[#allocation10 + $0x1f8] sm:$0xff]
    %v592 = vld [vmem:[#allocation10 + $0x200] sm:$0xff]
    %v593 = vld [vmem:[#allocation10 + $0x208] sm:$0xff]
    %v594 = vld [vmem:[#allocation10 + $0x210] sm:$0xff]
    %v595 = vld [vmem:[#allocation10 + $0x218] sm:$0xff]
    %v596 = vld [vmem:[#allocation10 + $0x220] sm:$0xff]
    %v597 = vld [vmem:[#allocation10 + $0x228] sm:$0xff]
    %v598 = vld [vmem:[#allocation10 + $0x230] sm:$0xff]
    %v599 = vld [vmem:[#allocation10 + $0x238] sm:$0xff]
    %v600 = vld [vmem:[#allocation10 + $0x240] sm:$0xff]
    %v601 = vld [vmem:[#allocation10 + $0x248] sm:$0xff]
    %v602 = vld [vmem:[#allocation10 + $0x250] sm:$0xff]
    %v603 = vld [vmem:[#allocation10 + $0x258] sm:$0xff]
    %v604 = vld [vmem:[#allocation10 + $0x260] sm:$0xff]
    %v605 = vld [vmem:[#allocation10 + $0x268] sm:$0xff]
    %v606 = vld [vmem:[#allocation10 + $0x270] sm:$0xff]
    %v607 = vld [vmem:[#allocation10 + $0x278] sm:$0xff]
    %v608 = vld [vmem:[#allocation10 + $0x280] sm:$0xff]
    %v609 = vld [vmem:[#allocation10 + $0x288] sm:$0xff]
    %v610 = vld [vmem:[#allocation10 + $0x290] sm:$0xff]
    %v611 = vld [vmem:[#allocation10 + $0x298] sm:$0xff]
    %v612 = vld [vmem:[#allocation10 + $0x2a0] sm:$0xff]
    %v613 = vld [vmem:[#allocation10 + $0x2a8] sm:$0xff]
    %v614 = vld [vmem:[#allocation10 + $0x2b0] sm:$0xff]
    %v615 = vld [vmem:[#allocation10 + $0x2b8] sm:$0xff]
    %v616 = vld [vmem:[#allocation10 + $0x2c0] sm:$0xff]
    %v617 = vld [vmem:[#allocation10 + $0x2c8] sm:$0xff]
    %v618 = vld [vmem:[#allocation10 + $0x2d0] sm:$0xff]
    %v619 = vld [vmem:[#allocation10 + $0x2d8] sm:$0xff]
    %v620 = vld [vmem:[#allocation10 + $0x2e0] sm:$0xff]
    %v621 = vld [vmem:[#allocation10 + $0x2e8] sm:$0xff]
    %v622 = vld [vmem:[#allocation10 + $0x2f0] sm:$0xff]
    %v623 = vld [vmem:[#allocation10 + $0x2f8] sm:$0xff]
    %v624 = vld [vmem:[#allocation10 + $0x300] sm:$0xff]
    %v625 = vld [vmem:[#allocation10 + $0x308] sm:$0xff]
    %v626 = vld [vmem:[#allocation10 + $0x310] sm:$0xff]
    %v627 = vld [vmem:[#allocation10 + $0x318] sm:$0xff]
    %v628 = vld [vmem:[#allocation10 + $0x320] sm:$0xff]
    %v629 = vld [vmem:[#allocation10 + $0x328] sm:$0xff]
    %v630 = vld [vmem:[#allocation10 + $0x330] sm:$0xff]
    %v631 = vld [vmem:[#allocation10 + $0x338] sm:$0xff]
    %v632 = vld [vmem:[#allocation10 + $0x340] sm:$0xff]
    %v633 = vld [vmem:[#allocation10 + $0x348] sm:$0xff]
    %v634 = vld [vmem:[#allocation10 + $0x350] sm:$0xff]
    %v635 = vld [vmem:[#allocation10 + $0x358] sm:$0xff]
    %v636 = vld [vmem:[#allocation10 + $0x360] sm:$0xff]
    %v637 = vld [vmem:[#allocation10 + $0x368] sm:$0xff]
    %v638 = vld [vmem:[#allocation10 + $0x370] sm:$0xff]
    %v639 = vld [vmem:[#allocation10 + $0x378] sm:$0xff]
    %v640 = vld [vmem:[#allocation10 + $0x380] sm:$0xff]
    %v641 = vld [vmem:[#allocation10 + $0x388] sm:$0xff]
    %v642 = vld [vmem:[#allocation10 + $0x390] sm:$0xff]
    %v643 = vld [vmem:[#allocation10 + $0x398] sm:$0xff]
    %v644 = vld [vmem:[#allocation10 + $0x3a0] sm:$0xff]
    %v645 = vld [vmem:[#allocation10 + $0x3a8] sm:$0xff]
    %v646 = vld [vmem:[#allocation10 + $0x3b0] sm:$0xff]
    %v647 = vld [vmem:[#allocation10 + $0x3b8] sm:$0xff]
    %v648 = vld [vmem:[#allocation10 + $0x3c0] sm:$0xff]
    %v649 = vld [vmem:[#allocation10 + $0x3c8] sm:$0xff]
    %v650 = vld [vmem:[#allocation10 + $0x3d0] sm:$0xff]
    %v651 = vld [vmem:[#allocation10 + $0x3d8] sm:$0xff]
    %v652 = vld [vmem:[#allocation10 + $0x3e0] sm:$0xff]
    %v653 = vld [vmem:[#allocation10 + $0x3e8] sm:$0xff]
    %v654 = vld [vmem:[#allocation10 + $0x3f0] sm:$0xff]
    %v655 = vld [vmem:[#allocation10 + $0x3f8] sm:$0xff]
    %v656 = vld [vmem:[#allocation12] sm:$0xff]
    %v658 = vlaneseq
    %v659 = vshrl.u32 %v658, 7
    %v660 = vsub.s32 0, %v659
    %v661 = vrot.slane %v656, %v660
    %v662 = vlaneseq
    %v663 = vshrl.u32 %v662, 7
    %v664 = vsub.s32 1, %v663
    %v665 = vrot.slane %v656, %v664
    %v666 = vlaneseq
    %v667 = vshrl.u32 %v666, 7
    %v668 = vsub.s32 2, %v667
    %v669 = vrot.slane %v656, %v668
    %v670 = vlaneseq
    %v671 = vshrl.u32 %v670, 7
    %v672 = vsub.s32 3, %v671
    %v673 = vrot.slane %v656, %v672
    %v674 = vlaneseq
    %v675 = vshrl.u32 %v674, 7
    %v676 = vsub.s32 4, %v675
    %v677 = vrot.slane %v656, %v676
    %v678 = vlaneseq
    %v679 = vshrl.u32 %v678, 7
    %v680 = vsub.s32 5, %v679
    %v681 = vrot.slane %v656, %v680
    %v682 = vlaneseq
    %v683 = vshrl.u32 %v682, 7
    %v684 = vsub.s32 6, %v683
    %v685 = vrot.slane %v656, %v684
    %v686 = vlaneseq
    %v687 = vshrl.u32 %v686, 7
    %v688 = vsub.s32 7, %v687
    %v689 = vrot.slane %v656, %v688
    %v826 = vunpack.c.l.b16 %v528
    %v827 = vunpack.c.h.b16 %v528
    %v828 = vunpack.c.l.b16 %v529
    %v829 = vunpack.c.h.b16 %v529
    %v830 = vunpack.c.l.b16 %v530
    %v831 = vunpack.c.h.b16 %v530
    %v832 = vunpack.c.l.b16 %v531
    %v833 = vunpack.c.h.b16 %v531
    %v834 = vunpack.c.l.b16 %v532
    %v835 = vunpack.c.h.b16 %v532
    %v836 = vunpack.c.l.b16 %v533
    %v837 = vunpack.c.h.b16 %v533
    %v838 = vunpack.c.l.b16 %v534
    %v839 = vunpack.c.h.b16 %v534
    %v840 = vunpack.c.l.b16 %v535
    %v841 = vunpack.c.h.b16 %v535
    %v842 = vunpack.c.l.b16 %v536
    %v843 = vunpack.c.h.b16 %v536
    %v844 = vunpack.c.l.b16 %v537
    %v845 = vunpack.c.h.b16 %v537
    %v846 = vunpack.c.l.b16 %v538
    %v847 = vunpack.c.h.b16 %v538
    %v848 = vunpack.c.l.b16 %v539
    %v849 = vunpack.c.h.b16 %v539
    %v850 = vunpack.c.l.b16 %v540
    %v851 = vunpack.c.h.b16 %v540
    %v852 = vunpack.c.l.b16 %v541
    %v853 = vunpack.c.h.b16 %v541
    %v854 = vunpack.c.l.b16 %v542
    %v855 = vunpack.c.h.b16 %v542
    %v856 = vunpack.c.l.b16 %v543
    %v857 = vunpack.c.h.b16 %v543
    %v858 = vunpack.c.l.b16 %v544
    %v859 = vunpack.c.h.b16 %v544
    %v860 = vunpack.c.l.b16 %v545
    %v861 = vunpack.c.h.b16 %v545
    %v862 = vunpack.c.l.b16 %v546
    %v863 = vunpack.c.h.b16 %v546
    %v864 = vunpack.c.l.b16 %v547
    %v865 = vunpack.c.h.b16 %v547
    %v866 = vunpack.c.l.b16 %v548
    %v867 = vunpack.c.h.b16 %v548
    %v868 = vunpack.c.l.b16 %v549
    %v869 = vunpack.c.h.b16 %v549
    %v870 = vunpack.c.l.b16 %v550
    %v871 = vunpack.c.h.b16 %v550
    %v872 = vunpack.c.l.b16 %v551
    %v873 = vunpack.c.h.b16 %v551
    %v874 = vunpack.c.l.b16 %v552
    %v875 = vunpack.c.h.b16 %v552
    %v876 = vunpack.c.l.b16 %v553
    %v877 = vunpack.c.h.b16 %v553
    %v878 = vunpack.c.l.b16 %v554
    %v879 = vunpack.c.h.b16 %v554
    %v880 = vunpack.c.l.b16 %v555
    %v881 = vunpack.c.h.b16 %v555
    %v882 = vunpack.c.l.b16 %v556
    %v883 = vunpack.c.h.b16 %v556
    %v884 = vunpack.c.l.b16 %v557
    %v885 = vunpack.c.h.b16 %v557
    %v886 = vunpack.c.l.b16 %v558
    %v887 = vunpack.c.h.b16 %v558
    %v888 = vunpack.c.l.b16 %v559
    %v889 = vunpack.c.h.b16 %v559
    %v890 = vunpack.c.l.b16 %v560
    %v891 = vunpack.c.h.b16 %v560
    %v892 = vunpack.c.l.b16 %v561
    %v893 = vunpack.c.h.b16 %v561
    %v894 = vunpack.c.l.b16 %v562
    %v895 = vunpack.c.h.b16 %v562
    %v896 = vunpack.c.l.b16 %v563
    %v897 = vunpack.c.h.b16 %v563
    %v898 = vunpack.c.l.b16 %v564
    %v899 = vunpack.c.h.b16 %v564
    %v900 = vunpack.c.l.b16 %v565
    %v901 = vunpack.c.h.b16 %v565
    %v902 = vunpack.c.l.b16 %v566
    %v903 = vunpack.c.h.b16 %v566
    %v904 = vunpack.c.l.b16 %v567
    %v905 = vunpack.c.h.b16 %v567
    %v906 = vunpack.c.l.b16 %v568
    %v907 = vunpack.c.h.b16 %v568
    %v908 = vunpack.c.l.b16 %v569
    %v909 = vunpack.c.h.b16 %v569
    %v910 = vunpack.c.l.b16 %v570
    %v911 = vunpack.c.h.b16 %v570
    %v912 = vunpack.c.l.b16 %v571
    %v913 = vunpack.c.h.b16 %v571
    %v914 = vunpack.c.l.b16 %v572
    %v915 = vunpack.c.h.b16 %v572
    %v916 = vunpack.c.l.b16 %v573
    %v917 = vunpack.c.h.b16 %v573
    %v918 = vunpack.c.l.b16 %v574
    %v919 = vunpack.c.h.b16 %v574
    %v920 = vunpack.c.l.b16 %v575
    %v921 = vunpack.c.h.b16 %v575
    %v922 = vunpack.c.l.b16 %v576
    %v923 = vunpack.c.h.b16 %v576
    %v924 = vunpack.c.l.b16 %v577
    %v925 = vunpack.c.h.b16 %v577
    %v926 = vunpack.c.l.b16 %v578
    %v927 = vunpack.c.h.b16 %v578
    %v928 = vunpack.c.l.b16 %v579
    %v929 = vunpack.c.h.b16 %v579
    %v930 = vunpack.c.l.b16 %v580
    %v931 = vunpack.c.h.b16 %v580
    %v932 = vunpack.c.l.b16 %v581
    %v933 = vunpack.c.h.b16 %v581
    %v934 = vunpack.c.l.b16 %v582
    %v935 = vunpack.c.h.b16 %v582
    %v936 = vunpack.c.l.b16 %v583
    %v937 = vunpack.c.h.b16 %v583
    %v938 = vunpack.c.l.b16 %v584
    %v939 = vunpack.c.h.b16 %v584
    %v940 = vunpack.c.l.b16 %v585
    %v941 = vunpack.c.h.b16 %v585
    %v942 = vunpack.c.l.b16 %v586
    %v943 = vunpack.c.h.b16 %v586
    %v944 = vunpack.c.l.b16 %v587
    %v945 = vunpack.c.h.b16 %v587
    %v946 = vunpack.c.l.b16 %v588
    %v947 = vunpack.c.h.b16 %v588
    %v948 = vunpack.c.l.b16 %v589
    %v949 = vunpack.c.h.b16 %v589
    %v950 = vunpack.c.l.b16 %v590
    %v951 = vunpack.c.h.b16 %v590
    %v952 = vunpack.c.l.b16 %v591
    %v953 = vunpack.c.h.b16 %v591
    %v954 = vunpack.c.l.b16 %v592
    %v955 = vunpack.c.h.b16 %v592
    %v956 = vunpack.c.l.b16 %v593
    %v957 = vunpack.c.h.b16 %v593
    %v958 = vunpack.c.l.b16 %v594
    %v959 = vunpack.c.h.b16 %v594
    %v960 = vunpack.c.l.b16 %v595
    %v961 = vunpack.c.h.b16 %v595
    %v962 = vunpack.c.l.b16 %v596
    %v963 = vunpack.c.h.b16 %v596
    %v964 = vunpack.c.l.b16 %v597
    %v965 = vunpack.c.h.b16 %v597
    %v966 = vunpack.c.l.b16 %v598
    %v967 = vunpack.c.h.b16 %v598
    %v968 = vunpack.c.l.b16 %v599
    %v969 = vunpack.c.h.b16 %v599
    %v970 = vunpack.c.l.b16 %v600
    %v971 = vunpack.c.h.b16 %v600
    %v972 = vunpack.c.l.b16 %v601
    %v973 = vunpack.c.h.b16 %v601
    %v974 = vunpack.c.l.b16 %v602
    %v975 = vunpack.c.h.b16 %v602
    %v976 = vunpack.c.l.b16 %v603
    %v977 = vunpack.c.h.b16 %v603
    %v978 = vunpack.c.l.b16 %v604
    %v979 = vunpack.c.h.b16 %v604
    %v980 = vunpack.c.l.b16 %v605
    %v981 = vunpack.c.h.b16 %v605
    %v982 = vunpack.c.l.b16 %v606
    %v983 = vunpack.c.h.b16 %v606
    %v984 = vunpack.c.l.b16 %v607
    %v985 = vunpack.c.h.b16 %v607
    %v986 = vunpack.c.l.b16 %v608
    %v987 = vunpack.c.h.b16 %v608
    %v988 = vunpack.c.l.b16 %v609
    %v989 = vunpack.c.h.b16 %v609
    %v990 = vunpack.c.l.b16 %v610
    %v991 = vunpack.c.h.b16 %v610
    %v992 = vunpack.c.l.b16 %v611
    %v993 = vunpack.c.h.b16 %v611
    %v994 = vunpack.c.l.b16 %v612
    %v995 = vunpack.c.h.b16 %v612
    %v996 = vunpack.c.l.b16 %v613
    %v997 = vunpack.c.h.b16 %v613
    %v998 = vunpack.c.l.b16 %v614
    %v999 = vunpack.c.h.b16 %v614
    %v1000 = vunpack.c.l.b16 %v615
    %v1001 = vunpack.c.h.b16 %v615
    %v1002 = vunpack.c.l.b16 %v616
    %v1003 = vunpack.c.h.b16 %v616
    %v1004 = vunpack.c.l.b16 %v617
    %v1005 = vunpack.c.h.b16 %v617
    %v1006 = vunpack.c.l.b16 %v618
    %v1007 = vunpack.c.h.b16 %v618
    %v1008 = vunpack.c.l.b16 %v619
    %v1009 = vunpack.c.h.b16 %v619
    %v1010 = vunpack.c.l.b16 %v620
    %v1011 = vunpack.c.h.b16 %v620
    %v1012 = vunpack.c.l.b16 %v621
    %v1013 = vunpack.c.h.b16 %v621
    %v1014 = vunpack.c.l.b16 %v622
    %v1015 = vunpack.c.h.b16 %v622
    %v1016 = vunpack.c.l.b16 %v623
    %v1017 = vunpack.c.h.b16 %v623
    %v1018 = vunpack.c.l.b16 %v624
    %v1019 = vunpack.c.h.b16 %v624
    %v1020 = vunpack.c.l.b16 %v625
    %v1021 = vunpack.c.h.b16 %v625
    %v1022 = vunpack.c.l.b16 %v626
    %v1023 = vunpack.c.h.b16 %v626
    %v1024 = vunpack.c.l.b16 %v627
    %v1025 = vunpack.c.h.b16 %v627
    %v1026 = vunpack.c.l.b16 %v628
    %v1027 = vunpack.c.h.b16 %v628
    %v1028 = vunpack.c.l.b16 %v629
    %v1029 = vunpack.c.h.b16 %v629
    %v1030 = vunpack.c.l.b16 %v630
    %v1031 = vunpack.c.h.b16 %v630
    %v1032 = vunpack.c.l.b16 %v631
    %v1033 = vunpack.c.h.b16 %v631
    %v1034 = vunpack.c.l.b16 %v632
    %v1035 = vunpack.c.h.b16 %v632
    %v1036 = vunpack.c.l.b16 %v633
    %v1037 = vunpack.c.h.b16 %v633
    %v1038 = vunpack.c.l.b16 %v634
    %v1039 = vunpack.c.h.b16 %v634
    %v1040 = vunpack.c.l.b16 %v635
    %v1041 = vunpack.c.h.b16 %v635
    %v1042 = vunpack.c.l.b16 %v636
    %v1043 = vunpack.c.h.b16 %v636
    %v1044 = vunpack.c.l.b16 %v637
    %v1045 = vunpack.c.h.b16 %v637
    %v1046 = vunpack.c.l.b16 %v638
    %v1047 = vunpack.c.h.b16 %v638
    %v1048 = vunpack.c.l.b16 %v639
    %v1049 = vunpack.c.h.b16 %v639
    %v1050 = vunpack.c.l.b16 %v640
    %v1051 = vunpack.c.h.b16 %v640
    %v1052 = vunpack.c.l.b16 %v641
    %v1053 = vunpack.c.h.b16 %v641
    %v1054 = vunpack.c.l.b16 %v642
    %v1055 = vunpack.c.h.b16 %v642
    %v1056 = vunpack.c.l.b16 %v643
    %v1057 = vunpack.c.h.b16 %v643
    %v1058 = vunpack.c.l.b16 %v644
    %v1059 = vunpack.c.h.b16 %v644
    %v1060 = vunpack.c.l.b16 %v645
    %v1061 = vunpack.c.h.b16 %v645
    %v1062 = vunpack.c.l.b16 %v646
    %v1063 = vunpack.c.h.b16 %v646
    %v1064 = vunpack.c.l.b16 %v647
    %v1065 = vunpack.c.h.b16 %v647
    %v1066 = vunpack.c.l.b16 %v648
    %v1067 = vunpack.c.h.b16 %v648
    %v1068 = vunpack.c.l.b16 %v649
    %v1069 = vunpack.c.h.b16 %v649
    %v1070 = vunpack.c.l.b16 %v650
    %v1071 = vunpack.c.h.b16 %v650
    %v1072 = vunpack.c.l.b16 %v651
    %v1073 = vunpack.c.h.b16 %v651
    %v1074 = vunpack.c.l.b16 %v652
    %v1075 = vunpack.c.h.b16 %v652
    %v1076 = vunpack.c.l.b16 %v653
    %v1077 = vunpack.c.h.b16 %v653
    %v1078 = vunpack.c.l.b16 %v654
    %v1079 = vunpack.c.h.b16 %v654
    %v1080 = vunpack.c.l.b16 %v655
    %v1081 = vunpack.c.h.b16 %v655
    %v1082 = vpack.c.b16 %v834, %v826
    %v1083 = vpack.c.b16 %v835, %v827
    %v1084 = vpack.c.b16 %v836, %v828
    %v1085 = vpack.c.b16 %v837, %v829
    %v1086 = vpack.c.b16 %v838, %v830
    %v1087 = vpack.c.b16 %v839, %v831
    %v1088 = vpack.c.b16 %v840, %v832
    %v1089 = vpack.c.b16 %v841, %v833
    %v1090 = vpack.c.b16 %v850, %v842
    %v1091 = vpack.c.b16 %v851, %v843
    %v1092 = vpack.c.b16 %v852, %v844
    %v1093 = vpack.c.b16 %v853, %v845
    %v1094 = vpack.c.b16 %v854, %v846
    %v1095 = vpack.c.b16 %v855, %v847
    %v1096 = vpack.c.b16 %v856, %v848
    %v1097 = vpack.c.b16 %v857, %v849
    %v1098 = vpack.c.b16 %v866, %v858
    %v1099 = vpack.c.b16 %v867, %v859
    %v1100 = vpack.c.b16 %v868, %v860
    %v1101 = vpack.c.b16 %v869, %v861
    %v1102 = vpack.c.b16 %v870, %v862
    %v1103 = vpack.c.b16 %v871, %v863
    %v1104 = vpack.c.b16 %v872, %v864
    %v1105 = vpack.c.b16 %v873, %v865
    %v1106 = vpack.c.b16 %v882, %v874
    %v1107 = vpack.c.b16 %v883, %v875
    %v1108 = vpack.c.b16 %v884, %v876
    %v1109 = vpack.c.b16 %v885, %v877
    %v1110 = vpack.c.b16 %v886, %v878
    %v1111 = vpack.c.b16 %v887, %v879
    %v1112 = vpack.c.b16 %v888, %v880
    %v1113 = vpack.c.b16 %v889, %v881
    %v1114 = vpack.c.b16 %v898, %v890
    %v1115 = vpack.c.b16 %v899, %v891
    %v1116 = vpack.c.b16 %v900, %v892
    %v1117 = vpack.c.b16 %v901, %v893
    %v1118 = vpack.c.b16 %v902, %v894
    %v1119 = vpack.c.b16 %v903, %v895
    %v1120 = vpack.c.b16 %v904, %v896
    %v1121 = vpack.c.b16 %v905, %v897
    %v1122 = vpack.c.b16 %v914, %v906
    %v1123 = vpack.c.b16 %v915, %v907
    %v1124 = vpack.c.b16 %v916, %v908
    %v1125 = vpack.c.b16 %v917, %v909
    %v1126 = vpack.c.b16 %v918, %v910
    %v1127 = vpack.c.b16 %v919, %v911
    %v1128 = vpack.c.b16 %v920, %v912
    %v1129 = vpack.c.b16 %v921, %v913
    %v1130 = vpack.c.b16 %v930, %v922
    %v1131 = vpack.c.b16 %v931, %v923
    %v1132 = vpack.c.b16 %v932, %v924
    %v1133 = vpack.c.b16 %v933, %v925
    %v1134 = vpack.c.b16 %v934, %v926
    %v1135 = vpack.c.b16 %v935, %v927
    %v1136 = vpack.c.b16 %v936, %v928
    %v1137 = vpack.c.b16 %v937, %v929
    %v1138 = vpack.c.b16 %v946, %v938
    %v1139 = vpack.c.b16 %v947, %v939
    %v1140 = vpack.c.b16 %v948, %v940
    %v1141 = vpack.c.b16 %v949, %v941
    %v1142 = vpack.c.b16 %v950, %v942
    %v1143 = vpack.c.b16 %v951, %v943
    %v1144 = vpack.c.b16 %v952, %v944
    %v1145 = vpack.c.b16 %v953, %v945
    %v1146 = vpack.c.b16 %v962, %v954
    %v1147 = vpack.c.b16 %v963, %v955
    %v1148 = vpack.c.b16 %v964, %v956
    %v1149 = vpack.c.b16 %v965, %v957
    %v1150 = vpack.c.b16 %v966, %v958
    %v1151 = vpack.c.b16 %v967, %v959
    %v1152 = vpack.c.b16 %v968, %v960
    %v1153 = vpack.c.b16 %v969, %v961
    %v1154 = vpack.c.b16 %v978, %v970
    %v1155 = vpack.c.b16 %v979, %v971
    %v1156 = vpack.c.b16 %v980, %v972
    %v1157 = vpack.c.b16 %v981, %v973
    %v1158 = vpack.c.b16 %v982, %v974
    %v1159 = vpack.c.b16 %v983, %v975
    %v1160 = vpack.c.b16 %v984, %v976
    %v1161 = vpack.c.b16 %v985, %v977
    %v1162 = vpack.c.b16 %v994, %v986
    %v1163 = vpack.c.b16 %v995, %v987
    %v1164 = vpack.c.b16 %v996, %v988
    %v1165 = vpack.c.b16 %v997, %v989
    %v1166 = vpack.c.b16 %v998, %v990
    %v1167 = vpack.c.b16 %v999, %v991
    %v1168 = vpack.c.b16 %v1000, %v992
    %v1169 = vpack.c.b16 %v1001, %v993
    %v1170 = vpack.c.b16 %v1010, %v1002
    %v1171 = vpack.c.b16 %v1011, %v1003
    %v1172 = vpack.c.b16 %v1012, %v1004
    %v1173 = vpack.c.b16 %v1013, %v1005
    %v1174 = vpack.c.b16 %v1014, %v1006
    %v1175 = vpack.c.b16 %v1015, %v1007
    %v1176 = vpack.c.b16 %v1016, %v1008
    %v1177 = vpack.c.b16 %v1017, %v1009
    %v1178 = vpack.c.b16 %v1026, %v1018
    %v1179 = vpack.c.b16 %v1027, %v1019
    %v1180 = vpack.c.b16 %v1028, %v1020
    %v1181 = vpack.c.b16 %v1029, %v1021
    %v1182 = vpack.c.b16 %v1030, %v1022
    %v1183 = vpack.c.b16 %v1031, %v1023
    %v1184 = vpack.c.b16 %v1032, %v1024
    %v1185 = vpack.c.b16 %v1033, %v1025
    %v1186 = vpack.c.b16 %v1042, %v1034
    %v1187 = vpack.c.b16 %v1043, %v1035
    %v1188 = vpack.c.b16 %v1044, %v1036
    %v1189 = vpack.c.b16 %v1045, %v1037
    %v1190 = vpack.c.b16 %v1046, %v1038
    %v1191 = vpack.c.b16 %v1047, %v1039
    %v1192 = vpack.c.b16 %v1048, %v1040
    %v1193 = vpack.c.b16 %v1049, %v1041
    %v1194 = vpack.c.b16 %v1058, %v1050
    %v1195 = vpack.c.b16 %v1059, %v1051
    %v1196 = vpack.c.b16 %v1060, %v1052
    %v1197 = vpack.c.b16 %v1061, %v1053
    %v1198 = vpack.c.b16 %v1062, %v1054
    %v1199 = vpack.c.b16 %v1063, %v1055
    %v1200 = vpack.c.b16 %v1064, %v1056
    %v1201 = vpack.c.b16 %v1065, %v1057
    %v1202 = vpack.c.b16 %v1074, %v1066
    %v1203 = vpack.c.b16 %v1075, %v1067
    %v1204 = vpack.c.b16 %v1076, %v1068
    %v1205 = vpack.c.b16 %v1077, %v1069
    %v1206 = vpack.c.b16 %v1078, %v1070
    %v1207 = vpack.c.b16 %v1079, %v1071
    %v1208 = vpack.c.b16 %v1080, %v1072
    %v1209 = vpack.c.b16 %v1081, %v1073
    %1338 = vmatprep.subr.bf16.mxu0 %v1083
    %1339 = vmatpush1.bf16.msra.mxu0 %v1082
    %1340 = vmatprep.subr.bf16.mxu0 %v1091
    %1341 = vmatpush1.bf16.msra.mxu0 %v1090
    %1342 = vmatprep.subr.bf16.mxu0 %v1099
    %1343 = vmatpush1.bf16.msra.mxu0 %v1098
    %1344 = vmatprep.subr.bf16.mxu0 %v1107
    %1345 = vmatpush1.bf16.msra.mxu0 %v1106
    %1346 = vmatprep.subr.bf16.mxu0 %v1115
    %1347 = vmatpush1.bf16.msra.mxu0 %v1114
    %1348 = vmatprep.subr.bf16.mxu0 %v1123
    %1349 = vmatpush1.bf16.msra.mxu0 %v1122
    %1350 = vmatprep.subr.bf16.mxu0 %v1131
    %1351 = vmatpush1.bf16.msra.mxu0 %v1130
    %1352 = vmatprep.subr.bf16.mxu0 %v1139
    %1353 = vmatpush1.bf16.msra.mxu0 %v1138
    %1354 = vmatprep.subr.bf16.mxu0 %v1147
    %1355 = vmatpush1.bf16.msra.mxu0 %v1146
    %1356 = vmatprep.subr.bf16.mxu0 %v1155
    %1357 = vmatpush1.bf16.msra.mxu0 %v1154
    %1358 = vmatprep.subr.bf16.mxu0 %v1163
    %1359 = vmatpush1.bf16.msra.mxu0 %v1162
    %1360 = vmatprep.subr.bf16.mxu0 %v1171
    %1361 = vmatpush1.bf16.msra.mxu0 %v1170
    %1362 = vmatprep.subr.bf16.mxu0 %v1179
    %1363 = vmatpush1.bf16.msra.mxu0 %v1178
    %1364 = vmatprep.subr.bf16.mxu0 %v1187
    %1365 = vmatpush1.bf16.msra.mxu0 %v1186
    %1366 = vmatprep.subr.bf16.mxu0 %v1195
    %1367 = vmatpush1.bf16.msra.mxu0 %v1194
    %1368 = vmatprep.subr.bf16.mxu0 %v1203
    %1369 = vmatpush1.bf16.msra.mxu0 %v1202
    %1370 = vmatprep.mubr.bf16.mxu0 %v527
    %1371 = vmatmul.mubr.bf16.gmra.mrb[0].mxu0 %v526
    %v1372 = vpop.f32.mrb[0].mxu0
    %v1373 = vadd.f32 %v661, %v1372
    %v1374 = vpop.f32.mrb[0].mxu0
    %v1375 = vadd.f32 %v665, %v1374
    %v1376 = vpop.f32.mrb[0].mxu0
    %v1377 = vpop.f32.mrb[0].mxu0
    %1378 = vdwg.mxu0
    %1379 = vmatprep.subr.bf16.mxu0 %v1085
    %1380 = vmatpush1.bf16.msra.mxu0 %v1084
    %1381 = vmatprep.subr.bf16.mxu0 %v1093
    %1382 = vmatpush1.bf16.msra.mxu0 %v1092
    %1383 = vmatprep.subr.bf16.mxu0 %v1101
    %1384 = vmatpush1.bf16.msra.mxu0 %v1100
    %1385 = vmatprep.subr.bf16.mxu0 %v1109
    %1386 = vmatpush1.bf16.msra.mxu0 %v1108
    %1387 = vmatprep.subr.bf16.mxu0 %v1117
    %1388 = vmatpush1.bf16.msra.mxu0 %v1116
    %1389 = vmatprep.subr.bf16.mxu0 %v1125
    %1390 = vmatpush1.bf16.msra.mxu0 %v1124
    %1391 = vmatprep.subr.bf16.mxu0 %v1133
    %1392 = vmatpush1.bf16.msra.mxu0 %v1132
    %1393 = vmatprep.subr.bf16.mxu0 %v1141
    %1394 = vmatpush1.bf16.msra.mxu0 %v1140
    %1395 = vmatprep.subr.bf16.mxu0 %v1149
    %1396 = vmatpush1.bf16.msra.mxu0 %v1148
    %1397 = vmatprep.subr.bf16.mxu0 %v1157
    %1398 = vmatpush1.bf16.msra.mxu0 %v1156
    %1399 = vmatprep.subr.bf16.mxu0 %v1165
    %1400 = vmatpush1.bf16.msra.mxu0 %v1164
    %1401 = vmatprep.subr.bf16.mxu0 %v1173
    %1402 = vmatpush1.bf16.msra.mxu0 %v1172
    %1403 = vmatprep.subr.bf16.mxu0 %v1181
    %1404 = vmatpush1.bf16.msra.mxu0 %v1180
    %1405 = vmatprep.subr.bf16.mxu0 %v1189
    %1406 = vmatpush1.bf16.msra.mxu0 %v1188
    %1407 = vmatprep.subr.bf16.mxu0 %v1197
    %1408 = vmatpush1.bf16.msra.mxu0 %v1196
    %1409 = vmatprep.subr.bf16.mxu0 %v1205
    %1410 = vmatpush1.bf16.msra.mxu0 %v1204
    %1411 = vmatprep.mubr.bf16.mxu0 %v527
    %1412 = vmatmul.mubr.bf16.gmra.mrb[0].mxu0 %v526
    %v1413 = vpop.f32.mrb[0].mxu0
    %v1414 = vadd.f32 %v669, %v1413
    %v1415 = vpop.f32.mrb[0].mxu0
    %v1416 = vadd.f32 %v673, %v1415
    %v1417 = vpop.f32.mrb[0].mxu0
    %v1418 = vpop.f32.mrb[0].mxu0
    %1419 = vdwg.mxu0
    %1420 = vmatprep.subr.bf16.mxu0 %v1087
    %1421 = vmatpush1.bf16.msra.mxu0 %v1086
    %1422 = vmatprep.subr.bf16.mxu0 %v1095
    %1423 = vmatpush1.bf16.msra.mxu0 %v1094
    %1424 = vmatprep.subr.bf16.mxu0 %v1103
    %1425 = vmatpush1.bf16.msra.mxu0 %v1102
    %1426 = vmatprep.subr.bf16.mxu0 %v1111
    %1427 = vmatpush1.bf16.msra.mxu0 %v1110
    %1428 = vmatprep.subr.bf16.mxu0 %v1119
    %1429 = vmatpush1.bf16.msra.mxu0 %v1118
    %1430 = vmatprep.subr.bf16.mxu0 %v1127
    %1431 = vmatpush1.bf16.msra.mxu0 %v1126
    %1432 = vmatprep.subr.bf16.mxu0 %v1135
    %1433 = vmatpush1.bf16.msra.mxu0 %v1134
    %1434 = vmatprep.subr.bf16.mxu0 %v1143
    %1435 = vmatpush1.bf16.msra.mxu0 %v1142
    %1436 = vmatprep.subr.bf16.mxu0 %v1151
    %1437 = vmatpush1.bf16.msra.mxu0 %v1150
    %1438 = vmatprep.subr.bf16.mxu0 %v1159
    %1439 = vmatpush1.bf16.msra.mxu0 %v1158
    %1440 = vmatprep.subr.bf16.mxu0 %v1167
    %1441 = vmatpush1.bf16.msra.mxu0 %v1166
    %1442 = vmatprep.subr.bf16.mxu0 %v1175
    %1443 = vmatpush1.bf16.msra.mxu0 %v1174
    %1444 = vmatprep.subr.bf16.mxu0 %v1183
    %1445 = vmatpush1.bf16.msra.mxu0 %v1182
    %1446 = vmatprep.subr.bf16.mxu0 %v1191
    %1447 = vmatpush1.bf16.msra.mxu0 %v1190
    %1448 = vmatprep.subr.bf16.mxu0 %v1199
    %1449 = vmatpush1.bf16.msra.mxu0 %v1198
    %1450 = vmatprep.subr.bf16.mxu0 %v1207
    %1451 = vmatpush1.bf16.msra.mxu0 %v1206
    %1452 = vmatprep.mubr.bf16.mxu0 %v527
    %1453 = vmatmul.mubr.bf16.gmra.mrb[0].mxu0 %v526
    %v1454 = vpop.f32.mrb[0].mxu0
    %v1455 = vadd.f32 %v677, %v1454
    %v1456 = vpop.f32.mrb[0].mxu0
    %v1457 = vadd.f32 %v681, %v1456
    %v1458 = vpop.f32.mrb[0].mxu0
    %v1459 = vpop.f32.mrb[0].mxu0
    %1460 = vdwg.mxu0
    %1461 = vmatprep.subr.bf16.mxu0 %v1089
    %1462 = vmatpush1.bf16.msra.mxu0 %v1088
    %1463 = vmatprep.subr.bf16.mxu0 %v1097
    %1464 = vmatpush1.bf16.msra.mxu0 %v1096
    %1465 = vmatprep.subr.bf16.mxu0 %v1105
    %1466 = vmatpush1.bf16.msra.mxu0 %v1104
    %1467 = vmatprep.subr.bf16.mxu0 %v1113
    %1468 = vmatpush1.bf16.msra.mxu0 %v1112
    %1469 = vmatprep.subr.bf16.mxu0 %v1121
    %1470 = vmatpush1.bf16.msra.mxu0 %v1120
    %1471 = vmatprep.subr.bf16.mxu0 %v1129
    %1472 = vmatpush1.bf16.msra.mxu0 %v1128
    %1473 = vmatprep.subr.bf16.mxu0 %v1137
    %1474 = vmatpush1.bf16.msra.mxu0 %v1136
    %1475 = vmatprep.subr.bf16.mxu0 %v1145
    %1476 = vmatpush1.bf16.msra.mxu0 %v1144
    %1477 = vmatprep.subr.bf16.mxu0 %v1153
    %1478 = vmatpush1.bf16.msra.mxu0 %v1152
    %1479 = vmatprep.subr.bf16.mxu0 %v1161
    %1480 = vmatpush1.bf16.msra.mxu0 %v1160
    %1481 = vmatprep.subr.bf16.mxu0 %v1169
    %1482 = vmatpush1.bf16.msra.mxu0 %v1168
    %1483 = vmatprep.subr.bf16.mxu0 %v1177
    %1484 = vmatpush1.bf16.msra.mxu0 %v1176
    %1485 = vmatprep.subr.bf16.mxu0 %v1185
    %1486 = vmatpush1.bf16.msra.mxu0 %v1184
    %1487 = vmatprep.subr.bf16.mxu0 %v1193
    %1488 = vmatpush1.bf16.msra.mxu0 %v1192
    %1489 = vmatprep.subr.bf16.mxu0 %v1201
    %1490 = vmatpush1.bf16.msra.mxu0 %v1200
    %1491 = vmatprep.subr.bf16.mxu0 %v1209
    %1492 = vmatpush1.bf16.msra.mxu0 %v1208
    %1493 = vmatprep.mubr.bf16.mxu0 %v527
    %1494 = vmatmul.mubr.bf16.gmra.mrb[0].mxu0 %v526
    %v1495 = vpop.f32.mrb[0].mxu0
    %v1496 = vadd.f32 %v685, %v1495
    %v1497 = vpop.f32.mrb[0].mxu0
    %v1498 = vadd.f32 %v689, %v1497
    %v1499 = vpop.f32.mrb[0].mxu0
    %v1500 = vpop.f32.mrb[0].mxu0
    %1501 = vdwg.mxu0
    %v1502 = vmax.f32 %v1373, 0.0
    %v1503 = vmax.f32 %v1375, 0.0
    %v1504 = vmax.f32 %v1414, 0.0
    %v1505 = vmax.f32 %v1416, 0.0
    %v1506 = vmax.f32 %v1455, 0.0
    %v1507 = vmax.f32 %v1457, 0.0
    %v1508 = vmax.f32 %v1496, 0.0
    %v1509 = vmax.f32 %v1498, 0.0
    %v1510 = vpack.c.bf16 %v1502, %v1502
    %v1511 = vpack.c.bf16 %v1503, %v1503
    %v1512 = vpack.c.bf16 %v1504, %v1504
    %v1513 = vpack.c.bf16 %v1505, %v1505
    %v1514 = vpack.c.bf16 %v1506, %v1506
    %v1515 = vpack.c.bf16 %v1507, %v1507
    %v1516 = vpack.c.bf16 %v1508, %v1508
    %v1517 = vpack.c.bf16 %v1509, %v1509
    %v1526 = vunpack.c.l.b16 %v1510
    %v1527 = vunpack.c.l.b16 %v1511
    %v1528 = vunpack.c.l.b16 %v1512
    %v1529 = vunpack.c.l.b16 %v1513
    %v1530 = vunpack.c.l.b16 %v1514
    %v1531 = vunpack.c.l.b16 %v1515
    %v1532 = vunpack.c.l.b16 %v1516
    %v1533 = vunpack.c.l.b16 %v1517
    %v1534 = vpack.c.b16 %v1527, %v1526
    %v1535 = vpack.c.b16 %v1529, %v1528
    %v1536 = vpack.c.b16 %v1531, %v1530
    %v1537 = vpack.c.b16 %v1533, %v1532
    %1542 = vst [vmem:[%s9] sm:$0xff] %v1534
    %1543 = vst [vmem:[%s9 + $0x8] sm:$0xff] %v1535
    %1544 = vst [vmem:[%s9 + $0x10] sm:$0xff] %v1536
    %1545 = vst [vmem:[%s9 + $0x18] sm:$0xff] %v1537
    // Predicated region
    $region66: #{generator_forward.5} parent=1 // pred_check
      _
    $region67: #{generator_forward.5} parent=1 // pred_check_branch
      %1547 = sbr.rel (0) target = $region69
    $region68: #{generator_forward.5} parent=1 // pred_region
      _
    $region69: #{generator_forward.5} parent=1 // pred_fallthru
      _
    // Predicated region
    $region70: #{generator_forward.5} parent=1 // pred_check
      _
    $region71: #{generator_forward.5} parent=1 // pred_check_branch
      %1549 = sbr.rel (0) target = $region73
    $region72: #{generator_forward.5} parent=1 // pred_region
      _
    $region73: #{generator_forward.5} parent=1 // pred_fallthru
      _
    %1550 = vsyncpa [#allocation3], 1
    %1551 = vsyncpa [#allocation5], 1
    %1552 = vsyncpa [#allocation8], 1
    %1553 = vsyncpa [#allocation11], 1

// kernel: generator_forward.6
$region0: #{generator_forward.6}
  #allocation0 [shape = 'u32[]', space=smem, size = 0x4, offset = 0x4, fixed_abs, tag = 'smem constant byte address 0x4 - core index']
  #allocation1 [shape = 'u32[144,128]{1,0:T(1,128)}', space=vmem, size = 0x12000, scoped, tag = 'internal scratch']
  %s0 = inlined_call_operand.vmem [shape: bf16[56,256], index: 0, kind: input, shape index: {}]
  %s1 = inlined_call_operand.vmem [shape: bf16[256,256], index: 1, kind: input, shape index: {}]
  %s2 = inlined_call_operand.vmem [shape: f32[1,256], index: 2, kind: input, shape index: {}]
  %s3 = inlined_call_operand.vmem [shape: bf16[56,256], index: 3, kind: output, shape index: {}]
  %s4 = sld [smem:[#allocation0]]
  $region22: #{generator_forward.6} parent=0
    _
  %s6 = ssub.s32 1, %s4
  %s7 = scalar_select 0, %s6, %s4
  // Predicated region
  $region2: #{generator_forward.6} parent=0 // pred_check
    _
  $region3: #{generator_forward.6} parent=0 // pred_check_branch
    %9 = sbr.rel (0) target = $region5
  $region4: #{generator_forward.6} parent=0 // pred_region
    _
  $region5: #{generator_forward.6} parent=0 // pred_fallthru
    _
  // Predicated region
  $region6: #{generator_forward.6} parent=0 // pred_check
    _
  $region7: #{generator_forward.6} parent=0 // pred_check_branch
    %11 = sbr.rel (0) target = $region9
  $region8: #{generator_forward.6} parent=0 // pred_region
    _
  $region9: #{generator_forward.6} parent=0 // pred_fallthru
    _
  // Predicated region
  $region10: #{generator_forward.6} parent=0 // pred_check
    _
  $region11: #{generator_forward.6} parent=0 // pred_check_branch
    %13 = sbr.rel (0) target = $region13
  $region12: #{generator_forward.6} parent=0 // pred_region
    _
  $region13: #{generator_forward.6} parent=0 // pred_fallthru
    _
  %v14 = vld [vmem:[%s0] sm:$0xff]
  %v15 = vld [vmem:[%s0 + $0x8] sm:$0xff]
  %v16 = vld [vmem:[%s0 + $0x10] sm:$0xff]
  %v17 = vld [vmem:[%s0 + $0x18] sm:$0xff]
  %v18 = vld [vmem:[%s0 + $0x20] sm:$0xff]
  %v19 = vld [vmem:[%s0 + $0x28] sm:$0xff]
  %v20 = vld [vmem:[%s0 + $0x30] sm:$0xff]
  %v21 = vld [vmem:[%s1] sm:$0xff]
  %v22 = vld [vmem:[%s1 + $0x8] sm:$0xff]
  %v23 = vld [vmem:[%s1 + $0x10] sm:$0xff]
  %v24 = vld [vmem:[%s1 + $0x18] sm:$0xff]
  %v25 = vld [vmem:[%s1 + $0x20] sm:$0xff]
  %v26 = vld [vmem:[%s1 + $0x28] sm:$0xff]
  %v27 = vld [vmem:[%s1 + $0x30] sm:$0xff]
  %v28 = vld [vmem:[%s1 + $0x38] sm:$0xff]
  %v29 = vld [vmem:[%s1 + $0x40] sm:$0xff]
  %v30 = vld [vmem:[%s1 + $0x48] sm:$0xff]
  %v31 = vld [vmem:[%s1 + $0x50] sm:$0xff]
  %v32 = vld [vmem:[%s1 + $0x58] sm:$0xff]
  %v33 = vld [vmem:[%s1 + $0x60] sm:$0xff]
  %v34 = vld [vmem:[%s1 + $0x68] sm:$0xff]
  %v35 = vld [vmem:[%s1 + $0x70] sm:$0xff]
  %v36 = vld [vmem:[%s1 + $0x78] sm:$0xff]
  %v37 = vld [vmem:[%s1 + $0x80] sm:$0xff]
  %v38 = vld [vmem:[%s1 + $0x88] sm:$0xff]
  %v39 = vld [vmem:[%s1 + $0x90] sm:$0xff]
  %v40 = vld [vmem:[%s1 + $0x98] sm:$0xff]
  %v41 = vld [vmem:[%s1 + $0xa0] sm:$0xff]
  %v42 = vld [vmem:[%s1 + $0xa8] sm:$0xff]
  %v43 = vld [vmem:[%s1 + $0xb0] sm:$0xff]
  %v44 = vld [vmem:[%s1 + $0xb8] sm:$0xff]
  %v45 = vld [vmem:[%s1 + $0xc0] sm:$0xff]
  %v46 = vld [vmem:[%s1 + $0xc8] sm:$0xff]
  %v47 = vld [vmem:[%s1 + $0xd0] sm:$0xff]
  %v48 = vld [vmem:[%s1 + $0xd8] sm:$0xff]
  %v49 = vld [vmem:[%s1 + $0xe0] sm:$0xff]
  %v50 = vld [vmem:[%s1 + $0xe8] sm:$0xff]
  %v51 = vld [vmem:[%s1 + $0xf0] sm:$0xff]
  %v52 = vld [vmem:[%s1 + $0xf8] sm:$0xff]
  %v53 = vld [vmem:[%s2] sm:$0x3]
  %v55 = vlaneseq
  %v56 = vshrl.u32 %v55, 7
  %v57 = vsub.s32 0, %v56
  %v58 = vrot.slane %v53, %v57
  %v59 = vlaneseq
  %v60 = vshrl.u32 %v59, 7
  %v61 = vsub.s32 1, %v60
  %v62 = vrot.slane %v53, %v61
  %v72 = vunpack.c.l.b16 %v14
  %v73 = vunpack.c.h.b16 %v14
  %v74 = vunpack.c.l.b16 %v15
  %v75 = vunpack.c.h.b16 %v15
  %v76 = vunpack.c.l.b16 %v16
  %v77 = vunpack.c.h.b16 %v16
  %v78 = vunpack.c.l.b16 %v17
  %v79 = vunpack.c.h.b16 %v17
  %v80 = vunpack.c.l.b16 %v18
  %v81 = vunpack.c.h.b16 %v18
  %v82 = vunpack.c.l.b16 %v19
  %v83 = vunpack.c.h.b16 %v19
  %v84 = vunpack.c.l.b16 %v20
  %v85 = vunpack.c.h.b16 %v20
  %v86 = vpack.c.b16 %v74, %v72
  %v87 = vpack.c.b16 %v75, %v73
  %v88 = vpack.c.b16 %v78, %v76
  %v89 = vpack.c.b16 %v79, %v77
  %v90 = vpack.c.b16 %v82, %v80
  %v91 = vpack.c.b16 %v83, %v81
  %v92 = vpack.c.b16 %v84, %v84
  %v93 = vpack.c.b16 %v85, %v85
  %v134 = vunpack.c.l.b16 %v21
  %v135 = vunpack.c.h.b16 %v21
  %v136 = vunpack.c.l.b16 %v22
  %v137 = vunpack.c.h.b16 %v22
  %v138 = vunpack.c.l.b16 %v23
  %v139 = vunpack.c.h.b16 %v23
  %v140 = vunpack.c.l.b16 %v24
  %v141 = vunpack.c.h.b16 %v24
  %v142 = vunpack.c.l.b16 %v25
  %v143 = vunpack.c.h.b16 %v25
  %v144 = vunpack.c.l.b16 %v26
  %v145 = vunpack.c.h.b16 %v26
  %v146 = vunpack.c.l.b16 %v27
  %v147 = vunpack.c.h.b16 %v27
  %v148 = vunpack.c.l.b16 %v28
  %v149 = vunpack.c.h.b16 %v28
  %v150 = vunpack.c.l.b16 %v29
  %v151 = vunpack.c.h.b16 %v29
  %v152 = vunpack.c.l.b16 %v30
  %v153 = vunpack.c.h.b16 %v30
  %v154 = vunpack.c.l.b16 %v31
  %v155 = vunpack.c.h.b16 %v31
  %v156 = vunpack.c.l.b16 %v32
  %v157 = vunpack.c.h.b16 %v32
  %v158 = vunpack.c.l.b16 %v33
  %v159 = vunpack.c.h.b16 %v33
  %v160 = vunpack.c.l.b16 %v34
  %v161 = vunpack.c.h.b16 %v34
  %v162 = vunpack.c.l.b16 %v35
  %v163 = vunpack.c.h.b16 %v35
  %v164 = vunpack.c.l.b16 %v36
  %v165 = vunpack.c.h.b16 %v36
  %v166 = vunpack.c.l.b16 %v37
  %v167 = vunpack.c.h.b16 %v37
  %v168 = vunpack.c.l.b16 %v38
  %v169 = vunpack.c.h.b16 %v38
  %v170 = vunpack.c.l.b16 %v39
  %v171 = vunpack.c.h.b16 %v39
  %v172 = vunpack.c.l.b16 %v40
  %v173 = vunpack.c.h.b16 %v40
  %v174 = vunpack.c.l.b16 %v41
  %v175 = vunpack.c.h.b16 %v41
  %v176 = vunpack.c.l.b16 %v42
  %v177 = vunpack.c.h.b16 %v42
  %v178 = vunpack.c.l.b16 %v43
  %v179 = vunpack.c.h.b16 %v43
  %v180 = vunpack.c.l.b16 %v44
  %v181 = vunpack.c.h.b16 %v44
  %v182 = vunpack.c.l.b16 %v45
  %v183 = vunpack.c.h.b16 %v45
  %v184 = vunpack.c.l.b16 %v46
  %v185 = vunpack.c.h.b16 %v46
  %v186 = vunpack.c.l.b16 %v47
  %v187 = vunpack.c.h.b16 %v47
  %v188 = vunpack.c.l.b16 %v48
  %v189 = vunpack.c.h.b16 %v48
  %v190 = vunpack.c.l.b16 %v49
  %v191 = vunpack.c.h.b16 %v49
  %v192 = vunpack.c.l.b16 %v50
  %v193 = vunpack.c.h.b16 %v50
  %v194 = vunpack.c.l.b16 %v51
  %v195 = vunpack.c.h.b16 %v51
  %v196 = vunpack.c.l.b16 %v52
  %v197 = vunpack.c.h.b16 %v52
  %v198 = vpack.c.b16 %v136, %v134
  %v199 = vpack.c.b16 %v137, %v135
  %v200 = vpack.c.b16 %v140, %v138
  %v201 = vpack.c.b16 %v141, %v139
  %v202 = vpack.c.b16 %v144, %v142
  %v203 = vpack.c.b16 %v145, %v143
  %v204 = vpack.c.b16 %v148, %v146
  %v205 = vpack.c.b16 %v149, %v147
  %v206 = vpack.c.b16 %v152, %v150
  %v207 = vpack.c.b16 %v153, %v151
  %v208 = vpack.c.b16 %v156, %v154
  %v209 = vpack.c.b16 %v157, %v155
  %v210 = vpack.c.b16 %v160, %v158
  %v211 = vpack.c.b16 %v161, %v159
  %v212 = vpack.c.b16 %v164, %v162
  %v213 = vpack.c.b16 %v165, %v163
  %v214 = vpack.c.b16 %v168, %v166
  %v215 = vpack.c.b16 %v169, %v167
  %v216 = vpack.c.b16 %v172, %v170
  %v217 = vpack.c.b16 %v173, %v171
  %v218 = vpack.c.b16 %v176, %v174
  %v219 = vpack.c.b16 %v177, %v175
  %v220 = vpack.c.b16 %v180, %v178
  %v221 = vpack.c.b16 %v181, %v179
  %v222 = vpack.c.b16 %v184, %v182
  %v223 = vpack.c.b16 %v185, %v183
  %v224 = vpack.c.b16 %v188, %v186
  %v225 = vpack.c.b16 %v189, %v187
  %v226 = vpack.c.b16 %v192, %v190
  %v227 = vpack.c.b16 %v193, %v191
  %v228 = vpack.c.b16 %v196, %v194
  %v229 = vpack.c.b16 %v197, %v195
  %262 = vmatprep.subr.bf16.mxu0 %v199
  %263 = vmatpush1.bf16.msra.mxu0 %v198
  %264 = vmatprep.subr.bf16.mxu0 %v201
  %265 = vmatpush1.bf16.msra.mxu0 %v200
  %266 = vmatprep.subr.bf16.mxu0 %v203
  %267 = vmatpush1.bf16.msra.mxu0 %v202
  %268 = vmatprep.subr.bf16.mxu0 %v205
  %269 = vmatpush1.bf16.msra.mxu0 %v204
  %270 = vmatprep.subr.bf16.mxu0 %v207
  %271 = vmatpush1.bf16.msra.mxu0 %v206
  %272 = vmatprep.subr.bf16.mxu0 %v209
  %273 = vmatpush1.bf16.msra.mxu0 %v208
  %274 = vmatprep.subr.bf16.mxu0 %v211
  %275 = vmatpush1.bf16.msra.mxu0 %v210
  %276 = vmatprep.subr.bf16.mxu0 %v213
  %277 = vmatpush1.bf16.msra.mxu0 %v212
  %278 = vmatprep.subr.bf16.mxu0 %v215
  %279 = vmatpush1.bf16.msra.mxu0 %v214
  %280 = vmatprep.subr.bf16.mxu0 %v217
  %281 = vmatpush1.bf16.msra.mxu0 %v216
  %282 = vmatprep.subr.bf16.mxu0 %v219
  %283 = vmatpush1.bf16.msra.mxu0 %v218
  %284 = vmatprep.subr.bf16.mxu0 %v221
  %285 = vmatpush1.bf16.msra.mxu0 %v220
  %286 = vmatprep.subr.bf16.mxu0 %v223
  %287 = vmatpush1.bf16.msra.mxu0 %v222
  %288 = vmatprep.subr.bf16.mxu0 %v225
  %289 = vmatpush1.bf16.msra.mxu0 %v224
  %290 = vmatprep.subr.bf16.mxu0 %v227
  %291 = vmatpush1.bf16.msra.mxu0 %v226
  %292 = vmatprep.subr.bf16.mxu0 %v229
  %293 = vmatpush1.bf16.msra.mxu0 %v228
  %294 = vmatprep.mubr.bf16.mxu0 %v87
  %295 = vmatmul.mubr.bf16.gmra.mrb[0].mxu0 %v86
  %v296 = vpop.f32.mrb[0].mxu0
  %v297 = vadd.f32 %v58, %v296
  %v298 = vpop.f32.mrb[0].mxu0
  %v299 = vadd.f32 %v62, %v298
  %v300 = vpop.f32.mrb[0].mxu0
  %v301 = vadd.f32 %v58, %v300
  %v302 = vpop.f32.mrb[0].mxu0
  %v303 = vadd.f32 %v62, %v302
  %304 = vmatprep.mubr.bf16.mxu0 %v89
  %305 = vmatmul.mubr.bf16.gmra.mrb[0].mxu0 %v88
  %v306 = vpop.f32.mrb[0].mxu0
  %v307 = vadd.f32 %v58, %v306
  %v308 = vpop.f32.mrb[0].mxu0
  %v309 = vadd.f32 %v62, %v308
  %v310 = vpop.f32.mrb[0].mxu0
  %v311 = vadd.f32 %v58, %v310
  %v312 = vpop.f32.mrb[0].mxu0
  %v313 = vadd.f32 %v62, %v312
  %314 = vmatprep.mubr.bf16.mxu0 %v91
  %315 = vmatmul.mubr.bf16.gmra.mrb[0].mxu0 %v90
  %v316 = vpop.f32.mrb[0].mxu0
  %v317 = vadd.f32 %v58, %v316
  %v318 = vpop.f32.mrb[0].mxu0
  %v319 = vadd.f32 %v62, %v318
  %v320 = vpop.f32.mrb[0].mxu0
  %v321 = vadd.f32 %v58, %v320
  %v322 = vpop.f32.mrb[0].mxu0
  %v323 = vadd.f32 %v62, %v322
  %324 = vmatprep.mubr.bf16.mxu0 %v93
  %325 = vmatmul.mubr.bf16.gmra.mrb[0].mxu0 %v92
  %v326 = vpop.f32.mrb[0].mxu0
  %v327 = vadd.f32 %v58, %v326
  %v328 = vpop.f32.mrb[0].mxu0
  %v329 = vadd.f32 %v62, %v328
  %v330 = vpop.f32.mrb[0].mxu0
  %v331 = vpop.f32.mrb[0].mxu0
  %332 = vdwg.mxu0
  %v333 = vmax.f32 %v297, 0.0
  %v334 = vmax.f32 %v299, 0.0
  %v335 = vmax.f32 %v301, 0.0
  %v336 = vmax.f32 %v303, 0.0
  %v337 = vmax.f32 %v307, 0.0
  %v338 = vmax.f32 %v309, 0.0
  %v339 = vmax.f32 %v311, 0.0
  %v340 = vmax.f32 %v313, 0.0
  %v341 = vmax.f32 %v317, 0.0
  %v342 = vmax.f32 %v319, 0.0
  %v343 = vmax.f32 %v321, 0.0
  %v344 = vmax.f32 %v323, 0.0
  %v345 = vmax.f32 %v327, 0.0
  %v346 = vmax.f32 %v329, 0.0
  %v347 = vpack.c.bf16 %v335, %v333
  %v348 = vpack.c.bf16 %v336, %v334
  %v349 = vpack.c.bf16 %v339, %v337
  %v350 = vpack.c.bf16 %v340, %v338
  %v351 = vpack.c.bf16 %v343, %v341
  %v352 = vpack.c.bf16 %v344, %v342
  %v353 = vpack.c.bf16 %v345, %v345
  %v354 = vpack.c.bf16 %v346, %v346
  %v363 = vunpack.c.l.b16 %v347
  %v364 = vunpack.c.l.b16 %v348
  %v365 = vunpack.c.h.b16 %v347
  %v366 = vunpack.c.h.b16 %v348
  %v367 = vunpack.c.l.b16 %v349
  %v368 = vunpack.c.l.b16 %v350
  %v369 = vunpack.c.h.b16 %v349
  %v370 = vunpack.c.h.b16 %v350
  %v371 = vunpack.c.l.b16 %v351
  %v372 = vunpack.c.l.b16 %v352
  %v373 = vunpack.c.h.b16 %v351
  %v374 = vunpack.c.h.b16 %v352
  %v375 = vunpack.c.l.b16 %v353
  %v376 = vunpack.c.l.b16 %v354
  %v377 = vpack.c.b16 %v364, %v363
  %v378 = vpack.c.b16 %v366, %v365
  %v379 = vpack.c.b16 %v368, %v367
  %v380 = vpack.c.b16 %v370, %v369
  %v381 = vpack.c.b16 %v372, %v371
  %v382 = vpack.c.b16 %v374, %v373
  %v383 = vpack.c.b16 %v376, %v375
  %391 = vst [vmem:[%s3] sm:$0xff] %v377
  %392 = vst [vmem:[%s3 + $0x8] sm:$0xff] %v378
  %393 = vst [vmem:[%s3 + $0x10] sm:$0xff] %v379
  %394 = vst [vmem:[%s3 + $0x18] sm:$0xff] %v380
  %395 = vst [vmem:[%s3 + $0x20] sm:$0xff] %v381
  %396 = vst [vmem:[%s3 + $0x28] sm:$0xff] %v382
  %397 = vst [vmem:[%s3 + $0x30] sm:$0xff] %v383
  // Predicated region
  $region14: #{generator_forward.6} parent=0 // pred_check
    _
  $region15: #{generator_forward.6} parent=0 // pred_check_branch
    %399 = sbr.rel (0) target = $region17
  $region16: #{generator_forward.6} parent=0 // pred_region
    _
  $region17: #{generator_forward.6} parent=0 // pred_fallthru
    _
  // Predicated region
  $region18: #{generator_forward.6} parent=0 // pred_check
    _
  $region19: #{generator_forward.6} parent=0 // pred_check_branch
    %401 = sbr.rel (0) target = $region21
  $region20: #{generator_forward.6} parent=0 // pred_region
    _
  $region21: #{generator_forward.6} parent=0 // pred_fallthru
    _

// kernel: generator_forward.7
$region0: #{generator_forward.7}
  #allocation0 [shape = 'u32[]', space=smem, size = 0x4, offset = 0x4, fixed_abs, tag = 'smem constant byte address 0x4 - core index']
  #allocation1 [shape = 'u32[144,128]{1,0:T(1,128)}', space=vmem, size = 0x12000, scoped, tag = 'internal scratch']
  %s0 = inlined_call_operand.vmem [shape: bf16[168,256], index: 0, kind: input, shape index: {}]
  %s1 = inlined_call_operand.vmem [shape: bf16[256,128], index: 1, kind: input, shape index: {}]
  %s2 = inlined_call_operand.vmem [shape: f32[1,128], index: 2, kind: input, shape index: {}]
  %s3 = inlined_call_operand.vmem [shape: bf16[168,128], index: 3, kind: output, shape index: {}]
  %s4 = sld [smem:[#allocation0]]
  $region22: #{generator_forward.7} parent=0
    _
  %s6 = ssub.s32 1, %s4
  %s7 = scalar_select 0, %s6, %s4
  // Predicated region
  $region2: #{generator_forward.7} parent=0 // pred_check
    _
  $region3: #{generator_forward.7} parent=0 // pred_check_branch
    %9 = sbr.rel (0) target = $region5
  $region4: #{generator_forward.7} parent=0 // pred_region
    _
  $region5: #{generator_forward.7} parent=0 // pred_fallthru
    _
  // Predicated region
  $region6: #{generator_forward.7} parent=0 // pred_check
    _
  $region7: #{generator_forward.7} parent=0 // pred_check_branch
    %11 = sbr.rel (0) target = $region9
  $region8: #{generator_forward.7} parent=0 // pred_region
    _
  $region9: #{generator_forward.7} parent=0 // pred_fallthru
    _
  // Predicated region
  $region10: #{generator_forward.7} parent=0 // pred_check
    _
  $region11: #{generator_forward.7} parent=0 // pred_check_branch
    %13 = sbr.rel (0) target = $region13
  $region12: #{generator_forward.7} parent=0 // pred_region
    _
  $region13: #{generator_forward.7} parent=0 // pred_fallthru
    _
  %v15 = vld [vmem:[%s0] sm:$0xff]
  %v16 = vld [vmem:[%s0 + $0x8] sm:$0xff]
  %v17 = vld [vmem:[%s0 + $0x10] sm:$0xff]
  %v18 = vld [vmem:[%s0 + $0x18] sm:$0xff]
  %v19 = vld [vmem:[%s0 + $0x20] sm:$0xff]
  %v20 = vld [vmem:[%s0 + $0x28] sm:$0xff]
  %v21 = vld [vmem:[%s0 + $0x30] sm:$0xff]
  %v22 = vld [vmem:[%s0 + $0x38] sm:$0xff]
  %v23 = vld [vmem:[%s0 + $0x40] sm:$0xff]
  %v24 = vld [vmem:[%s0 + $0x48] sm:$0xff]
  %v25 = vld [vmem:[%s0 + $0x50] sm:$0xff]
  %v26 = vld [vmem:[%s0 + $0x58] sm:$0xff]
  %v27 = vld [vmem:[%s0 + $0x60] sm:$0xff]
  %v28 = vld [vmem:[%s0 + $0x68] sm:$0xff]
  %v29 = vld [vmem:[%s0 + $0x70] sm:$0xff]
  %v30 = vld [vmem:[%s0 + $0x78] sm:$0xff]
  %v31 = vld [vmem:[%s0 + $0x80] sm:$0xff]
  %v32 = vld [vmem:[%s0 + $0x88] sm:$0xff]
  %v33 = vld [vmem:[%s0 + $0x90] sm:$0xff]
  %v34 = vld [vmem:[%s0 + $0x98] sm:$0xff]
  %v35 = vld [vmem:[%s0 + $0xa0] sm:$0xff]
  %v36 = vld [vmem:[%s1] sm:$0xf]
  %v37 = vld [vmem:[%s1 + $0x4] sm:$0xf]
  %v38 = vld [vmem:[%s1 + $0x8] sm:$0xf]
  %v39 = vld [vmem:[%s1 + $0xc] sm:$0xf]
  %v40 = vld [vmem:[%s1 + $0x10] sm:$0xf]
  %v41 = vld [vmem:[%s1 + $0x14] sm:$0xf]
  %v42 = vld [vmem:[%s1 + $0x18] sm:$0xf]
  %v43 = vld [vmem:[%s1 + $0x1c] sm:$0xf]
  %v44 = vld [vmem:[%s1 + $0x20] sm:$0xf]
  %v45 = vld [vmem:[%s1 + $0x24] sm:$0xf]
  %v46 = vld [vmem:[%s1 + $0x28] sm:$0xf]
  %v47 = vld [vmem:[%s1 + $0x2c] sm:$0xf]
  %v48 = vld [vmem:[%s1 + $0x30] sm:$0xf]
  %v49 = vld [vmem:[%s1 + $0x34] sm:$0xf]
  %v50 = vld [vmem:[%s1 + $0x38] sm:$0xf]
  %v51 = vld [vmem:[%s1 + $0x3c] sm:$0xf]
  %v52 = vld [vmem:[%s1 + $0x40] sm:$0xf]
  %v53 = vld [vmem:[%s1 + $0x44] sm:$0xf]
  %v54 = vld [vmem:[%s1 + $0x48] sm:$0xf]
  %v55 = vld [vmem:[%s1 + $0x4c] sm:$0xf]
  %v56 = vld [vmem:[%s1 + $0x50] sm:$0xf]
  %v57 = vld [vmem:[%s1 + $0x54] sm:$0xf]
  %v58 = vld [vmem:[%s1 + $0x58] sm:$0xf]
  %v59 = vld [vmem:[%s1 + $0x5c] sm:$0xf]
  %v60 = vld [vmem:[%s1 + $0x60] sm:$0xf]
  %v61 = vld [vmem:[%s1 + $0x64] sm:$0xf]
  %v62 = vld [vmem:[%s1 + $0x68] sm:$0xf]
  %v63 = vld [vmem:[%s1 + $0x6c] sm:$0xf]
  %v64 = vld [vmem:[%s1 + $0x70] sm:$0xf]
  %v65 = vld [vmem:[%s1 + $0x74] sm:$0xf]
  %v66 = vld [vmem:[%s1 + $0x78] sm:$0xf]
  %v67 = vld [vmem:[%s1 + $0x7c] sm:$0xf]
  %v68 = vld [vmem:[%s2] sm:$0x1]
  %v70 = vlaneseq
  %v71 = vshrl.u32 %v70, 7
  %v72 = vsub.s32 0, %v71
  %v73 = vrot.slane %v68, %v72
  %v96 = vunpack.c.l.b16 %v15
  %v97 = vunpack.c.h.b16 %v15
  %v98 = vunpack.c.l.b16 %v16
  %v99 = vunpack.c.h.b16 %v16
  %v100 = vunpack.c.l.b16 %v17
  %v101 = vunpack.c.h.b16 %v17
  %v102 = vunpack.c.l.b16 %v18
  %v103 = vunpack.c.h.b16 %v18
  %v104 = vunpack.c.l.b16 %v19
  %v105 = vunpack.c.h.b16 %v19
  %v106 = vunpack.c.l.b16 %v20
  %v107 = vunpack.c.h.b16 %v20
  %v108 = vunpack.c.l.b16 %v21
  %v109 = vunpack.c.h.b16 %v21
  %v110 = vunpack.c.l.b16 %v22
  %v111 = vunpack.c.h.b16 %v22
  %v112 = vunpack.c.l.b16 %v23
  %v113 = vunpack.c.h.b16 %v23
  %v114 = vunpack.c.l.b16 %v24
  %v115 = vunpack.c.h.b16 %v24
  %v116 = vunpack.c.l.b16 %v25
  %v117 = vunpack.c.h.b16 %v25
  %v118 = vunpack.c.l.b16 %v26
  %v119 = vunpack.c.h.b16 %v26
  %v120 = vunpack.c.l.b16 %v27
  %v121 = vunpack.c.h.b16 %v27
  %v122 = vunpack.c.l.b16 %v28
  %v123 = vunpack.c.h.b16 %v28
  %v124 = vunpack.c.l.b16 %v29
  %v125 = vunpack.c.h.b16 %v29
  %v126 = vunpack.c.l.b16 %v30
  %v127 = vunpack.c.h.b16 %v30
  %v128 = vunpack.c.l.b16 %v31
  %v129 = vunpack.c.h.b16 %v31
  %v130 = vunpack.c.l.b16 %v32
  %v131 = vunpack.c.h.b16 %v32
  %v132 = vunpack.c.l.b16 %v33
  %v133 = vunpack.c.h.b16 %v33
  %v134 = vunpack.c.l.b16 %v34
  %v135 = vunpack.c.h.b16 %v34
  %v136 = vunpack.c.l.b16 %v35
  %v137 = vunpack.c.h.b16 %v35
  %v138 = vpack.c.b16 %v98, %v96
  %v139 = vpack.c.b16 %v99, %v97
  %v140 = vpack.c.b16 %v102, %v100
  %v141 = vpack.c.b16 %v103, %v101
  %v142 = vpack.c.b16 %v106, %v104
  %v143 = vpack.c.b16 %v107, %v105
  %v144 = vpack.c.b16 %v110, %v108
  %v145 = vpack.c.b16 %v111, %v109
  %v146 = vpack.c.b16 %v114, %v112
  %v147 = vpack.c.b16 %v115, %v113
  %v148 = vpack.c.b16 %v118, %v116
  %v149 = vpack.c.b16 %v119, %v117
  %v150 = vpack.c.b16 %v122, %v120
  %v151 = vpack.c.b16 %v123, %v121
  %v152 = vpack.c.b16 %v126, %v124
  %v153 = vpack.c.b16 %v127, %v125
  %v154 = vpack.c.b16 %v130, %v128
  %v155 = vpack.c.b16 %v131, %v129
  %v156 = vpack.c.b16 %v134, %v132
  %v157 = vpack.c.b16 %v135, %v133
  %v158 = vpack.c.b16 %v136, %v136
  %v159 = vpack.c.b16 %v137, %v137
  %v214 = vunpack.c.l.b16 %v36
  %v215 = vunpack.c.l.b16 %v37
  %v216 = vunpack.c.l.b16 %v38
  %v217 = vunpack.c.l.b16 %v39
  %v218 = vunpack.c.l.b16 %v40
  %v219 = vunpack.c.l.b16 %v41
  %v220 = vunpack.c.l.b16 %v42
  %v221 = vunpack.c.l.b16 %v43
  %v222 = vunpack.c.l.b16 %v44
  %v223 = vunpack.c.l.b16 %v45
  %v224 = vunpack.c.l.b16 %v46
  %v225 = vunpack.c.l.b16 %v47
  %v226 = vunpack.c.l.b16 %v48
  %v227 = vunpack.c.l.b16 %v49
  %v228 = vunpack.c.l.b16 %v50
  %v229 = vunpack.c.l.b16 %v51
  %v230 = vunpack.c.l.b16 %v52
  %v231 = vunpack.c.l.b16 %v53
  %v232 = vunpack.c.l.b16 %v54
  %v233 = vunpack.c.l.b16 %v55
  %v234 = vunpack.c.l.b16 %v56
  %v235 = vunpack.c.l.b16 %v57
  %v236 = vunpack.c.l.b16 %v58
  %v237 = vunpack.c.l.b16 %v59
  %v238 = vunpack.c.l.b16 %v60
  %v239 = vunpack.c.l.b16 %v61
  %v240 = vunpack.c.l.b16 %v62
  %v241 = vunpack.c.l.b16 %v63
  %v242 = vunpack.c.l.b16 %v64
  %v243 = vunpack.c.l.b16 %v65
  %v244 = vunpack.c.l.b16 %v66
  %v245 = vunpack.c.l.b16 %v67
  %v246 = vpack.c.b16 %v215, %v214
  %v247 = vpack.c.b16 %v217, %v216
  %v248 = vpack.c.b16 %v219, %v218
  %v249 = vpack.c.b16 %v221, %v220
  %v250 = vpack.c.b16 %v223, %v222
  %v251 = vpack.c.b16 %v225, %v224
  %v252 = vpack.c.b16 %v227, %v226
  %v253 = vpack.c.b16 %v229, %v228
  %v254 = vpack.c.b16 %v231, %v230
  %v255 = vpack.c.b16 %v233, %v232
  %v256 = vpack.c.b16 %v235, %v234
  %v257 = vpack.c.b16 %v237, %v236
  %v258 = vpack.c.b16 %v239, %v238
  %v259 = vpack.c.b16 %v241, %v240
  %v260 = vpack.c.b16 %v243, %v242
  %v261 = vpack.c.b16 %v245, %v244
  %278 = vmatprep.subr.bf16.mxu0 0
  %279 = vmatpush1.bf16.msra.mxu0 %v246
  %280 = vmatprep.subr.bf16.mxu0 0
  %281 = vmatpush1.bf16.msra.mxu0 %v247
  %282 = vmatprep.subr.bf16.mxu0 0
  %283 = vmatpush1.bf16.msra.mxu0 %v248
  %284 = vmatprep.subr.bf16.mxu0 0
  %285 = vmatpush1.bf16.msra.mxu0 %v249
  %286 = vmatprep.subr.bf16.mxu0 0
  %287 = vmatpush1.bf16.msra.mxu0 %v250
  %288 = vmatprep.subr.bf16.mxu0 0
  %289 = vmatpush1.bf16.msra.mxu0 %v251
  %290 = vmatprep.subr.bf16.mxu0 0
  %291 = vmatpush1.bf16.msra.mxu0 %v252
  %292 = vmatprep.subr.bf16.mxu0 0
  %293 = vmatpush1.bf16.msra.mxu0 %v253
  %294 = vmatprep.subr.bf16.mxu0 0
  %295 = vmatpush1.bf16.msra.mxu0 %v254
  %296 = vmatprep.subr.bf16.mxu0 0
  %297 = vmatpush1.bf16.msra.mxu0 %v255
  %298 = vmatprep.subr.bf16.mxu0 0
  %299 = vmatpush1.bf16.msra.mxu0 %v256
  %300 = vmatprep.subr.bf16.mxu0 0
  %301 = vmatpush1.bf16.msra.mxu0 %v257
  %302 = vmatprep.subr.bf16.mxu0 0
  %303 = vmatpush1.bf16.msra.mxu0 %v258
  %304 = vmatprep.subr.bf16.mxu0 0
  %305 = vmatpush1.bf16.msra.mxu0 %v259
  %306 = vmatprep.subr.bf16.mxu0 0
  %307 = vmatpush1.bf16.msra.mxu0 %v260
  %308 = vmatprep.subr.bf16.mxu0 0
  %309 = vmatpush1.bf16.msra.mxu0 %v261
  %310 = vmatprep.mubr.bf16.mxu0 %v139
  %311 = vmatmul.mubr.bf16.gmra.mrb[0].mxu0 %v138
  %v312 = vpop.f32.mrb[0].mxu0
  %v313 = vadd.f32 %v73, %v312
  %v314 = vpop.f32.mrb[0].mxu0
  %v315 = vpop.f32.mrb[0].mxu0
  %v316 = vadd.f32 %v73, %v315
  %v317 = vpop.f32.mrb[0].mxu0
  %318 = vmatprep.mubr.bf16.mxu0 %v141
  %319 = vmatmul.mubr.bf16.gmra.mrb[0].mxu0 %v140
  %v320 = vpop.f32.mrb[0].mxu0
  %v321 = vadd.f32 %v73, %v320
  %v322 = vpop.f32.mrb[0].mxu0
  %v323 = vpop.f32.mrb[0].mxu0
  %v324 = vadd.f32 %v73, %v323
  %v325 = vpop.f32.mrb[0].mxu0
  %326 = vmatprep.mubr.bf16.mxu0 %v143
  %327 = vmatmul.mubr.bf16.gmra.mrb[0].mxu0 %v142
  %v328 = vpop.f32.mrb[0].mxu0
  %v329 = vadd.f32 %v73, %v328
  %v330 = vpop.f32.mrb[0].mxu0
  %v331 = vpop.f32.mrb[0].mxu0
  %v332 = vadd.f32 %v73, %v331
  %v333 = vpop.f32.mrb[0].mxu0
  %334 = vmatprep.mubr.bf16.mxu0 %v145
  %335 = vmatmul.mubr.bf16.gmra.mrb[0].mxu0 %v144
  %v336 = vpop.f32.mrb[0].mxu0
  %v337 = vadd.f32 %v73, %v336
  %v338 = vpop.f32.mrb[0].mxu0
  %v339 = vpop.f32.mrb[0].mxu0
  %v340 = vadd.f32 %v73, %v339
  %v341 = vpop.f32.mrb[0].mxu0
  %342 = vmatprep.mubr.bf16.mxu0 %v147
  %343 = vmatmul.mubr.bf16.gmra.mrb[0].mxu0 %v146
  %v344 = vpop.f32.mrb[0].mxu0
  %v345 = vadd.f32 %v73, %v344
  %v346 = vpop.f32.mrb[0].mxu0
  %v347 = vpop.f32.mrb[0].mxu0
  %v348 = vadd.f32 %v73, %v347
  %v349 = vpop.f32.mrb[0].mxu0
  %350 = vmatprep.mubr.bf16.mxu0 %v149
  %351 = vmatmul.mubr.bf16.gmra.mrb[0].mxu0 %v148
  %v352 = vpop.f32.mrb[0].mxu0
  %v353 = vadd.f32 %v73, %v352
  %v354 = vpop.f32.mrb[0].mxu0
  %v355 = vpop.f32.mrb[0].mxu0
  %v356 = vadd.f32 %v73, %v355
  %v357 = vpop.f32.mrb[0].mxu0
  %358 = vmatprep.mubr.bf16.mxu0 %v151
  %359 = vmatmul.mubr.bf16.gmra.mrb[0].mxu0 %v150
  %v360 = vpop.f32.mrb[0].mxu0
  %v361 = vadd.f32 %v73, %v360
  %v362 = vpop.f32.mrb[0].mxu0
  %v363 = vpop.f32.mrb[0].mxu0
  %v364 = vadd.f32 %v73, %v363
  %v365 = vpop.f32.mrb[0].mxu0
  %366 = vmatprep.mubr.bf16.mxu0 %v153
  %367 = vmatmul.mubr.bf16.gmra.mrb[0].mxu0 %v152
  %v368 = vpop.f32.mrb[0].mxu0
  %v369 = vadd.f32 %v73, %v368
  %v370 = vpop.f32.mrb[0].mxu0
  %v371 = vpop.f32.mrb[0].mxu0
  %v372 = vadd.f32 %v73, %v371
  %v373 = vpop.f32.mrb[0].mxu0
  %374 = vmatprep.mubr.bf16.mxu0 %v155
  %375 = vmatmul.mubr.bf16.gmra.mrb[0].mxu0 %v154
  %v376 = vpop.f32.mrb[0].mxu0
  %v377 = vadd.f32 %v73, %v376
  %v378 = vpop.f32.mrb[0].mxu0
  %v379 = vpop.f32.mrb[0].mxu0
  %v380 = vadd.f32 %v73, %v379
  %v381 = vpop.f32.mrb[0].mxu0
  %382 = vmatprep.mubr.bf16.mxu0 %v157
  %383 = vmatmul.mubr.bf16.gmra.mrb[0].mxu0 %v156
  %v384 = vpop.f32.mrb[0].mxu0
  %v385 = vadd.f32 %v73, %v384
  %v386 = vpop.f32.mrb[0].mxu0
  %v387 = vpop.f32.mrb[0].mxu0
  %v388 = vadd.f32 %v73, %v387
  %v389 = vpop.f32.mrb[0].mxu0
  %390 = vmatprep.mubr.bf16.mxu0 %v159
  %391 = vmatmul.mubr.bf16.gmra.mrb[0].mxu0 %v158
  %v392 = vpop.f32.mrb[0].mxu0
  %v393 = vadd.f32 %v73, %v392
  %v394 = vpop.f32.mrb[0].mxu0
  %v395 = vpop.f32.mrb[0].mxu0
  %v396 = vpop.f32.mrb[0].mxu0
  %397 = vdwg.mxu0
  %v398 = vmax.f32 %v313, 0.0
  %v399 = vmax.f32 %v316, 0.0
  %v400 = vmax.f32 %v321, 0.0
  %v401 = vmax.f32 %v324, 0.0
  %v402 = vmax.f32 %v329, 0.0
  %v403 = vmax.f32 %v332, 0.0
  %v404 = vmax.f32 %v337, 0.0
  %v405 = vmax.f32 %v340, 0.0
  %v406 = vmax.f32 %v345, 0.0
  %v407 = vmax.f32 %v348, 0.0
  %v408 = vmax.f32 %v353, 0.0
  %v409 = vmax.f32 %v356, 0.0
  %v410 = vmax.f32 %v361, 0.0
  %v411 = vmax.f32 %v364, 0.0
  %v412 = vmax.f32 %v369, 0.0
  %v413 = vmax.f32 %v372, 0.0
  %v414 = vmax.f32 %v377, 0.0
  %v415 = vmax.f32 %v380, 0.0
  %v416 = vmax.f32 %v385, 0.0
  %v417 = vmax.f32 %v388, 0.0
  %v418 = vmax.f32 %v393, 0.0
  %v419 = vpack.c.bf16 %v399, %v398
  %v420 = vpack.c.bf16 %v401, %v400
  %v421 = vpack.c.bf16 %v403, %v402
  %v422 = vpack.c.bf16 %v405, %v404
  %v423 = vpack.c.bf16 %v407, %v406
  %v424 = vpack.c.bf16 %v409, %v408
  %v425 = vpack.c.bf16 %v411, %v410
  %v426 = vpack.c.bf16 %v413, %v412
  %v427 = vpack.c.bf16 %v415, %v414
  %v428 = vpack.c.bf16 %v417, %v416
  %v429 = vpack.c.bf16 %v418, %v418
  %v441 = vunpack.c.l.b16 %v419
  %v442 = vunpack.c.h.b16 %v419
  %v443 = vunpack.c.l.b16 %v420
  %v444 = vunpack.c.h.b16 %v420
  %v445 = vunpack.c.l.b16 %v421
  %v446 = vunpack.c.h.b16 %v421
  %v447 = vunpack.c.l.b16 %v422
  %v448 = vunpack.c.h.b16 %v422
  %v449 = vunpack.c.l.b16 %v423
  %v450 = vunpack.c.h.b16 %v423
  %v451 = vunpack.c.l.b16 %v424
  %v452 = vunpack.c.h.b16 %v424
  %v453 = vunpack.c.l.b16 %v425
  %v454 = vunpack.c.h.b16 %v425
  %v455 = vunpack.c.l.b16 %v426
  %v456 = vunpack.c.h.b16 %v426
  %v457 = vunpack.c.l.b16 %v427
  %v458 = vunpack.c.h.b16 %v427
  %v459 = vunpack.c.l.b16 %v428
  %v460 = vunpack.c.h.b16 %v428
  %v461 = vunpack.c.l.b16 %v429
  %v462 = vpack.c.b16 %v441, %v441
  %v463 = vpack.c.b16 %v442, %v442
  %v464 = vpack.c.b16 %v443, %v443
  %v465 = vpack.c.b16 %v444, %v444
  %v466 = vpack.c.b16 %v445, %v445
  %v467 = vpack.c.b16 %v446, %v446
  %v468 = vpack.c.b16 %v447, %v447
  %v469 = vpack.c.b16 %v448, %v448
  %v470 = vpack.c.b16 %v449, %v449
  %v471 = vpack.c.b16 %v450, %v450
  %v472 = vpack.c.b16 %v451, %v451
  %v473 = vpack.c.b16 %v452, %v452
  %v474 = vpack.c.b16 %v453, %v453
  %v475 = vpack.c.b16 %v454, %v454
  %v476 = vpack.c.b16 %v455, %v455
  %v477 = vpack.c.b16 %v456, %v456
  %v478 = vpack.c.b16 %v457, %v457
  %v479 = vpack.c.b16 %v458, %v458
  %v480 = vpack.c.b16 %v459, %v459
  %v481 = vpack.c.b16 %v460, %v460
  %v482 = vpack.c.b16 %v461, %v461
  %504 = vst [vmem:[%s3] sm:$0xf] %v462
  %505 = vst [vmem:[%s3 + $0x4] sm:$0xf] %v463
  %506 = vst [vmem:[%s3 + $0x8] sm:$0xf] %v464
  %507 = vst [vmem:[%s3 + $0xc] sm:$0xf] %v465
  %508 = vst [vmem:[%s3 + $0x10] sm:$0xf] %v466
  %509 = vst [vmem:[%s3 + $0x14] sm:$0xf] %v467
  %510 = vst [vmem:[%s3 + $0x18] sm:$0xf] %v468
  %511 = vst [vmem:[%s3 + $0x1c] sm:$0xf] %v469
  %512 = vst [vmem:[%s3 + $0x20] sm:$0xf] %v470
  %513 = vst [vmem:[%s3 + $0x24] sm:$0xf] %v471
  %514 = vst [vmem:[%s3 + $0x28] sm:$0xf] %v472
  %515 = vst [vmem:[%s3 + $0x2c] sm:$0xf] %v473
  %516 = vst [vmem:[%s3 + $0x30] sm:$0xf] %v474
  %517 = vst [vmem:[%s3 + $0x34] sm:$0xf] %v475
  %518 = vst [vmem:[%s3 + $0x38] sm:$0xf] %v476
  %519 = vst [vmem:[%s3 + $0x3c] sm:$0xf] %v477
  %520 = vst [vmem:[%s3 + $0x40] sm:$0xf] %v478
  %521 = vst [vmem:[%s3 + $0x44] sm:$0xf] %v479
  %522 = vst [vmem:[%s3 + $0x48] sm:$0xf] %v480
  %523 = vst [vmem:[%s3 + $0x4c] sm:$0xf] %v481
  %524 = vst [vmem:[%s3 + $0x50] sm:$0xf] %v482
  // Predicated region
  $region14: #{generator_forward.7} parent=0 // pred_check
    _
  $region15: #{generator_forward.7} parent=0 // pred_check_branch
    %526 = sbr.rel (0) target = $region17
  $region16: #{generator_forward.7} parent=0 // pred_region
    _
  $region17: #{generator_forward.7} parent=0 // pred_fallthru
    _
  // Predicated region
  $region18: #{generator_forward.7} parent=0 // pred_check
    _
  $region19: #{generator_forward.7} parent=0 // pred_check_branch
    %528 = sbr.rel (0) target = $region21
  $region20: #{generator_forward.7} parent=0 // pred_region
    _
  $region21: #{generator_forward.7} parent=0 // pred_fallthru
    _

// kernel: generator_forward.8
$region0: #{generator_forward.8}
  #allocation0 [shape = 'u32[]', space=smem, size = 0x4, offset = 0x4, fixed_abs, tag = 'smem constant byte address 0x4 - core index']
  #allocation1 [shape = 'u32[144,128]{1,0:T(1,128)}', space=vmem, size = 0x12000, scoped, tag = 'internal scratch']
  %s0 = inlined_call_operand.vmem [shape: bf16[584,128], index: 0, kind: input, shape index: {}]
  %s1 = inlined_call_operand.vmem [shape: bf16[128,128], index: 1, kind: input, shape index: {}]
  %s2 = inlined_call_operand.vmem [shape: f32[1,128], index: 2, kind: input, shape index: {}]
  %s3 = inlined_call_operand.vmem [shape: bf16[584,128], index: 3, kind: output, shape index: {}]
  %s4 = sld [smem:[#allocation0]]
  $region22: #{generator_forward.8} parent=0
    _
  %s6 = ssub.s32 1, %s4
  %s7 = scalar_select 0, %s6, %s4
  // Predicated region
  $region2: #{generator_forward.8} parent=0 // pred_check
    _
  $region3: #{generator_forward.8} parent=0 // pred_check_branch
    %9 = sbr.rel (0) target = $region5
  $region4: #{generator_forward.8} parent=0 // pred_region
    _
  $region5: #{generator_forward.8} parent=0 // pred_fallthru
    _
  // Predicated region
  $region6: #{generator_forward.8} parent=0 // pred_check
    _
  $region7: #{generator_forward.8} parent=0 // pred_check_branch
    %11 = sbr.rel (0) target = $region9
  $region8: #{generator_forward.8} parent=0 // pred_region
    _
  $region9: #{generator_forward.8} parent=0 // pred_fallthru
    _
  // Predicated region
  $region10: #{generator_forward.8} parent=0 // pred_check
    _
  $region11: #{generator_forward.8} parent=0 // pred_check_branch
    %13 = sbr.rel (0) target = $region13
  $region12: #{generator_forward.8} parent=0 // pred_region
    _
  $region13: #{generator_forward.8} parent=0 // pred_fallthru
    _
  %v15 = vld [vmem:[%s0] sm:$0xf]
  %v16 = vld [vmem:[%s0 + $0x4] sm:$0xf]
  %v17 = vld [vmem:[%s0 + $0x8] sm:$0xf]
  %v18 = vld [vmem:[%s0 + $0xc] sm:$0xf]
  %v19 = vld [vmem:[%s0 + $0x10] sm:$0xf]
  %v20 = vld [vmem:[%s0 + $0x14] sm:$0xf]
  %v21 = vld [vmem:[%s0 + $0x18] sm:$0xf]
  %v22 = vld [vmem:[%s0 + $0x1c] sm:$0xf]
  %v23 = vld [vmem:[%s0 + $0x20] sm:$0xf]
  %v24 = vld [vmem:[%s0 + $0x24] sm:$0xf]
  %v25 = vld [vmem:[%s0 + $0x28] sm:$0xf]
  %v26 = vld [vmem:[%s0 + $0x2c] sm:$0xf]
  %v27 = vld [vmem:[%s0 + $0x30] sm:$0xf]
  %v28 = vld [vmem:[%s0 + $0x34] sm:$0xf]
  %v29 = vld [vmem:[%s0 + $0x38] sm:$0xf]
  %v30 = vld [vmem:[%s0 + $0x3c] sm:$0xf]
  %v31 = vld [vmem:[%s0 + $0x40] sm:$0xf]
  %v32 = vld [vmem:[%s0 + $0x44] sm:$0xf]
  %v33 = vld [vmem:[%s0 + $0x48] sm:$0xf]
  %v34 = vld [vmem:[%s0 + $0x4c] sm:$0xf]
  %v35 = vld [vmem:[%s0 + $0x50] sm:$0xf]
  %v36 = vld [vmem:[%s0 + $0x54] sm:$0xf]
  %v37 = vld [vmem:[%s0 + $0x58] sm:$0xf]
  %v38 = vld [vmem:[%s0 + $0x5c] sm:$0xf]
  %v39 = vld [vmem:[%s0 + $0x60] sm:$0xf]
  %v40 = vld [vmem:[%s0 + $0x64] sm:$0xf]
  %v41 = vld [vmem:[%s0 + $0x68] sm:$0xf]
  %v42 = vld [vmem:[%s0 + $0x6c] sm:$0xf]
  %v43 = vld [vmem:[%s0 + $0x70] sm:$0xf]
  %v44 = vld [vmem:[%s0 + $0x74] sm:$0xf]
  %v45 = vld [vmem:[%s0 + $0x78] sm:$0xf]
  %v46 = vld [vmem:[%s0 + $0x7c] sm:$0xf]
  %v47 = vld [vmem:[%s0 + $0x80] sm:$0xf]
  %v48 = vld [vmem:[%s0 + $0x84] sm:$0xf]
  %v49 = vld [vmem:[%s0 + $0x88] sm:$0xf]
  %v50 = vld [vmem:[%s0 + $0x8c] sm:$0xf]
  %v51 = vld [vmem:[%s0 + $0x90] sm:$0xf]
  %v52 = vld [vmem:[%s0 + $0x94] sm:$0xf]
  %v53 = vld [vmem:[%s0 + $0x98] sm:$0xf]
  %v54 = vld [vmem:[%s0 + $0x9c] sm:$0xf]
  %v55 = vld [vmem:[%s0 + $0xa0] sm:$0xf]
  %v56 = vld [vmem:[%s0 + $0xa4] sm:$0xf]
  %v57 = vld [vmem:[%s0 + $0xa8] sm:$0xf]
  %v58 = vld [vmem:[%s0 + $0xac] sm:$0xf]
  %v59 = vld [vmem:[%s0 + $0xb0] sm:$0xf]
  %v60 = vld [vmem:[%s0 + $0xb4] sm:$0xf]
  %v61 = vld [vmem:[%s0 + $0xb8] sm:$0xf]
  %v62 = vld [vmem:[%s0 + $0xbc] sm:$0xf]
  %v63 = vld [vmem:[%s0 + $0xc0] sm:$0xf]
  %v64 = vld [vmem:[%s0 + $0xc4] sm:$0xf]
  %v65 = vld [vmem:[%s0 + $0xc8] sm:$0xf]
  %v66 = vld [vmem:[%s0 + $0xcc] sm:$0xf]
  %v67 = vld [vmem:[%s0 + $0xd0] sm:$0xf]
  %v68 = vld [vmem:[%s0 + $0xd4] sm:$0xf]
  %v69 = vld [vmem:[%s0 + $0xd8] sm:$0xf]
  %v70 = vld [vmem:[%s0 + $0xdc] sm:$0xf]
  %v71 = vld [vmem:[%s0 + $0xe0] sm:$0xf]
  %v72 = vld [vmem:[%s0 + $0xe4] sm:$0xf]
  %v73 = vld [vmem:[%s0 + $0xe8] sm:$0xf]
  %v74 = vld [vmem:[%s0 + $0xec] sm:$0xf]
  %v75 = vld [vmem:[%s0 + $0xf0] sm:$0xf]
  %v76 = vld [vmem:[%s0 + $0xf4] sm:$0xf]
  %v77 = vld [vmem:[%s0 + $0xf8] sm:$0xf]
  %v78 = vld [vmem:[%s0 + $0xfc] sm:$0xf]
  %v79 = vld [vmem:[%s0 + $0x100] sm:$0xf]
  %v80 = vld [vmem:[%s0 + $0x104] sm:$0xf]
  %v81 = vld [vmem:[%s0 + $0x108] sm:$0xf]
  %v82 = vld [vmem:[%s0 + $0x10c] sm:$0xf]
  %v83 = vld [vmem:[%s0 + $0x110] sm:$0xf]
  %v84 = vld [vmem:[%s0 + $0x114] sm:$0xf]
  %v85 = vld [vmem:[%s0 + $0x118] sm:$0xf]
  %v86 = vld [vmem:[%s0 + $0x11c] sm:$0xf]
  %v87 = vld [vmem:[%s0 + $0x120] sm:$0xf]
  %v88 = vld [vmem:[%s1] sm:$0xf]
  %v89 = vld [vmem:[%s1 + $0x4] sm:$0xf]
  %v90 = vld [vmem:[%s1 + $0x8] sm:$0xf]
  %v91 = vld [vmem:[%s1 + $0xc] sm:$0xf]
  %v92 = vld [vmem:[%s1 + $0x10] sm:$0xf]
  %v93 = vld [vmem:[%s1 + $0x14] sm:$0xf]
  %v94 = vld [vmem:[%s1 + $0x18] sm:$0xf]
  %v95 = vld [vmem:[%s1 + $0x1c] sm:$0xf]
  %v96 = vld [vmem:[%s1 + $0x20] sm:$0xf]
  %v97 = vld [vmem:[%s1 + $0x24] sm:$0xf]
  %v98 = vld [vmem:[%s1 + $0x28] sm:$0xf]
  %v99 = vld [vmem:[%s1 + $0x2c] sm:$0xf]
  %v100 = vld [vmem:[%s1 + $0x30] sm:$0xf]
  %v101 = vld [vmem:[%s1 + $0x34] sm:$0xf]
  %v102 = vld [vmem:[%s1 + $0x38] sm:$0xf]
  %v103 = vld [vmem:[%s1 + $0x3c] sm:$0xf]
  %v104 = vld [vmem:[%s2] sm:$0x1]
  %v106 = vlaneseq
  %v107 = vshrl.u32 %v106, 7
  %v108 = vsub.s32 0, %v107
  %v109 = vrot.slane %v104, %v108
  %v184 = vunpack.c.l.b16 %v15
  %v185 = vunpack.c.l.b16 %v16
  %v186 = vunpack.c.l.b16 %v17
  %v187 = vunpack.c.l.b16 %v18
  %v188 = vunpack.c.l.b16 %v19
  %v189 = vunpack.c.l.b16 %v20
  %v190 = vunpack.c.l.b16 %v21
  %v191 = vunpack.c.l.b16 %v22
  %v192 = vunpack.c.l.b16 %v23
  %v193 = vunpack.c.l.b16 %v24
  %v194 = vunpack.c.l.b16 %v25
  %v195 = vunpack.c.l.b16 %v26
  %v196 = vunpack.c.l.b16 %v27
  %v197 = vunpack.c.l.b16 %v28
  %v198 = vunpack.c.l.b16 %v29
  %v199 = vunpack.c.l.b16 %v30
  %v200 = vunpack.c.l.b16 %v31
  %v201 = vunpack.c.l.b16 %v32
  %v202 = vunpack.c.l.b16 %v33
  %v203 = vunpack.c.l.b16 %v34
  %v204 = vunpack.c.l.b16 %v35
  %v205 = vunpack.c.l.b16 %v36
  %v206 = vunpack.c.l.b16 %v37
  %v207 = vunpack.c.l.b16 %v38
  %v208 = vunpack.c.l.b16 %v39
  %v209 = vunpack.c.l.b16 %v40
  %v210 = vunpack.c.l.b16 %v41
  %v211 = vunpack.c.l.b16 %v42
  %v212 = vunpack.c.l.b16 %v43
  %v213 = vunpack.c.l.b16 %v44
  %v214 = vunpack.c.l.b16 %v45
  %v215 = vunpack.c.l.b16 %v46
  %v216 = vunpack.c.l.b16 %v47
  %v217 = vunpack.c.l.b16 %v48
  %v218 = vunpack.c.l.b16 %v49
  %v219 = vunpack.c.l.b16 %v50
  %v220 = vunpack.c.l.b16 %v51
  %v221 = vunpack.c.l.b16 %v52
  %v222 = vunpack.c.l.b16 %v53
  %v223 = vunpack.c.l.b16 %v54
  %v224 = vunpack.c.l.b16 %v55
  %v225 = vunpack.c.l.b16 %v56
  %v226 = vunpack.c.l.b16 %v57
  %v227 = vunpack.c.l.b16 %v58
  %v228 = vunpack.c.l.b16 %v59
  %v229 = vunpack.c.l.b16 %v60
  %v230 = vunpack.c.l.b16 %v61
  %v231 = vunpack.c.l.b16 %v62
  %v232 = vunpack.c.l.b16 %v63
  %v233 = vunpack.c.l.b16 %v64
  %v234 = vunpack.c.l.b16 %v65
  %v235 = vunpack.c.l.b16 %v66
  %v236 = vunpack.c.l.b16 %v67
  %v237 = vunpack.c.l.b16 %v68
  %v238 = vunpack.c.l.b16 %v69
  %v239 = vunpack.c.l.b16 %v70
  %v240 = vunpack.c.l.b16 %v71
  %v241 = vunpack.c.l.b16 %v72
  %v242 = vunpack.c.l.b16 %v73
  %v243 = vunpack.c.l.b16 %v74
  %v244 = vunpack.c.l.b16 %v75
  %v245 = vunpack.c.l.b16 %v76
  %v246 = vunpack.c.l.b16 %v77
  %v247 = vunpack.c.l.b16 %v78
  %v248 = vunpack.c.l.b16 %v79
  %v249 = vunpack.c.l.b16 %v80
  %v250 = vunpack.c.l.b16 %v81
  %v251 = vunpack.c.l.b16 %v82
  %v252 = vunpack.c.l.b16 %v83
  %v253 = vunpack.c.l.b16 %v84
  %v254 = vunpack.c.l.b16 %v85
  %v255 = vunpack.c.l.b16 %v86
  %v256 = vunpack.c.l.b16 %v87
  %v257 = vpack.c.b16 %v185, %v184
  %v258 = vpack.c.b16 %v187, %v186
  %v259 = vpack.c.b16 %v189, %v188
  %v260 = vpack.c.b16 %v191, %v190
  %v261 = vpack.c.b16 %v193, %v192
  %v262 = vpack.c.b16 %v195, %v194
  %v263 = vpack.c.b16 %v197, %v196
  %v264 = vpack.c.b16 %v199, %v198
  %v265 = vpack.c.b16 %v201, %v200
  %v266 = vpack.c.b16 %v203, %v202
  %v267 = vpack.c.b16 %v205, %v204
  %v268 = vpack.c.b16 %v207, %v206
  %v269 = vpack.c.b16 %v209, %v208
  %v270 = vpack.c.b16 %v211, %v210
  %v271 = vpack.c.b16 %v213, %v212
  %v272 = vpack.c.b16 %v215, %v214
  %v273 = vpack.c.b16 %v217, %v216
  %v274 = vpack.c.b16 %v219, %v218
  %v275 = vpack.c.b16 %v221, %v220
  %v276 = vpack.c.b16 %v223, %v222
  %v277 = vpack.c.b16 %v225, %v224
  %v278 = vpack.c.b16 %v227, %v226
  %v279 = vpack.c.b16 %v229, %v228
  %v280 = vpack.c.b16 %v231, %v230
  %v281 = vpack.c.b16 %v233, %v232
  %v282 = vpack.c.b16 %v235, %v234
  %v283 = vpack.c.b16 %v237, %v236
  %v284 = vpack.c.b16 %v239, %v238
  %v285 = vpack.c.b16 %v241, %v240
  %v286 = vpack.c.b16 %v243, %v242
  %v287 = vpack.c.b16 %v245, %v244
  %v288 = vpack.c.b16 %v247, %v246
  %v289 = vpack.c.b16 %v249, %v248
  %v290 = vpack.c.b16 %v251, %v250
  %v291 = vpack.c.b16 %v253, %v252
  %v292 = vpack.c.b16 %v255, %v254
  %v293 = vpack.c.b16 %v256, %v256
  %v347 = vunpack.c.l.b16 %v88
  %v348 = vunpack.c.l.b16 %v89
  %v349 = vunpack.c.l.b16 %v90
  %v350 = vunpack.c.l.b16 %v91
  %v351 = vunpack.c.l.b16 %v92
  %v352 = vunpack.c.l.b16 %v93
  %v353 = vunpack.c.l.b16 %v94
  %v354 = vunpack.c.l.b16 %v95
  %v355 = vunpack.c.l.b16 %v96
  %v356 = vunpack.c.l.b16 %v97
  %v357 = vunpack.c.l.b16 %v98
  %v358 = vunpack.c.l.b16 %v99
  %v359 = vunpack.c.l.b16 %v100
  %v360 = vunpack.c.l.b16 %v101
  %v361 = vunpack.c.l.b16 %v102
  %v362 = vunpack.c.l.b16 %v103
  %v363 = vpack.c.b16 %v348, %v347
  %v364 = vpack.c.b16 %v350, %v349
  %v365 = vpack.c.b16 %v352, %v351
  %v366 = vpack.c.b16 %v354, %v353
  %v367 = vpack.c.b16 %v356, %v355
  %v368 = vpack.c.b16 %v358, %v357
  %v369 = vpack.c.b16 %v360, %v359
  %v370 = vpack.c.b16 %v362, %v361
  %379 = vmatprep.subr.bf16.mxu0 0
  %380 = vmatpush1.bf16.msra.mxu0 %v363
  %381 = vmatprep.subr.bf16.mxu0 0
  %382 = vmatpush1.bf16.msra.mxu0 %v364
  %383 = vmatprep.subr.bf16.mxu0 0
  %384 = vmatpush1.bf16.msra.mxu0 %v365
  %385 = vmatprep.subr.bf16.mxu0 0
  %386 = vmatpush1.bf16.msra.mxu0 %v366
  %387 = vmatprep.subr.bf16.mxu0 0
  %388 = vmatpush1.bf16.msra.mxu0 %v367
  %389 = vmatprep.subr.bf16.mxu0 0
  %390 = vmatpush1.bf16.msra.mxu0 %v368
  %391 = vmatprep.subr.bf16.mxu0 0
  %392 = vmatpush1.bf16.msra.mxu0 %v369
  %393 = vmatprep.subr.bf16.mxu0 0
  %394 = vmatpush1.bf16.msra.mxu0 %v370
  %395 = vmatprep.subr.bf16.mxu0 0
  %396 = vmatpush1.bf16.msra.mxu0 0
  %397 = vmatprep.subr.bf16.mxu0 0
  %398 = vmatpush1.bf16.msra.mxu0 0
  %399 = vmatprep.subr.bf16.mxu0 0
  %400 = vmatpush1.bf16.msra.mxu0 0
  %401 = vmatprep.subr.bf16.mxu0 0
  %402 = vmatpush1.bf16.msra.mxu0 0
  %403 = vmatprep.subr.bf16.mxu0 0
  %404 = vmatpush1.bf16.msra.mxu0 0
  %405 = vmatprep.subr.bf16.mxu0 0
  %406 = vmatpush1.bf16.msra.mxu0 0
  %407 = vmatprep.subr.bf16.mxu0 0
  %408 = vmatpush1.bf16.msra.mxu0 0
  %409 = vmatprep.subr.bf16.mxu0 0
  %410 = vmatpush1.bf16.msra.mxu0 0
  %411 = vmatprep.mubr.bf16.mxu0 0
  %412 = vmatmul.mubr.bf16.gmra.mrb[0].mxu0 %v257
  %v413 = vpop.f32.mrb[0].mxu0
  %v414 = vadd.f32 %v109, %v413
  %v415 = vpop.f32.mrb[0].mxu0
  %v416 = vpop.f32.mrb[0].mxu0
  %v417 = vadd.f32 %v109, %v416
  %v418 = vpop.f32.mrb[0].mxu0
  %419 = vmatprep.mubr.bf16.mxu0 0
  %420 = vmatmul.mubr.bf16.gmra.mrb[0].mxu0 %v258
  %v421 = vpop.f32.mrb[0].mxu0
  %v422 = vadd.f32 %v109, %v421
  %v423 = vpop.f32.mrb[0].mxu0
  %v424 = vpop.f32.mrb[0].mxu0
  %v425 = vadd.f32 %v109, %v424
  %v426 = vpop.f32.mrb[0].mxu0
  %427 = vmatprep.mubr.bf16.mxu0 0
  %428 = vmatmul.mubr.bf16.gmra.mrb[0].mxu0 %v259
  %v429 = vpop.f32.mrb[0].mxu0
  %v430 = vadd.f32 %v109, %v429
  %v431 = vpop.f32.mrb[0].mxu0
  %v432 = vpop.f32.mrb[0].mxu0
  %v433 = vadd.f32 %v109, %v432
  %v434 = vpop.f32.mrb[0].mxu0
  %435 = vmatprep.mubr.bf16.mxu0 0
  %436 = vmatmul.mubr.bf16.gmra.mrb[0].mxu0 %v260
  %v437 = vpop.f32.mrb[0].mxu0
  %v438 = vadd.f32 %v109, %v437
  %v439 = vpop.f32.mrb[0].mxu0
  %v440 = vpop.f32.mrb[0].mxu0
  %v441 = vadd.f32 %v109, %v440
  %v442 = vpop.f32.mrb[0].mxu0
  %443 = vmatprep.mubr.bf16.mxu0 0
  %444 = vmatmul.mubr.bf16.gmra.mrb[0].mxu0 %v261
  %v445 = vpop.f32.mrb[0].mxu0
  %v446 = vadd.f32 %v109, %v445
  %v447 = vpop.f32.mrb[0].mxu0
  %v448 = vpop.f32.mrb[0].mxu0
  %v449 = vadd.f32 %v109, %v448
  %v450 = vpop.f32.mrb[0].mxu0
  %451 = vmatprep.mubr.bf16.mxu0 0
  %452 = vmatmul.mubr.bf16.gmra.mrb[0].mxu0 %v262
  %v453 = vpop.f32.mrb[0].mxu0
  %v454 = vadd.f32 %v109, %v453
  %v455 = vpop.f32.mrb[0].mxu0
  %v456 = vpop.f32.mrb[0].mxu0
  %v457 = vadd.f32 %v109, %v456
  %v458 = vpop.f32.mrb[0].mxu0
  %459 = vmatprep.mubr.bf16.mxu0 0
  %460 = vmatmul.mubr.bf16.gmra.mrb[0].mxu0 %v263
  %v461 = vpop.f32.mrb[0].mxu0
  %v462 = vadd.f32 %v109, %v461
  %v463 = vpop.f32.mrb[0].mxu0
  %v464 = vpop.f32.mrb[0].mxu0
  %v465 = vadd.f32 %v109, %v464
  %v466 = vpop.f32.mrb[0].mxu0
  %467 = vmatprep.mubr.bf16.mxu0 0
  %468 = vmatmul.mubr.bf16.gmra.mrb[0].mxu0 %v264
  %v469 = vpop.f32.mrb[0].mxu0
  %v470 = vadd.f32 %v109, %v469
  %v471 = vpop.f32.mrb[0].mxu0
  %v472 = vpop.f32.mrb[0].mxu0
  %v473 = vadd.f32 %v109, %v472
  %v474 = vpop.f32.mrb[0].mxu0
  %475 = vmatprep.mubr.bf16.mxu0 0
  %476 = vmatmul.mubr.bf16.gmra.mrb[0].mxu0 %v265
  %v477 = vpop.f32.mrb[0].mxu0
  %v478 = vadd.f32 %v109, %v477
  %v479 = vpop.f32.mrb[0].mxu0
  %v480 = vpop.f32.mrb[0].mxu0
  %v481 = vadd.f32 %v109, %v480
  %v482 = vpop.f32.mrb[0].mxu0
  %483 = vmatprep.mubr.bf16.mxu0 0
  %484 = vmatmul.mubr.bf16.gmra.mrb[0].mxu0 %v266
  %v485 = vpop.f32.mrb[0].mxu0
  %v486 = vadd.f32 %v109, %v485
  %v487 = vpop.f32.mrb[0].mxu0
  %v488 = vpop.f32.mrb[0].mxu0
  %v489 = vadd.f32 %v109, %v488
  %v490 = vpop.f32.mrb[0].mxu0
  %491 = vmatprep.mubr.bf16.mxu0 0
  %492 = vmatmul.mubr.bf16.gmra.mrb[0].mxu0 %v267
  %v493 = vpop.f32.mrb[0].mxu0
  %v494 = vadd.f32 %v109, %v493
  %v495 = vpop.f32.mrb[0].mxu0
  %v496 = vpop.f32.mrb[0].mxu0
  %v497 = vadd.f32 %v109, %v496
  %v498 = vpop.f32.mrb[0].mxu0
  %499 = vmatprep.mubr.bf16.mxu0 0
  %500 = vmatmul.mubr.bf16.gmra.mrb[0].mxu0 %v268
  %v501 = vpop.f32.mrb[0].mxu0
  %v502 = vadd.f32 %v109, %v501
  %v503 = vpop.f32.mrb[0].mxu0
  %v504 = vpop.f32.mrb[0].mxu0
  %v505 = vadd.f32 %v109, %v504
  %v506 = vpop.f32.mrb[0].mxu0
  %507 = vmatprep.mubr.bf16.mxu0 0
  %508 = vmatmul.mubr.bf16.gmra.mrb[0].mxu0 %v269
  %v509 = vpop.f32.mrb[0].mxu0
  %v510 = vadd.f32 %v109, %v509
  %v511 = vpop.f32.mrb[0].mxu0
  %v512 = vpop.f32.mrb[0].mxu0
  %v513 = vadd.f32 %v109, %v512
  %v514 = vpop.f32.mrb[0].mxu0
  %515 = vmatprep.mubr.bf16.mxu0 0
  %516 = vmatmul.mubr.bf16.gmra.mrb[0].mxu0 %v270
  %v517 = vpop.f32.mrb[0].mxu0
  %v518 = vadd.f32 %v109, %v517
  %v519 = vpop.f32.mrb[0].mxu0
  %v520 = vpop.f32.mrb[0].mxu0
  %v521 = vadd.f32 %v109, %v520
  %v522 = vpop.f32.mrb[0].mxu0
  %523 = vmatprep.mubr.bf16.mxu0 0
  %524 = vmatmul.mubr.bf16.gmra.mrb[0].mxu0 %v271
  %v525 = vpop.f32.mrb[0].mxu0
  %v526 = vadd.f32 %v109, %v525
  %v527 = vpop.f32.mrb[0].mxu0
  %v528 = vpop.f32.mrb[0].mxu0
  %v529 = vadd.f32 %v109, %v528
  %v530 = vpop.f32.mrb[0].mxu0
  %531 = vmatprep.mubr.bf16.mxu0 0
  %532 = vmatmul.mubr.bf16.gmra.mrb[0].mxu0 %v272
  %v533 = vpop.f32.mrb[0].mxu0
  %v534 = vadd.f32 %v109, %v533
  %v535 = vpop.f32.mrb[0].mxu0
  %v536 = vpop.f32.mrb[0].mxu0
  %v537 = vadd.f32 %v109, %v536
  %v538 = vpop.f32.mrb[0].mxu0
  %539 = vmatprep.mubr.bf16.mxu0 0
  %540 = vmatmul.mubr.bf16.gmra.mrb[0].mxu0 %v273
  %v541 = vpop.f32.mrb[0].mxu0
  %v542 = vadd.f32 %v109, %v541
  %v543 = vpop.f32.mrb[0].mxu0
  %v544 = vpop.f32.mrb[0].mxu0
  %v545 = vadd.f32 %v109, %v544
  %v546 = vpop.f32.mrb[0].mxu0
  %547 = vmatprep.mubr.bf16.mxu0 0
  %548 = vmatmul.mubr.bf16.gmra.mrb[0].mxu0 %v274
  %v549 = vpop.f32.mrb[0].mxu0
  %v550 = vadd.f32 %v109, %v549
  %v551 = vpop.f32.mrb[0].mxu0
  %v552 = vpop.f32.mrb[0].mxu0
  %v553 = vadd.f32 %v109, %v552
  %v554 = vpop.f32.mrb[0].mxu0
  %555 = vmatprep.mubr.bf16.mxu0 0
  %556 = vmatmul.mubr.bf16.gmra.mrb[0].mxu0 %v275
  %v557 = vpop.f32.mrb[0].mxu0
  %v558 = vadd.f32 %v109, %v557
  %v559 = vpop.f32.mrb[0].mxu0
  %v560 = vpop.f32.mrb[0].mxu0
  %v561 = vadd.f32 %v109, %v560
  %v562 = vpop.f32.mrb[0].mxu0
  %563 = vmatprep.mubr.bf16.mxu0 0
  %564 = vmatmul.mubr.bf16.gmra.mrb[0].mxu0 %v276
  %v565 = vpop.f32.mrb[0].mxu0
  %v566 = vadd.f32 %v109, %v565
  %v567 = vpop.f32.mrb[0].mxu0
  %v568 = vpop.f32.mrb[0].mxu0
  %v569 = vadd.f32 %v109, %v568
  %v570 = vpop.f32.mrb[0].mxu0
  %571 = vmatprep.mubr.bf16.mxu0 0
  %572 = vmatmul.mubr.bf16.gmra.mrb[0].mxu0 %v277
  %v573 = vpop.f32.mrb[0].mxu0
  %v574 = vadd.f32 %v109, %v573
  %v575 = vpop.f32.mrb[0].mxu0
  %v576 = vpop.f32.mrb[0].mxu0
  %v577 = vadd.f32 %v109, %v576
  %v578 = vpop.f32.mrb[0].mxu0
  %579 = vmatprep.mubr.bf16.mxu0 0
  %580 = vmatmul.mubr.bf16.gmra.mrb[0].mxu0 %v278
  %v581 = vpop.f32.mrb[0].mxu0
  %v582 = vadd.f32 %v109, %v581
  %v583 = vpop.f32.mrb[0].mxu0
  %v584 = vpop.f32.mrb[0].mxu0
  %v585 = vadd.f32 %v109, %v584
  %v586 = vpop.f32.mrb[0].mxu0
  %587 = vmatprep.mubr.bf16.mxu0 0
  %588 = vmatmul.mubr.bf16.gmra.mrb[0].mxu0 %v279
  %v589 = vpop.f32.mrb[0].mxu0
  %v590 = vadd.f32 %v109, %v589
  %v591 = vpop.f32.mrb[0].mxu0
  %v592 = vpop.f32.mrb[0].mxu0
  %v593 = vadd.f32 %v109, %v592
  %v594 = vpop.f32.mrb[0].mxu0
  %595 = vmatprep.mubr.bf16.mxu0 0
  %596 = vmatmul.mubr.bf16.gmra.mrb[0].mxu0 %v280
  %v597 = vpop.f32.mrb[0].mxu0
  %v598 = vadd.f32 %v109, %v597
  %v599 = vpop.f32.mrb[0].mxu0
  %v600 = vpop.f32.mrb[0].mxu0
  %v601 = vadd.f32 %v109, %v600
  %v602 = vpop.f32.mrb[0].mxu0
  %603 = vmatprep.mubr.bf16.mxu0 0
  %604 = vmatmul.mubr.bf16.gmra.mrb[0].mxu0 %v281
  %v605 = vpop.f32.mrb[0].mxu0
  %v606 = vadd.f32 %v109, %v605
  %v607 = vpop.f32.mrb[0].mxu0
  %v608 = vpop.f32.mrb[0].mxu0
  %v609 = vadd.f32 %v109, %v608
  %v610 = vpop.f32.mrb[0].mxu0
  %611 = vmatprep.mubr.bf16.mxu0 0
  %612 = vmatmul.mubr.bf16.gmra.mrb[0].mxu0 %v282
  %v613 = vpop.f32.mrb[0].mxu0
  %v614 = vadd.f32 %v109, %v613
  %v615 = vpop.f32.mrb[0].mxu0
  %v616 = vpop.f32.mrb[0].mxu0
  %v617 = vadd.f32 %v109, %v616
  %v618 = vpop.f32.mrb[0].mxu0
  %619 = vmatprep.mubr.bf16.mxu0 0
  %620 = vmatmul.mubr.bf16.gmra.mrb[0].mxu0 %v283
  %v621 = vpop.f32.mrb[0].mxu0
  %v622 = vadd.f32 %v109, %v621
  %v623 = vpop.f32.mrb[0].mxu0
  %v624 = vpop.f32.mrb[0].mxu0
  %v625 = vadd.f32 %v109, %v624
  %v626 = vpop.f32.mrb[0].mxu0
  %627 = vmatprep.mubr.bf16.mxu0 0
  %628 = vmatmul.mubr.bf16.gmra.mrb[0].mxu0 %v284
  %v629 = vpop.f32.mrb[0].mxu0
  %v630 = vadd.f32 %v109, %v629
  %v631 = vpop.f32.mrb[0].mxu0
  %v632 = vpop.f32.mrb[0].mxu0
  %v633 = vadd.f32 %v109, %v632
  %v634 = vpop.f32.mrb[0].mxu0
  %635 = vmatprep.mubr.bf16.mxu0 0
  %636 = vmatmul.mubr.bf16.gmra.mrb[0].mxu0 %v285
  %v637 = vpop.f32.mrb[0].mxu0
  %v638 = vadd.f32 %v109, %v637
  %v639 = vpop.f32.mrb[0].mxu0
  %v640 = vpop.f32.mrb[0].mxu0
  %v641 = vadd.f32 %v109, %v640
  %v642 = vpop.f32.mrb[0].mxu0
  %643 = vmatprep.mubr.bf16.mxu0 0
  %644 = vmatmul.mubr.bf16.gmra.mrb[0].mxu0 %v286
  %v645 = vpop.f32.mrb[0].mxu0
  %v646 = vadd.f32 %v109, %v645
  %v647 = vpop.f32.mrb[0].mxu0
  %v648 = vpop.f32.mrb[0].mxu0
  %v649 = vadd.f32 %v109, %v648
  %v650 = vpop.f32.mrb[0].mxu0
  %651 = vmatprep.mubr.bf16.mxu0 0
  %652 = vmatmul.mubr.bf16.gmra.mrb[0].mxu0 %v287
  %v653 = vpop.f32.mrb[0].mxu0
  %v654 = vadd.f32 %v109, %v653
  %v655 = vpop.f32.mrb[0].mxu0
  %v656 = vpop.f32.mrb[0].mxu0
  %v657 = vadd.f32 %v109, %v656
  %v658 = vpop.f32.mrb[0].mxu0
  %659 = vmatprep.mubr.bf16.mxu0 0
  %660 = vmatmul.mubr.bf16.gmra.mrb[0].mxu0 %v288
  %v661 = vpop.f32.mrb[0].mxu0
  %v662 = vadd.f32 %v109, %v661
  %v663 = vpop.f32.mrb[0].mxu0
  %v664 = vpop.f32.mrb[0].mxu0
  %v665 = vadd.f32 %v109, %v664
  %v666 = vpop.f32.mrb[0].mxu0
  %667 = vmatprep.mubr.bf16.mxu0 0
  %668 = vmatmul.mubr.bf16.gmra.mrb[0].mxu0 %v289
  %v669 = vpop.f32.mrb[0].mxu0
  %v670 = vadd.f32 %v109, %v669
  %v671 = vpop.f32.mrb[0].mxu0
  %v672 = vpop.f32.mrb[0].mxu0
  %v673 = vadd.f32 %v109, %v672
  %v674 = vpop.f32.mrb[0].mxu0
  %675 = vmatprep.mubr.bf16.mxu0 0
  %676 = vmatmul.mubr.bf16.gmra.mrb[0].mxu0 %v290
  %v677 = vpop.f32.mrb[0].mxu0
  %v678 = vadd.f32 %v109, %v677
  %v679 = vpop.f32.mrb[0].mxu0
  %v680 = vpop.f32.mrb[0].mxu0
  %v681 = vadd.f32 %v109, %v680
  %v682 = vpop.f32.mrb[0].mxu0
  %683 = vmatprep.mubr.bf16.mxu0 0
  %684 = vmatmul.mubr.bf16.gmra.mrb[0].mxu0 %v291
  %v685 = vpop.f32.mrb[0].mxu0
  %v686 = vadd.f32 %v109, %v685
  %v687 = vpop.f32.mrb[0].mxu0
  %v688 = vpop.f32.mrb[0].mxu0
  %v689 = vadd.f32 %v109, %v688
  %v690 = vpop.f32.mrb[0].mxu0
  %691 = vmatprep.mubr.bf16.mxu0 0
  %692 = vmatmul.mubr.bf16.gmra.mrb[0].mxu0 %v292
  %v693 = vpop.f32.mrb[0].mxu0
  %v694 = vadd.f32 %v109, %v693
  %v695 = vpop.f32.mrb[0].mxu0
  %v696 = vpop.f32.mrb[0].mxu0
  %v697 = vadd.f32 %v109, %v696
  %v698 = vpop.f32.mrb[0].mxu0
  %699 = vmatprep.mubr.bf16.mxu0 0
  %700 = vmatmul.mubr.bf16.gmra.mrb[0].mxu0 %v293
  %v701 = vpop.f32.mrb[0].mxu0
  %v702 = vadd.f32 %v109, %v701
  %v703 = vpop.f32.mrb[0].mxu0
  %v704 = vpop.f32.mrb[0].mxu0
  %v705 = vpop.f32.mrb[0].mxu0
  %706 = vdwg.mxu0
  %v707 = vmax.f32 %v414, 0.0
  %v708 = vmax.f32 %v417, 0.0
  %v709 = vmax.f32 %v422, 0.0
  %v710 = vmax.f32 %v425, 0.0
  %v711 = vmax.f32 %v430, 0.0
  %v712 = vmax.f32 %v433, 0.0
  %v713 = vmax.f32 %v438, 0.0
  %v714 = vmax.f32 %v441, 0.0
  %v715 = vmax.f32 %v446, 0.0
  %v716 = vmax.f32 %v449, 0.0
  %v717 = vmax.f32 %v454, 0.0
  %v718 = vmax.f32 %v457, 0.0
  %v719 = vmax.f32 %v462, 0.0
  %v720 = vmax.f32 %v465, 0.0
  %v721 = vmax.f32 %v470, 0.0
  %v722 = vmax.f32 %v473, 0.0
  %v723 = vmax.f32 %v478, 0.0
  %v724 = vmax.f32 %v481, 0.0
  %v725 = vmax.f32 %v486, 0.0
  %v726 = vmax.f32 %v489, 0.0
  %v727 = vmax.f32 %v494, 0.0
  %v728 = vmax.f32 %v497, 0.0
  %v729 = vmax.f32 %v502, 0.0
  %v730 = vmax.f32 %v505, 0.0
  %v731 = vmax.f32 %v510, 0.0
  %v732 = vmax.f32 %v513, 0.0
  %v733 = vmax.f32 %v518, 0.0
  %v734 = vmax.f32 %v521, 0.0
  %v735 = vmax.f32 %v526, 0.0
  %v736 = vmax.f32 %v529, 0.0
  %v737 = vmax.f32 %v534, 0.0
  %v738 = vmax.f32 %v537, 0.0
  %v739 = vmax.f32 %v542, 0.0
  %v740 = vmax.f32 %v545, 0.0
  %v741 = vmax.f32 %v550, 0.0
  %v742 = vmax.f32 %v553, 0.0
  %v743 = vmax.f32 %v558, 0.0
  %v744 = vmax.f32 %v561, 0.0
  %v745 = vmax.f32 %v566, 0.0
  %v746 = vmax.f32 %v569, 0.0
  %v747 = vmax.f32 %v574, 0.0
  %v748 = vmax.f32 %v577, 0.0
  %v749 = vmax.f32 %v582, 0.0
  %v750 = vmax.f32 %v585, 0.0
  %v751 = vmax.f32 %v590, 0.0
  %v752 = vmax.f32 %v593, 0.0
  %v753 = vmax.f32 %v598, 0.0
  %v754 = vmax.f32 %v601, 0.0
  %v755 = vmax.f32 %v606, 0.0
  %v756 = vmax.f32 %v609, 0.0
  %v757 = vmax.f32 %v614, 0.0
  %v758 = vmax.f32 %v617, 0.0
  %v759 = vmax.f32 %v622, 0.0
  %v760 = vmax.f32 %v625, 0.0
  %v761 = vmax.f32 %v630, 0.0
  %v762 = vmax.f32 %v633, 0.0
  %v763 = vmax.f32 %v638, 0.0
  %v764 = vmax.f32 %v641, 0.0
  %v765 = vmax.f32 %v646, 0.0
  %v766 = vmax.f32 %v649, 0.0
  %v767 = vmax.f32 %v654, 0.0
  %v768 = vmax.f32 %v657, 0.0
  %v769 = vmax.f32 %v662, 0.0
  %v770 = vmax.f32 %v665, 0.0
  %v771 = vmax.f32 %v670, 0.0
  %v772 = vmax.f32 %v673, 0.0
  %v773 = vmax.f32 %v678, 0.0
  %v774 = vmax.f32 %v681, 0.0
  %v775 = vmax.f32 %v686, 0.0
  %v776 = vmax.f32 %v689, 0.0
  %v777 = vmax.f32 %v694, 0.0
  %v778 = vmax.f32 %v697, 0.0
  %v779 = vmax.f32 %v702, 0.0
  %v780 = vpack.c.bf16 %v708, %v707
  %v781 = vpack.c.bf16 %v710, %v709
  %v782 = vpack.c.bf16 %v712, %v711
  %v783 = vpack.c.bf16 %v714, %v713
  %v784 = vpack.c.bf16 %v716, %v715
  %v785 = vpack.c.bf16 %v718, %v717
  %v786 = vpack.c.bf16 %v720, %v719
  %v787 = vpack.c.bf16 %v722, %v721
  %v788 = vpack.c.bf16 %v724, %v723
  %v789 = vpack.c.bf16 %v726, %v725
  %v790 = vpack.c.bf16 %v728, %v727
  %v791 = vpack.c.bf16 %v730, %v729
  %v792 = vpack.c.bf16 %v732, %v731
  %v793 = vpack.c.bf16 %v734, %v733
  %v794 = vpack.c.bf16 %v736, %v735
  %v795 = vpack.c.bf16 %v738, %v737
  %v796 = vpack.c.bf16 %v740, %v739
  %v797 = vpack.c.bf16 %v742, %v741
  %v798 = vpack.c.bf16 %v744, %v743
  %v799 = vpack.c.bf16 %v746, %v745
  %v800 = vpack.c.bf16 %v748, %v747
  %v801 = vpack.c.bf16 %v750, %v749
  %v802 = vpack.c.bf16 %v752, %v751
  %v803 = vpack.c.bf16 %v754, %v753
  %v804 = vpack.c.bf16 %v756, %v755
  %v805 = vpack.c.bf16 %v758, %v757
  %v806 = vpack.c.bf16 %v760, %v759
  %v807 = vpack.c.bf16 %v762, %v761
  %v808 = vpack.c.bf16 %v764, %v763
  %v809 = vpack.c.bf16 %v766, %v765
  %v810 = vpack.c.bf16 %v768, %v767
  %v811 = vpack.c.bf16 %v770, %v769
  %v812 = vpack.c.bf16 %v772, %v771
  %v813 = vpack.c.bf16 %v774, %v773
  %v814 = vpack.c.bf16 %v776, %v775
  %v815 = vpack.c.bf16 %v778, %v777
  %v816 = vpack.c.bf16 %v779, %v779
  %v854 = vunpack.c.l.b16 %v780
  %v855 = vunpack.c.h.b16 %v780
  %v856 = vunpack.c.l.b16 %v781
  %v857 = vunpack.c.h.b16 %v781
  %v858 = vunpack.c.l.b16 %v782
  %v859 = vunpack.c.h.b16 %v782
  %v860 = vunpack.c.l.b16 %v783
  %v861 = vunpack.c.h.b16 %v783
  %v862 = vunpack.c.l.b16 %v784
  %v863 = vunpack.c.h.b16 %v784
  %v864 = vunpack.c.l.b16 %v785
  %v865 = vunpack.c.h.b16 %v785
  %v866 = vunpack.c.l.b16 %v786
  %v867 = vunpack.c.h.b16 %v786
  %v868 = vunpack.c.l.b16 %v787
  %v869 = vunpack.c.h.b16 %v787
  %v870 = vunpack.c.l.b16 %v788
  %v871 = vunpack.c.h.b16 %v788
  %v872 = vunpack.c.l.b16 %v789
  %v873 = vunpack.c.h.b16 %v789
  %v874 = vunpack.c.l.b16 %v790
  %v875 = vunpack.c.h.b16 %v790
  %v876 = vunpack.c.l.b16 %v791
  %v877 = vunpack.c.h.b16 %v791
  %v878 = vunpack.c.l.b16 %v792
  %v879 = vunpack.c.h.b16 %v792
  %v880 = vunpack.c.l.b16 %v793
  %v881 = vunpack.c.h.b16 %v793
  %v882 = vunpack.c.l.b16 %v794
  %v883 = vunpack.c.h.b16 %v794
  %v884 = vunpack.c.l.b16 %v795
  %v885 = vunpack.c.h.b16 %v795
  %v886 = vunpack.c.l.b16 %v796
  %v887 = vunpack.c.h.b16 %v796
  %v888 = vunpack.c.l.b16 %v797
  %v889 = vunpack.c.h.b16 %v797
  %v890 = vunpack.c.l.b16 %v798
  %v891 = vunpack.c.h.b16 %v798
  %v892 = vunpack.c.l.b16 %v799
  %v893 = vunpack.c.h.b16 %v799
  %v894 = vunpack.c.l.b16 %v800
  %v895 = vunpack.c.h.b16 %v800
  %v896 = vunpack.c.l.b16 %v801
  %v897 = vunpack.c.h.b16 %v801
  %v898 = vunpack.c.l.b16 %v802
  %v899 = vunpack.c.h.b16 %v802
  %v900 = vunpack.c.l.b16 %v803
  %v901 = vunpack.c.h.b16 %v803
  %v902 = vunpack.c.l.b16 %v804
  %v903 = vunpack.c.h.b16 %v804
  %v904 = vunpack.c.l.b16 %v805
  %v905 = vunpack.c.h.b16 %v805
  %v906 = vunpack.c.l.b16 %v806
  %v907 = vunpack.c.h.b16 %v806
  %v908 = vunpack.c.l.b16 %v807
  %v909 = vunpack.c.h.b16 %v807
  %v910 = vunpack.c.l.b16 %v808
  %v911 = vunpack.c.h.b16 %v808
  %v912 = vunpack.c.l.b16 %v809
  %v913 = vunpack.c.h.b16 %v809
  %v914 = vunpack.c.l.b16 %v810
  %v915 = vunpack.c.h.b16 %v810
  %v916 = vunpack.c.l.b16 %v811
  %v917 = vunpack.c.h.b16 %v811
  %v918 = vunpack.c.l.b16 %v812
  %v919 = vunpack.c.h.b16 %v812
  %v920 = vunpack.c.l.b16 %v813
  %v921 = vunpack.c.h.b16 %v813
  %v922 = vunpack.c.l.b16 %v814
  %v923 = vunpack.c.h.b16 %v814
  %v924 = vunpack.c.l.b16 %v815
  %v925 = vunpack.c.h.b16 %v815
  %v926 = vunpack.c.l.b16 %v816
  %v927 = vpack.c.b16 %v854, %v854
  %v928 = vpack.c.b16 %v855, %v855
  %v929 = vpack.c.b16 %v856, %v856
  %v930 = vpack.c.b16 %v857, %v857
  %v931 = vpack.c.b16 %v858, %v858
  %v932 = vpack.c.b16 %v859, %v859
  %v933 = vpack.c.b16 %v860, %v860
  %v934 = vpack.c.b16 %v861, %v861
  %v935 = vpack.c.b16 %v862, %v862
  %v936 = vpack.c.b16 %v863, %v863
  %v937 = vpack.c.b16 %v864, %v864
  %v938 = vpack.c.b16 %v865, %v865
  %v939 = vpack.c.b16 %v866, %v866
  %v940 = vpack.c.b16 %v867, %v867
  %v941 = vpack.c.b16 %v868, %v868
  %v942 = vpack.c.b16 %v869, %v869
  %v943 = vpack.c.b16 %v870, %v870
  %v944 = vpack.c.b16 %v871, %v871
  %v945 = vpack.c.b16 %v872, %v872
  %v946 = vpack.c.b16 %v873, %v873
  %v947 = vpack.c.b16 %v874, %v874
  %v948 = vpack.c.b16 %v875, %v875
  %v949 = vpack.c.b16 %v876, %v876
  %v950 = vpack.c.b16 %v877, %v877
  %v951 = vpack.c.b16 %v878, %v878
  %v952 = vpack.c.b16 %v879, %v879
  %v953 = vpack.c.b16 %v880, %v880
  %v954 = vpack.c.b16 %v881, %v881
  %v955 = vpack.c.b16 %v882, %v882
  %v956 = vpack.c.b16 %v883, %v883
  %v957 = vpack.c.b16 %v884, %v884
  %v958 = vpack.c.b16 %v885, %v885
  %v959 = vpack.c.b16 %v886, %v886
  %v960 = vpack.c.b16 %v887, %v887
  %v961 = vpack.c.b16 %v888, %v888
  %v962 = vpack.c.b16 %v889, %v889
  %v963 = vpack.c.b16 %v890, %v890
  %v964 = vpack.c.b16 %v891, %v891
  %v965 = vpack.c.b16 %v892, %v892
  %v966 = vpack.c.b16 %v893, %v893
  %v967 = vpack.c.b16 %v894, %v894
  %v968 = vpack.c.b16 %v895, %v895
  %v969 = vpack.c.b16 %v896, %v896
  %v970 = vpack.c.b16 %v897, %v897
  %v971 = vpack.c.b16 %v898, %v898
  %v972 = vpack.c.b16 %v899, %v899
  %v973 = vpack.c.b16 %v900, %v900
  %v974 = vpack.c.b16 %v901, %v901
  %v975 = vpack.c.b16 %v902, %v902
  %v976 = vpack.c.b16 %v903, %v903
  %v977 = vpack.c.b16 %v904, %v904
  %v978 = vpack.c.b16 %v905, %v905
  %v979 = vpack.c.b16 %v906, %v906
  %v980 = vpack.c.b16 %v907, %v907
  %v981 = vpack.c.b16 %v908, %v908
  %v982 = vpack.c.b16 %v909, %v909
  %v983 = vpack.c.b16 %v910, %v910
  %v984 = vpack.c.b16 %v911, %v911
  %v985 = vpack.c.b16 %v912, %v912
  %v986 = vpack.c.b16 %v913, %v913
  %v987 = vpack.c.b16 %v914, %v914
  %v988 = vpack.c.b16 %v915, %v915
  %v989 = vpack.c.b16 %v916, %v916
  %v990 = vpack.c.b16 %v917, %v917
  %v991 = vpack.c.b16 %v918, %v918
  %v992 = vpack.c.b16 %v919, %v919
  %v993 = vpack.c.b16 %v920, %v920
  %v994 = vpack.c.b16 %v921, %v921
  %v995 = vpack.c.b16 %v922, %v922
  %v996 = vpack.c.b16 %v923, %v923
  %v997 = vpack.c.b16 %v924, %v924
  %v998 = vpack.c.b16 %v925, %v925
  %v999 = vpack.c.b16 %v926, %v926
  %1073 = vst [vmem:[%s3] sm:$0xf] %v927
  %1074 = vst [vmem:[%s3 + $0x4] sm:$0xf] %v928
  %1075 = vst [vmem:[%s3 + $0x8] sm:$0xf] %v929
  %1076 = vst [vmem:[%s3 + $0xc] sm:$0xf] %v930
  %1077 = vst [vmem:[%s3 + $0x10] sm:$0xf] %v931
  %1078 = vst [vmem:[%s3 + $0x14] sm:$0xf] %v932
  %1079 = vst [vmem:[%s3 + $0x18] sm:$0xf] %v933
  %1080 = vst [vmem:[%s3 + $0x1c] sm:$0xf] %v934
  %1081 = vst [vmem:[%s3 + $0x20] sm:$0xf] %v935
  %1082 = vst [vmem:[%s3 + $0x24] sm:$0xf] %v936
  %1083 = vst [vmem:[%s3 + $0x28] sm:$0xf] %v937
  %1084 = vst [vmem:[%s3 + $0x2c] sm:$0xf] %v938
  %1085 = vst [vmem:[%s3 + $0x30] sm:$0xf] %v939
  %1086 = vst [vmem:[%s3 + $0x34] sm:$0xf] %v940
  %1087 = vst [vmem:[%s3 + $0x38] sm:$0xf] %v941
  %1088 = vst [vmem:[%s3 + $0x3c] sm:$0xf] %v942
  %1089 = vst [vmem:[%s3 + $0x40] sm:$0xf] %v943
  %1090 = vst [vmem:[%s3 + $0x44] sm:$0xf] %v944
  %1091 = vst [vmem:[%s3 + $0x48] sm:$0xf] %v945
  %1092 = vst [vmem:[%s3 + $0x4c] sm:$0xf] %v946
  %1093 = vst [vmem:[%s3 + $0x50] sm:$0xf] %v947
  %1094 = vst [vmem:[%s3 + $0x54] sm:$0xf] %v948
  %1095 = vst [vmem:[%s3 + $0x58] sm:$0xf] %v949
  %1096 = vst [vmem:[%s3 + $0x5c] sm:$0xf] %v950
  %1097 = vst [vmem:[%s3 + $0x60] sm:$0xf] %v951
  %1098 = vst [vmem:[%s3 + $0x64] sm:$0xf] %v952
  %1099 = vst [vmem:[%s3 + $0x68] sm:$0xf] %v953
  %1100 = vst [vmem:[%s3 + $0x6c] sm:$0xf] %v954
  %1101 = vst [vmem:[%s3 + $0x70] sm:$0xf] %v955
  %1102 = vst [vmem:[%s3 + $0x74] sm:$0xf] %v956
  %1103 = vst [vmem:[%s3 + $0x78] sm:$0xf] %v957
  %1104 = vst [vmem:[%s3 + $0x7c] sm:$0xf] %v958
  %1105 = vst [vmem:[%s3 + $0x80] sm:$0xf] %v959
  %1106 = vst [vmem:[%s3 + $0x84] sm:$0xf] %v960
  %1107 = vst [vmem:[%s3 + $0x88] sm:$0xf] %v961
  %1108 = vst [vmem:[%s3 + $0x8c] sm:$0xf] %v962
  %1109 = vst [vmem:[%s3 + $0x90] sm:$0xf] %v963
  %1110 = vst [vmem:[%s3 + $0x94] sm:$0xf] %v964
  %1111 = vst [vmem:[%s3 + $0x98] sm:$0xf] %v965
  %1112 = vst [vmem:[%s3 + $0x9c] sm:$0xf] %v966
  %1113 = vst [vmem:[%s3 + $0xa0] sm:$0xf] %v967
  %1114 = vst [vmem:[%s3 + $0xa4] sm:$0xf] %v968
  %1115 = vst [vmem:[%s3 + $0xa8] sm:$0xf] %v969
  %1116 = vst [vmem:[%s3 + $0xac] sm:$0xf] %v970
  %1117 = vst [vmem:[%s3 + $0xb0] sm:$0xf] %v971
  %1118 = vst [vmem:[%s3 + $0xb4] sm:$0xf] %v972
  %1119 = vst [vmem:[%s3 + $0xb8] sm:$0xf] %v973
  %1120 = vst [vmem:[%s3 + $0xbc] sm:$0xf] %v974
  %1121 = vst [vmem:[%s3 + $0xc0] sm:$0xf] %v975
  %1122 = vst [vmem:[%s3 + $0xc4] sm:$0xf] %v976
  %1123 = vst [vmem:[%s3 + $0xc8] sm:$0xf] %v977
  %1124 = vst [vmem:[%s3 + $0xcc] sm:$0xf] %v978
  %1125 = vst [vmem:[%s3 + $0xd0] sm:$0xf] %v979
  %1126 = vst [vmem:[%s3 + $0xd4] sm:$0xf] %v980
  %1127 = vst [vmem:[%s3 + $0xd8] sm:$0xf] %v981
  %1128 = vst [vmem:[%s3 + $0xdc] sm:$0xf] %v982
  %1129 = vst [vmem:[%s3 + $0xe0] sm:$0xf] %v983
  %1130 = vst [vmem:[%s3 + $0xe4] sm:$0xf] %v984
  %1131 = vst [vmem:[%s3 + $0xe8] sm:$0xf] %v985
  %1132 = vst [vmem:[%s3 + $0xec] sm:$0xf] %v986
  %1133 = vst [vmem:[%s3 + $0xf0] sm:$0xf] %v987
  %1134 = vst [vmem:[%s3 + $0xf4] sm:$0xf] %v988
  %1135 = vst [vmem:[%s3 + $0xf8] sm:$0xf] %v989
  %1136 = vst [vmem:[%s3 + $0xfc] sm:$0xf] %v990
  %1137 = vst [vmem:[%s3 + $0x100] sm:$0xf] %v991
  %1138 = vst [vmem:[%s3 + $0x104] sm:$0xf] %v992
  %1139 = vst [vmem:[%s3 + $0x108] sm:$0xf] %v993
  %1140 = vst [vmem:[%s3 + $0x10c] sm:$0xf] %v994
  %1141 = vst [vmem:[%s3 + $0x110] sm:$0xf] %v995
  %1142 = vst [vmem:[%s3 + $0x114] sm:$0xf] %v996
  %1143 = vst [vmem:[%s3 + $0x118] sm:$0xf] %v997
  %1144 = vst [vmem:[%s3 + $0x11c] sm:$0xf] %v998
  %1145 = vst [vmem:[%s3 + $0x120] sm:$0xf] %v999
  // Predicated region
  $region14: #{generator_forward.8} parent=0 // pred_check
    _
  $region15: #{generator_forward.8} parent=0 // pred_check_branch
    %1147 = sbr.rel (0) target = $region17
  $region16: #{generator_forward.8} parent=0 // pred_region
    _
  $region17: #{generator_forward.8} parent=0 // pred_fallthru
    _
  // Predicated region
  $region18: #{generator_forward.8} parent=0 // pred_check
    _
  $region19: #{generator_forward.8} parent=0 // pred_check_branch
    %1149 = sbr.rel (0) target = $region21
  $region20: #{generator_forward.8} parent=0 // pred_region
    _
  $region21: #{generator_forward.8} parent=0 // pred_fallthru
    _

// kernel: generator_forward.9
$region0: #{generator_forward.9}
  #allocation0 [shape = 'u32[]', space=smem, size = 0x4, offset = 0x4, fixed_abs, tag = 'smem constant byte address 0x4 - core index']
  #allocation1 [shape = 'u32[144,128]{1,0:T(1,128)}', space=vmem, size = 0x12000, scoped, tag = 'internal scratch']
  %s0 = inlined_call_operand.vmem [shape: bf16[2192,128], index: 0, kind: input, shape index: {}]
  %s1 = inlined_call_operand.vmem [shape: bf16[128,128], index: 1, kind: input, shape index: {}]
  %s2 = inlined_call_operand.vmem [shape: f32[1,128], index: 2, kind: input, shape index: {}]
  %s3 = inlined_call_operand.vmem [shape: f32[2192,128], index: 3, kind: output, shape index: {}]
  %s4 = sld [smem:[#allocation0]]
  $region45: #{generator_forward.9} parent=0
    _
  %s6 = ssub.s32 1, %s4
  %s7 = scalar_select 0, %s6, %s4
  loop: start=0, step=1, limit=4
  $region2: #{generator_forward.9} parent=0 // loop_pre_header
    _
  $region3: #{generator_forward.9} parent=0 // loop_header
    %s9 = sphi 0, %s13
    %p10 = scmp.ge.s32.totalorder %s9, 4
    %s19 = sphi 0, %s21
    %s22 = sphi 0, %s19
    %s23 = sphi 0, %s22
    %s39 = sphi 0, %s23
    %s43 = sphi 0, %s43
    %s45 = sphi 0, %s43
    %s46 = sphi 0, %s45
    %s60 = sphi 0, %s46
    %s64 = sphi 0, %s64
    %s66 = sphi 0, %s64
    %s67 = sphi 0, %s66
    %s81 = sphi 0, %s67
    %s87 = sphi 0, %s89
    %s90 = sphi 0, %s87
    %s91 = sphi 0, %s90
    %s107 = sphi 0, %s91
  $region4: #{generator_forward.9} parent=0 // loop_header_branch
    %12 = sbr.rel (%p10) target = $region8
  $region5: #{generator_forward.9} parent=0 // loop_body
    %s14 = ssub.s32 %s9, 1
    %s15 = ssub.s32 %s9, 2
    %s16 = sadd.s32 %s9, 1
    %s17 = ssub.s32 %s9, %s16
    %p18 = scmp.eq.s32.totalorder %s17, 0
    %s20 = sadd.s32 %s19, 1
    %s21 = scalar_select %p18, %s19, %s20
    %p24 = pneg %p18
    %p25 = scmp.eq.s32.totalorder %s9, 1
    %p26 = por %p24, %p25
    %p27 = scmp.ne.s32.totalorder %s19, %s22
    %p28 = scmp.eq.s32.totalorder %s9, 0
    %p29 = por %p27, %p28
    %p30 = scmp.ne.s32.totalorder %s19, %s22
    %p31 = scmp.eq.s32.totalorder %s14, 1
    %p32 = por %p30, %p31
    %p33 = scmp.ne.s32.totalorder %s22, %s23
    %p34 = scmp.eq.s32.totalorder %s14, 0
    %p35 = por %p33, %p34
    %p36 = scmp.ne.s32.totalorder %s22, %s23
    %p37 = scmp.eq.s32.totalorder %s15, 1
    %p38 = por %p36, %p37
    %p40 = scmp.ne.s32.totalorder %s23, %s39
    %p41 = scmp.eq.s32.totalorder %s15, 0
    %p42 = por %p40, %p41
    %s44 = sadd.s32 %s43, 1
    %p47 = scmp.eq.s32.totalorder %s9, 1
    %p48 = scmp.ne.s32.totalorder %s43, %s45
    %p49 = scmp.eq.s32.totalorder %s9, 0
    %p50 = por %p48, %p49
    %p51 = scmp.ne.s32.totalorder %s43, %s45
    %p52 = scmp.eq.s32.totalorder %s14, 1
    %p53 = por %p51, %p52
    %p54 = scmp.ne.s32.totalorder %s45, %s46
    %p55 = scmp.eq.s32.totalorder %s14, 0
    %p56 = por %p54, %p55
    %p57 = scmp.ne.s32.totalorder %s45, %s46
    %p58 = scmp.eq.s32.totalorder %s15, 1
    %p59 = por %p57, %p58
    %p61 = scmp.ne.s32.totalorder %s46, %s60
    %p62 = scmp.eq.s32.totalorder %s15, 0
    %p63 = por %p61, %p62
    %s65 = sadd.s32 %s64, 1
    %p68 = scmp.eq.s32.totalorder %s9, 1
    %p69 = scmp.ne.s32.totalorder %s64, %s66
    %p70 = scmp.eq.s32.totalorder %s9, 0
    %p71 = por %p69, %p70
    %p72 = scmp.ne.s32.totalorder %s64, %s66
    %p73 = scmp.eq.s32.totalorder %s14, 1
    %p74 = por %p72, %p73
    %p75 = scmp.ne.s32.totalorder %s66, %s67
    %p76 = scmp.eq.s32.totalorder %s14, 0
    %p77 = por %p75, %p76
    %p78 = scmp.ne.s32.totalorder %s66, %s67
    %p79 = scmp.eq.s32.totalorder %s15, 1
    %p80 = por %p78, %p79
    %p82 = scmp.ne.s32.totalorder %s67, %s81
    %p83 = scmp.eq.s32.totalorder %s15, 0
    %p84 = por %p82, %p83
    %s85 = ssub.s32 %s9, %s16
    %p86 = scmp.eq.s32.totalorder %s85, 0
    %s88 = sadd.s32 %s87, 1
    %s89 = scalar_select %p86, %s87, %s88
    %p92 = pneg %p86
    %p93 = scmp.eq.s32.totalorder %s9, 1
    %p94 = por %p92, %p93
    %p95 = scmp.ne.s32.totalorder %s87, %s90
    %p96 = scmp.eq.s32.totalorder %s9, 0
    %p97 = por %p95, %p96
    %p98 = scmp.ne.s32.totalorder %s87, %s90
    %p99 = scmp.eq.s32.totalorder %s14, 1
    %p100 = por %p98, %p99
    %p101 = scmp.ne.s32.totalorder %s90, %s91
    %p102 = scmp.eq.s32.totalorder %s14, 0
    %p103 = por %p101, %p102
    %p104 = scmp.ne.s32.totalorder %s90, %s91
    %p105 = scmp.eq.s32.totalorder %s15, 1
    %p106 = por %p104, %p105
    %p108 = scmp.ne.s32.totalorder %s91, %s107
    %p109 = scmp.eq.s32.totalorder %s15, 0
    %p110 = por %p108, %p109
    %p111 = scmp.le.s32.totalorder 1, %s9
    %p112 = scmp.lt.s32.totalorder %s9, 3
    %p113 = pnand %p111, %p112
    %p114 = pneg %p113
    // Predicated region
    $region9: #{generator_forward.9} parent=5 // pred_check
      _
    $region10: #{generator_forward.9} parent=5 // pred_check_branch
      %116 = sbr.rel (%p113) target = $region12
    $region11: #{generator_forward.9} parent=5 // pred_region
      %s117 = ssub.s32 %s9, 1
      // Predicated region
      $region13: #{generator_forward.9} parent=11 // pred_check
        %p118 = pneg %p56
      $region14: #{generator_forward.9} parent=11 // pred_check_branch
        %120 = sbr.rel (%p118) target = $region16
      $region15: #{generator_forward.9} parent=11 // pred_region
        _
      $region16: #{generator_forward.9} parent=11 // pred_fallthru
        _
      // Predicated region
      $region17: #{generator_forward.9} parent=11 // pred_check
        %p121 = pneg %p77
      $region18: #{generator_forward.9} parent=11 // pred_check_branch
        %123 = sbr.rel (%p121) target = $region20
      $region19: #{generator_forward.9} parent=11 // pred_region
        _
      $region20: #{generator_forward.9} parent=11 // pred_fallthru
        _
    $region12: #{generator_forward.9} parent=5 // pred_fallthru
      _
    %p124 = scmp.lt.s32.totalorder %s9, 2
    // Predicated region
    $region21: #{generator_forward.9} parent=5 // pred_check
      %p125 = pneg %p124
    $region22: #{generator_forward.9} parent=5 // pred_check_branch
      %127 = sbr.rel (%p125) target = $region24
    $region23: #{generator_forward.9} parent=5 // pred_region
      // Predicated region
      $region25: #{generator_forward.9} parent=23 // pred_check
        %p128 = pneg %p29
      $region26: #{generator_forward.9} parent=23 // pred_check_branch
        %130 = sbr.rel (%p128) target = $region28
      $region27: #{generator_forward.9} parent=23 // pred_region
        %s131 = smul.u32 137, %s9
        %p132 = scmp.lt.s32.totalorder %s131, 273
        %s133 = scalar_select %p132, %s131, 273
        %s134 = smul.addr %s133, 4
        %s135 = scalar_lea.vmem %s0, %s134
        %s136 = smul.u32 137, %s9
      $region28: #{generator_forward.9} parent=23 // pred_fallthru
        _
    $region24: #{generator_forward.9} parent=5 // pred_fallthru
      _
    %p137 = scmp.le.s32.totalorder 1, %s9
    %p138 = scmp.lt.s32.totalorder %s9, 3
    %p139 = pnand %p137, %p138
    %p140 = pneg %p139
    // Predicated region
    $region29: #{generator_forward.9} parent=5 // pred_check
      _
    $region30: #{generator_forward.9} parent=5 // pred_check_branch
      %142 = sbr.rel (%p139) target = $region32
    $region31: #{generator_forward.9} parent=5 // pred_region
      %s143 = ssub.s32 %s9, 1
      %s144 = smul.u32 137, %s14
      %p145 = scmp.lt.s32.totalorder %s144, 273
      %s146 = scalar_select %p145, %s144, 273
      %s147 = smul.addr %s146, 4
      %s148 = scalar_lea.vmem %s0, %s147
      %p149 = pneg %p35
      %p150 = pneg %p32
      %p151 = pneg %p56
      %p152 = pneg %p53
      %p153 = pneg %p77
      %p154 = pneg %p74
      %p155 = pneg %p103
      %p156 = pneg %p100
      %s157 = smul.u32 137, %s14
      %p158 = scmp.lt.s32.totalorder %s157, 273
      %s159 = scalar_select %p158, %s157, 273
      %s160 = smul.addr %s159, 8
      %s161 = scalar_lea.vmem %s3, %s160
      %s162 = smul.u32 137, %s14
      %p163 = scmp.lt.s32.totalorder %s162, 273
      %s164 = scalar_select %p163, %s162, 273
      %s165 = smul.addr %s164, 4
      %s166 = scalar_lea.vmem %s0, %s165
      %s167 = smul.u32 137, %s14
      %s168 = smul.u32 137, %s14
      %p169 = scmp.lt.s32.totalorder %s168, 273
      %s170 = scalar_select %p169, %s168, 273
      %s171 = smul.addr %s170, 8
      %s172 = scalar_lea.vmem %s3, %s171
      %s173 = smul.u32 137, %s14
      %v175 = vld [vmem:[%s166] sm:$0xf]
      %v176 = vld [vmem:[%s166 + $0x4] sm:$0xf]
      %v177 = vld [vmem:[%s166 + $0x8] sm:$0xf]
      %v178 = vld [vmem:[%s166 + $0xc] sm:$0xf]
      %v179 = vld [vmem:[%s166 + $0x10] sm:$0xf]
      %v180 = vld [vmem:[%s166 + $0x14] sm:$0xf]
      %v181 = vld [vmem:[%s166 + $0x18] sm:$0xf]
      %v182 = vld [vmem:[%s166 + $0x1c] sm:$0xf]
      %v183 = vld [vmem:[%s166 + $0x20] sm:$0xf]
      %v184 = vld [vmem:[%s166 + $0x24] sm:$0xf]
      %v185 = vld [vmem:[%s166 + $0x28] sm:$0xf]
      %v186 = vld [vmem:[%s166 + $0x2c] sm:$0xf]
      %v187 = vld [vmem:[%s166 + $0x30] sm:$0xf]
      %v188 = vld [vmem:[%s166 + $0x34] sm:$0xf]
      %v189 = vld [vmem:[%s166 + $0x38] sm:$0xf]
      %v190 = vld [vmem:[%s166 + $0x3c] sm:$0xf]
      %v191 = vld [vmem:[%s166 + $0x40] sm:$0xf]
      %v192 = vld [vmem:[%s166 + $0x44] sm:$0xf]
      %v193 = vld [vmem:[%s166 + $0x48] sm:$0xf]
      %v194 = vld [vmem:[%s166 + $0x4c] sm:$0xf]
      %v195 = vld [vmem:[%s166 + $0x50] sm:$0xf]
      %v196 = vld [vmem:[%s166 + $0x54] sm:$0xf]
      %v197 = vld [vmem:[%s166 + $0x58] sm:$0xf]
      %v198 = vld [vmem:[%s166 + $0x5c] sm:$0xf]
      %v199 = vld [vmem:[%s166 + $0x60] sm:$0xf]
      %v200 = vld [vmem:[%s166 + $0x64] sm:$0xf]
      %v201 = vld [vmem:[%s166 + $0x68] sm:$0xf]
      %v202 = vld [vmem:[%s166 + $0x6c] sm:$0xf]
      %v203 = vld [vmem:[%s166 + $0x70] sm:$0xf]
      %v204 = vld [vmem:[%s166 + $0x74] sm:$0xf]
      %v205 = vld [vmem:[%s166 + $0x78] sm:$0xf]
      %v206 = vld [vmem:[%s166 + $0x7c] sm:$0xf]
      %v207 = vld [vmem:[%s166 + $0x80] sm:$0xf]
      %v208 = vld [vmem:[%s166 + $0x84] sm:$0xf]
      %v209 = vld [vmem:[%s166 + $0x88] sm:$0xf]
      %v210 = vld [vmem:[%s166 + $0x8c] sm:$0xf]
      %v211 = vld [vmem:[%s166 + $0x90] sm:$0xf]
      %v212 = vld [vmem:[%s166 + $0x94] sm:$0xf]
      %v213 = vld [vmem:[%s166 + $0x98] sm:$0xf]
      %v214 = vld [vmem:[%s166 + $0x9c] sm:$0xf]
      %v215 = vld [vmem:[%s166 + $0xa0] sm:$0xf]
      %v216 = vld [vmem:[%s166 + $0xa4] sm:$0xf]
      %v217 = vld [vmem:[%s166 + $0xa8] sm:$0xf]
      %v218 = vld [vmem:[%s166 + $0xac] sm:$0xf]
      %v219 = vld [vmem:[%s166 + $0xb0] sm:$0xf]
      %v220 = vld [vmem:[%s166 + $0xb4] sm:$0xf]
      %v221 = vld [vmem:[%s166 + $0xb8] sm:$0xf]
      %v222 = vld [vmem:[%s166 + $0xbc] sm:$0xf]
      %v223 = vld [vmem:[%s166 + $0xc0] sm:$0xf]
      %v224 = vld [vmem:[%s166 + $0xc4] sm:$0xf]
      %v225 = vld [vmem:[%s166 + $0xc8] sm:$0xf]
      %v226 = vld [vmem:[%s166 + $0xcc] sm:$0xf]
      %v227 = vld [vmem:[%s166 + $0xd0] sm:$0xf]
      %v228 = vld [vmem:[%s166 + $0xd4] sm:$0xf]
      %v229 = vld [vmem:[%s166 + $0xd8] sm:$0xf]
      %v230 = vld [vmem:[%s166 + $0xdc] sm:$0xf]
      %v231 = vld [vmem:[%s166 + $0xe0] sm:$0xf]
      %v232 = vld [vmem:[%s166 + $0xe4] sm:$0xf]
      %v233 = vld [vmem:[%s166 + $0xe8] sm:$0xf]
      %v234 = vld [vmem:[%s166 + $0xec] sm:$0xf]
      %v235 = vld [vmem:[%s166 + $0xf0] sm:$0xf]
      %v236 = vld [vmem:[%s166 + $0xf4] sm:$0xf]
      %v237 = vld [vmem:[%s166 + $0xf8] sm:$0xf]
      %v238 = vld [vmem:[%s166 + $0xfc] sm:$0xf]
      %v239 = vld [vmem:[%s166 + $0x100] sm:$0xf]
      %v240 = vld [vmem:[%s166 + $0x104] sm:$0xf]
      %v241 = vld [vmem:[%s166 + $0x108] sm:$0xf]
      %v242 = vld [vmem:[%s166 + $0x10c] sm:$0xf]
      %v243 = vld [vmem:[%s166 + $0x110] sm:$0xf]
      %v244 = vld [vmem:[%s166 + $0x114] sm:$0xf]
      %v245 = vld [vmem:[%s166 + $0x118] sm:$0xf]
      %v246 = vld [vmem:[%s166 + $0x11c] sm:$0xf]
      %v247 = vld [vmem:[%s166 + $0x120] sm:$0xf]
      %v248 = vld [vmem:[%s166 + $0x124] sm:$0xf]
      %v249 = vld [vmem:[%s166 + $0x128] sm:$0xf]
      %v250 = vld [vmem:[%s166 + $0x12c] sm:$0xf]
      %v251 = vld [vmem:[%s166 + $0x130] sm:$0xf]
      %v252 = vld [vmem:[%s166 + $0x134] sm:$0xf]
      %v253 = vld [vmem:[%s166 + $0x138] sm:$0xf]
      %v254 = vld [vmem:[%s166 + $0x13c] sm:$0xf]
      %v255 = vld [vmem:[%s166 + $0x140] sm:$0xf]
      %v256 = vld [vmem:[%s166 + $0x144] sm:$0xf]
      %v257 = vld [vmem:[%s166 + $0x148] sm:$0xf]
      %v258 = vld [vmem:[%s166 + $0x14c] sm:$0xf]
      %v259 = vld [vmem:[%s166 + $0x150] sm:$0xf]
      %v260 = vld [vmem:[%s166 + $0x154] sm:$0xf]
      %v261 = vld [vmem:[%s166 + $0x158] sm:$0xf]
      %v262 = vld [vmem:[%s166 + $0x15c] sm:$0xf]
      %v263 = vld [vmem:[%s166 + $0x160] sm:$0xf]
      %v264 = vld [vmem:[%s166 + $0x164] sm:$0xf]
      %v265 = vld [vmem:[%s166 + $0x168] sm:$0xf]
      %v266 = vld [vmem:[%s166 + $0x16c] sm:$0xf]
      %v267 = vld [vmem:[%s166 + $0x170] sm:$0xf]
      %v268 = vld [vmem:[%s166 + $0x174] sm:$0xf]
      %v269 = vld [vmem:[%s166 + $0x178] sm:$0xf]
      %v270 = vld [vmem:[%s166 + $0x17c] sm:$0xf]
      %v271 = vld [vmem:[%s166 + $0x180] sm:$0xf]
      %v272 = vld [vmem:[%s166 + $0x184] sm:$0xf]
      %v273 = vld [vmem:[%s166 + $0x188] sm:$0xf]
      %v274 = vld [vmem:[%s166 + $0x18c] sm:$0xf]
      %v275 = vld [vmem:[%s166 + $0x190] sm:$0xf]
      %v276 = vld [vmem:[%s166 + $0x194] sm:$0xf]
      %v277 = vld [vmem:[%s166 + $0x198] sm:$0xf]
      %v278 = vld [vmem:[%s166 + $0x19c] sm:$0xf]
      %v279 = vld [vmem:[%s166 + $0x1a0] sm:$0xf]
      %v280 = vld [vmem:[%s166 + $0x1a4] sm:$0xf]
      %v281 = vld [vmem:[%s166 + $0x1a8] sm:$0xf]
      %v282 = vld [vmem:[%s166 + $0x1ac] sm:$0xf]
      %v283 = vld [vmem:[%s166 + $0x1b0] sm:$0xf]
      %v284 = vld [vmem:[%s166 + $0x1b4] sm:$0xf]
      %v285 = vld [vmem:[%s166 + $0x1b8] sm:$0xf]
      %v286 = vld [vmem:[%s166 + $0x1bc] sm:$0xf]
      %v287 = vld [vmem:[%s166 + $0x1c0] sm:$0xf]
      %v288 = vld [vmem:[%s166 + $0x1c4] sm:$0xf]
      %v289 = vld [vmem:[%s166 + $0x1c8] sm:$0xf]
      %v290 = vld [vmem:[%s166 + $0x1cc] sm:$0xf]
      %v291 = vld [vmem:[%s166 + $0x1d0] sm:$0xf]
      %v292 = vld [vmem:[%s166 + $0x1d4] sm:$0xf]
      %v293 = vld [vmem:[%s166 + $0x1d8] sm:$0xf]
      %v294 = vld [vmem:[%s166 + $0x1dc] sm:$0xf]
      %v295 = vld [vmem:[%s166 + $0x1e0] sm:$0xf]
      %v296 = vld [vmem:[%s166 + $0x1e4] sm:$0xf]
      %v297 = vld [vmem:[%s166 + $0x1e8] sm:$0xf]
      %v298 = vld [vmem:[%s166 + $0x1ec] sm:$0xf]
      %v299 = vld [vmem:[%s166 + $0x1f0] sm:$0xf]
      %v300 = vld [vmem:[%s166 + $0x1f4] sm:$0xf]
      %v301 = vld [vmem:[%s166 + $0x1f8] sm:$0xf]
      %v302 = vld [vmem:[%s166 + $0x1fc] sm:$0xf]
      %v303 = vld [vmem:[%s166 + $0x200] sm:$0xf]
      %v304 = vld [vmem:[%s166 + $0x204] sm:$0xf]
      %v305 = vld [vmem:[%s166 + $0x208] sm:$0xf]
      %v306 = vld [vmem:[%s166 + $0x20c] sm:$0xf]
      %v307 = vld [vmem:[%s166 + $0x210] sm:$0xf]
      %v308 = vld [vmem:[%s166 + $0x214] sm:$0xf]
      %v309 = vld [vmem:[%s166 + $0x218] sm:$0xf]
      %v310 = vld [vmem:[%s166 + $0x21c] sm:$0xf]
      %v311 = vld [vmem:[%s166 + $0x220] sm:$0xf]
      %v312 = vld [vmem:[%s1] sm:$0xf]
      %v313 = vld [vmem:[%s1 + $0x4] sm:$0xf]
      %v314 = vld [vmem:[%s1 + $0x8] sm:$0xf]
      %v315 = vld [vmem:[%s1 + $0xc] sm:$0xf]
      %v316 = vld [vmem:[%s1 + $0x10] sm:$0xf]
      %v317 = vld [vmem:[%s1 + $0x14] sm:$0xf]
      %v318 = vld [vmem:[%s1 + $0x18] sm:$0xf]
      %v319 = vld [vmem:[%s1 + $0x1c] sm:$0xf]
      %v320 = vld [vmem:[%s1 + $0x20] sm:$0xf]
      %v321 = vld [vmem:[%s1 + $0x24] sm:$0xf]
      %v322 = vld [vmem:[%s1 + $0x28] sm:$0xf]
      %v323 = vld [vmem:[%s1 + $0x2c] sm:$0xf]
      %v324 = vld [vmem:[%s1 + $0x30] sm:$0xf]
      %v325 = vld [vmem:[%s1 + $0x34] sm:$0xf]
      %v326 = vld [vmem:[%s1 + $0x38] sm:$0xf]
      %v327 = vld [vmem:[%s1 + $0x3c] sm:$0xf]
      %v328 = vld [vmem:[%s2] sm:$0x1]
      %v330 = vlaneseq
      %v331 = vshrl.u32 %v330, 7
      %v332 = vsub.s32 0, %v331
      %v333 = vrot.slane %v328, %v332
      %v472 = vunpack.c.l.b16 %v175
      %v473 = vunpack.c.l.b16 %v176
      %v474 = vunpack.c.l.b16 %v177
      %v475 = vunpack.c.l.b16 %v178
      %v476 = vunpack.c.l.b16 %v179
      %v477 = vunpack.c.l.b16 %v180
      %v478 = vunpack.c.l.b16 %v181
      %v479 = vunpack.c.l.b16 %v182
      %v480 = vunpack.c.l.b16 %v183
      %v481 = vunpack.c.l.b16 %v184
      %v482 = vunpack.c.l.b16 %v185
      %v483 = vunpack.c.l.b16 %v186
      %v484 = vunpack.c.l.b16 %v187
      %v485 = vunpack.c.l.b16 %v188
      %v486 = vunpack.c.l.b16 %v189
      %v487 = vunpack.c.l.b16 %v190
      %v488 = vunpack.c.l.b16 %v191
      %v489 = vunpack.c.l.b16 %v192
      %v490 = vunpack.c.l.b16 %v193
      %v491 = vunpack.c.l.b16 %v194
      %v492 = vunpack.c.l.b16 %v195
      %v493 = vunpack.c.l.b16 %v196
      %v494 = vunpack.c.l.b16 %v197
      %v495 = vunpack.c.l.b16 %v198
      %v496 = vunpack.c.l.b16 %v199
      %v497 = vunpack.c.l.b16 %v200
      %v498 = vunpack.c.l.b16 %v201
      %v499 = vunpack.c.l.b16 %v202
      %v500 = vunpack.c.l.b16 %v203
      %v501 = vunpack.c.l.b16 %v204
      %v502 = vunpack.c.l.b16 %v205
      %v503 = vunpack.c.l.b16 %v206
      %v504 = vunpack.c.l.b16 %v207
      %v505 = vunpack.c.l.b16 %v208
      %v506 = vunpack.c.l.b16 %v209
      %v507 = vunpack.c.l.b16 %v210
      %v508 = vunpack.c.l.b16 %v211
      %v509 = vunpack.c.l.b16 %v212
      %v510 = vunpack.c.l.b16 %v213
      %v511 = vunpack.c.l.b16 %v214
      %v512 = vunpack.c.l.b16 %v215
      %v513 = vunpack.c.l.b16 %v216
      %v514 = vunpack.c.l.b16 %v217
      %v515 = vunpack.c.l.b16 %v218
      %v516 = vunpack.c.l.b16 %v219
      %v517 = vunpack.c.l.b16 %v220
      %v518 = vunpack.c.l.b16 %v221
      %v519 = vunpack.c.l.b16 %v222
      %v520 = vunpack.c.l.b16 %v223
      %v521 = vunpack.c.l.b16 %v224
      %v522 = vunpack.c.l.b16 %v225
      %v523 = vunpack.c.l.b16 %v226
      %v524 = vunpack.c.l.b16 %v227
      %v525 = vunpack.c.l.b16 %v228
      %v526 = vunpack.c.l.b16 %v229
      %v527 = vunpack.c.l.b16 %v230
      %v528 = vunpack.c.l.b16 %v231
      %v529 = vunpack.c.l.b16 %v232
      %v530 = vunpack.c.l.b16 %v233
      %v531 = vunpack.c.l.b16 %v234
      %v532 = vunpack.c.l.b16 %v235
      %v533 = vunpack.c.l.b16 %v236
      %v534 = vunpack.c.l.b16 %v237
      %v535 = vunpack.c.l.b16 %v238
      %v536 = vunpack.c.l.b16 %v239
      %v537 = vunpack.c.l.b16 %v240
      %v538 = vunpack.c.l.b16 %v241
      %v539 = vunpack.c.l.b16 %v242
      %v540 = vunpack.c.l.b16 %v243
      %v541 = vunpack.c.l.b16 %v244
      %v542 = vunpack.c.l.b16 %v245
      %v543 = vunpack.c.l.b16 %v246
      %v544 = vunpack.c.l.b16 %v247
      %v545 = vunpack.c.l.b16 %v248
      %v546 = vunpack.c.l.b16 %v249
      %v547 = vunpack.c.l.b16 %v250
      %v548 = vunpack.c.l.b16 %v251
      %v549 = vunpack.c.l.b16 %v252
      %v550 = vunpack.c.l.b16 %v253
      %v551 = vunpack.c.l.b16 %v254
      %v552 = vunpack.c.l.b16 %v255
      %v553 = vunpack.c.l.b16 %v256
      %v554 = vunpack.c.l.b16 %v257
      %v555 = vunpack.c.l.b16 %v258
      %v556 = vunpack.c.l.b16 %v259
      %v557 = vunpack.c.l.b16 %v260
      %v558 = vunpack.c.l.b16 %v261
      %v559 = vunpack.c.l.b16 %v262
      %v560 = vunpack.c.l.b16 %v263
      %v561 = vunpack.c.l.b16 %v264
      %v562 = vunpack.c.l.b16 %v265
      %v563 = vunpack.c.l.b16 %v266
      %v564 = vunpack.c.l.b16 %v267
      %v565 = vunpack.c.l.b16 %v268
      %v566 = vunpack.c.l.b16 %v269
      %v567 = vunpack.c.l.b16 %v270
      %v568 = vunpack.c.l.b16 %v271
      %v569 = vunpack.c.l.b16 %v272
      %v570 = vunpack.c.l.b16 %v273
      %v571 = vunpack.c.l.b16 %v274
      %v572 = vunpack.c.l.b16 %v275
      %v573 = vunpack.c.l.b16 %v276
      %v574 = vunpack.c.l.b16 %v277
      %v575 = vunpack.c.l.b16 %v278
      %v576 = vunpack.c.l.b16 %v279
      %v577 = vunpack.c.l.b16 %v280
      %v578 = vunpack.c.l.b16 %v281
      %v579 = vunpack.c.l.b16 %v282
      %v580 = vunpack.c.l.b16 %v283
      %v581 = vunpack.c.l.b16 %v284
      %v582 = vunpack.c.l.b16 %v285
      %v583 = vunpack.c.l.b16 %v286
      %v584 = vunpack.c.l.b16 %v287
      %v585 = vunpack.c.l.b16 %v288
      %v586 = vunpack.c.l.b16 %v289
      %v587 = vunpack.c.l.b16 %v290
      %v588 = vunpack.c.l.b16 %v291
      %v589 = vunpack.c.l.b16 %v292
      %v590 = vunpack.c.l.b16 %v293
      %v591 = vunpack.c.l.b16 %v294
      %v592 = vunpack.c.l.b16 %v295
      %v593 = vunpack.c.l.b16 %v296
      %v594 = vunpack.c.l.b16 %v297
      %v595 = vunpack.c.l.b16 %v298
      %v596 = vunpack.c.l.b16 %v299
      %v597 = vunpack.c.l.b16 %v300
      %v598 = vunpack.c.l.b16 %v301
      %v599 = vunpack.c.l.b16 %v302
      %v600 = vunpack.c.l.b16 %v303
      %v601 = vunpack.c.l.b16 %v304
      %v602 = vunpack.c.l.b16 %v305
      %v603 = vunpack.c.l.b16 %v306
      %v604 = vunpack.c.l.b16 %v307
      %v605 = vunpack.c.l.b16 %v308
      %v606 = vunpack.c.l.b16 %v309
      %v607 = vunpack.c.l.b16 %v310
      %v608 = vunpack.c.l.b16 %v311
      %v609 = vpack.c.b16 %v473, %v472
      %v610 = vpack.c.b16 %v475, %v474
      %v611 = vpack.c.b16 %v477, %v476
      %v612 = vpack.c.b16 %v479, %v478
      %v613 = vpack.c.b16 %v481, %v480
      %v614 = vpack.c.b16 %v483, %v482
      %v615 = vpack.c.b16 %v485, %v484
      %v616 = vpack.c.b16 %v487, %v486
      %v617 = vpack.c.b16 %v489, %v488
      %v618 = vpack.c.b16 %v491, %v490
      %v619 = vpack.c.b16 %v493, %v492
      %v620 = vpack.c.b16 %v495, %v494
      %v621 = vpack.c.b16 %v497, %v496
      %v622 = vpack.c.b16 %v499, %v498
      %v623 = vpack.c.b16 %v501, %v500
      %v624 = vpack.c.b16 %v503, %v502
      %v625 = vpack.c.b16 %v505, %v504
      %v626 = vpack.c.b16 %v507, %v506
      %v627 = vpack.c.b16 %v509, %v508
      %v628 = vpack.c.b16 %v511, %v510
      %v629 = vpack.c.b16 %v513, %v512
      %v630 = vpack.c.b16 %v515, %v514
      %v631 = vpack.c.b16 %v517, %v516
      %v632 = vpack.c.b16 %v519, %v518
      %v633 = vpack.c.b16 %v521, %v520
      %v634 = vpack.c.b16 %v523, %v522
      %v635 = vpack.c.b16 %v525, %v524
      %v636 = vpack.c.b16 %v527, %v526
      %v637 = vpack.c.b16 %v529, %v528
      %v638 = vpack.c.b16 %v531, %v530
      %v639 = vpack.c.b16 %v533, %v532
      %v640 = vpack.c.b16 %v535, %v534
      %v641 = vpack.c.b16 %v537, %v536
      %v642 = vpack.c.b16 %v539, %v538
      %v643 = vpack.c.b16 %v541, %v540
      %v644 = vpack.c.b16 %v543, %v542
      %v645 = vpack.c.b16 %v545, %v544
      %v646 = vpack.c.b16 %v547, %v546
      %v647 = vpack.c.b16 %v549, %v548
      %v648 = vpack.c.b16 %v551, %v550
      %v649 = vpack.c.b16 %v553, %v552
      %v650 = vpack.c.b16 %v555, %v554
      %v651 = vpack.c.b16 %v557, %v556
      %v652 = vpack.c.b16 %v559, %v558
      %v653 = vpack.c.b16 %v561, %v560
      %v654 = vpack.c.b16 %v563, %v562
      %v655 = vpack.c.b16 %v565, %v564
      %v656 = vpack.c.b16 %v567, %v566
      %v657 = vpack.c.b16 %v569, %v568
      %v658 = vpack.c.b16 %v571, %v570
      %v659 = vpack.c.b16 %v573, %v572
      %v660 = vpack.c.b16 %v575, %v574
      %v661 = vpack.c.b16 %v577, %v576
      %v662 = vpack.c.b16 %v579, %v578
      %v663 = vpack.c.b16 %v581, %v580
      %v664 = vpack.c.b16 %v583, %v582
      %v665 = vpack.c.b16 %v585, %v584
      %v666 = vpack.c.b16 %v587, %v586
      %v667 = vpack.c.b16 %v589, %v588
      %v668 = vpack.c.b16 %v591, %v590
      %v669 = vpack.c.b16 %v593, %v592
      %v670 = vpack.c.b16 %v595, %v594
      %v671 = vpack.c.b16 %v597, %v596
      %v672 = vpack.c.b16 %v599, %v598
      %v673 = vpack.c.b16 %v601, %v600
      %v674 = vpack.c.b16 %v603, %v602
      %v675 = vpack.c.b16 %v605, %v604
      %v676 = vpack.c.b16 %v607, %v606
      %v677 = vpack.c.b16 %v608, %v608
      %v763 = vunpack.c.l.b16 %v312
      %v764 = vunpack.c.l.b16 %v313
      %v765 = vunpack.c.l.b16 %v314
      %v766 = vunpack.c.l.b16 %v315
      %v767 = vunpack.c.l.b16 %v316
      %v768 = vunpack.c.l.b16 %v317
      %v769 = vunpack.c.l.b16 %v318
      %v770 = vunpack.c.l.b16 %v319
      %v771 = vunpack.c.l.b16 %v320
      %v772 = vunpack.c.l.b16 %v321
      %v773 = vunpack.c.l.b16 %v322
      %v774 = vunpack.c.l.b16 %v323
      %v775 = vunpack.c.l.b16 %v324
      %v776 = vunpack.c.l.b16 %v325
      %v777 = vunpack.c.l.b16 %v326
      %v778 = vunpack.c.l.b16 %v327
      %v779 = vpack.c.b16 %v764, %v763
      %v780 = vpack.c.b16 %v766, %v765
      %v781 = vpack.c.b16 %v768, %v767
      %v782 = vpack.c.b16 %v770, %v769
      %v783 = vpack.c.b16 %v772, %v771
      %v784 = vpack.c.b16 %v774, %v773
      %v785 = vpack.c.b16 %v776, %v775
      %v786 = vpack.c.b16 %v778, %v777
      %795 = vmatprep.subr.bf16.mxu0 0
      %796 = vmatpush1.bf16.msra.mxu0 %v779
      %797 = vmatprep.subr.bf16.mxu0 0
      %798 = vmatpush1.bf16.msra.mxu0 %v780
      %799 = vmatprep.subr.bf16.mxu0 0
      %800 = vmatpush1.bf16.msra.mxu0 %v781
      %801 = vmatprep.subr.bf16.mxu0 0
      %802 = vmatpush1.bf16.msra.mxu0 %v782
      %803 = vmatprep.subr.bf16.mxu0 0
      %804 = vmatpush1.bf16.msra.mxu0 %v783
      %805 = vmatprep.subr.bf16.mxu0 0
      %806 = vmatpush1.bf16.msra.mxu0 %v784
      %807 = vmatprep.subr.bf16.mxu0 0
      %808 = vmatpush1.bf16.msra.mxu0 %v785
      %809 = vmatprep.subr.bf16.mxu0 0
      %810 = vmatpush1.bf16.msra.mxu0 %v786
      %811 = vmatprep.subr.bf16.mxu0 0
      %812 = vmatpush1.bf16.msra.mxu0 0
      %813 = vmatprep.subr.bf16.mxu0 0
      %814 = vmatpush1.bf16.msra.mxu0 0
      %815 = vmatprep.subr.bf16.mxu0 0
      %816 = vmatpush1.bf16.msra.mxu0 0
      %817 = vmatprep.subr.bf16.mxu0 0
      %818 = vmatpush1.bf16.msra.mxu0 0
      %819 = vmatprep.subr.bf16.mxu0 0
      %820 = vmatpush1.bf16.msra.mxu0 0
      %821 = vmatprep.subr.bf16.mxu0 0
      %822 = vmatpush1.bf16.msra.mxu0 0
      %823 = vmatprep.subr.bf16.mxu0 0
      %824 = vmatpush1.bf16.msra.mxu0 0
      %825 = vmatprep.subr.bf16.mxu0 0
      %826 = vmatpush1.bf16.msra.mxu0 0
      %827 = vmatprep.mubr.bf16.mxu0 0
      %828 = vmatmul.mubr.bf16.gmra.mrb[0].mxu0 %v609
      %v829 = vpop.f32.mrb[0].mxu0
      %v830 = vadd.f32 %v333, %v829
      %v831 = vpop.f32.mrb[0].mxu0
      %v832 = vpop.f32.mrb[0].mxu0
      %v833 = vadd.f32 %v333, %v832
      %v834 = vpop.f32.mrb[0].mxu0
      %835 = vmatprep.mubr.bf16.mxu0 0
      %836 = vmatmul.mubr.bf16.gmra.mrb[0].mxu0 %v610
      %v837 = vpop.f32.mrb[0].mxu0
      %v838 = vadd.f32 %v333, %v837
      %v839 = vpop.f32.mrb[0].mxu0
      %v840 = vpop.f32.mrb[0].mxu0
      %v841 = vadd.f32 %v333, %v840
      %v842 = vpop.f32.mrb[0].mxu0
      %843 = vmatprep.mubr.bf16.mxu0 0
      %844 = vmatmul.mubr.bf16.gmra.mrb[0].mxu0 %v611
      %v845 = vpop.f32.mrb[0].mxu0
      %v846 = vadd.f32 %v333, %v845
      %v847 = vpop.f32.mrb[0].mxu0
      %v848 = vpop.f32.mrb[0].mxu0
      %v849 = vadd.f32 %v333, %v848
      %v850 = vpop.f32.mrb[0].mxu0
      %851 = vmatprep.mubr.bf16.mxu0 0
      %852 = vmatmul.mubr.bf16.gmra.mrb[0].mxu0 %v612
      %v853 = vpop.f32.mrb[0].mxu0
      %v854 = vadd.f32 %v333, %v853
      %v855 = vpop.f32.mrb[0].mxu0
      %v856 = vpop.f32.mrb[0].mxu0
      %v857 = vadd.f32 %v333, %v856
      %v858 = vpop.f32.mrb[0].mxu0
      %859 = vmatprep.mubr.bf16.mxu0 0
      %860 = vmatmul.mubr.bf16.gmra.mrb[0].mxu0 %v613
      %v861 = vpop.f32.mrb[0].mxu0
      %v862 = vadd.f32 %v333, %v861
      %v863 = vpop.f32.mrb[0].mxu0
      %v864 = vpop.f32.mrb[0].mxu0
      %v865 = vadd.f32 %v333, %v864
      %v866 = vpop.f32.mrb[0].mxu0
      %867 = vmatprep.mubr.bf16.mxu0 0
      %868 = vmatmul.mubr.bf16.gmra.mrb[0].mxu0 %v614
      %v869 = vpop.f32.mrb[0].mxu0
      %v870 = vadd.f32 %v333, %v869
      %v871 = vpop.f32.mrb[0].mxu0
      %v872 = vpop.f32.mrb[0].mxu0
      %v873 = vadd.f32 %v333, %v872
      %v874 = vpop.f32.mrb[0].mxu0
      %875 = vmatprep.mubr.bf16.mxu0 0
      %876 = vmatmul.mubr.bf16.gmra.mrb[0].mxu0 %v615
      %v877 = vpop.f32.mrb[0].mxu0
      %v878 = vadd.f32 %v333, %v877
      %v879 = vpop.f32.mrb[0].mxu0
      %v880 = vpop.f32.mrb[0].mxu0
      %v881 = vadd.f32 %v333, %v880
      %v882 = vpop.f32.mrb[0].mxu0
      %883 = vmatprep.mubr.bf16.mxu0 0
      %884 = vmatmul.mubr.bf16.gmra.mrb[0].mxu0 %v616
      %v885 = vpop.f32.mrb[0].mxu0
      %v886 = vadd.f32 %v333, %v885
      %v887 = vpop.f32.mrb[0].mxu0
      %v888 = vpop.f32.mrb[0].mxu0
      %v889 = vadd.f32 %v333, %v888
      %v890 = vpop.f32.mrb[0].mxu0
      %891 = vmatprep.mubr.bf16.mxu0 0
      %892 = vmatmul.mubr.bf16.gmra.mrb[0].mxu0 %v617
      %v893 = vpop.f32.mrb[0].mxu0
      %v894 = vadd.f32 %v333, %v893
      %v895 = vpop.f32.mrb[0].mxu0
      %v896 = vpop.f32.mrb[0].mxu0
      %v897 = vadd.f32 %v333, %v896
      %v898 = vpop.f32.mrb[0].mxu0
      %899 = vmatprep.mubr.bf16.mxu0 0
      %900 = vmatmul.mubr.bf16.gmra.mrb[0].mxu0 %v618
      %v901 = vpop.f32.mrb[0].mxu0
      %v902 = vadd.f32 %v333, %v901
      %v903 = vpop.f32.mrb[0].mxu0
      %v904 = vpop.f32.mrb[0].mxu0
      %v905 = vadd.f32 %v333, %v904
      %v906 = vpop.f32.mrb[0].mxu0
      %907 = vmatprep.mubr.bf16.mxu0 0
      %908 = vmatmul.mubr.bf16.gmra.mrb[0].mxu0 %v619
      %v909 = vpop.f32.mrb[0].mxu0
      %v910 = vadd.f32 %v333, %v909
      %v911 = vpop.f32.mrb[0].mxu0
      %v912 = vpop.f32.mrb[0].mxu0
      %v913 = vadd.f32 %v333, %v912
      %v914 = vpop.f32.mrb[0].mxu0
      %915 = vmatprep.mubr.bf16.mxu0 0
      %916 = vmatmul.mubr.bf16.gmra.mrb[0].mxu0 %v620
      %v917 = vpop.f32.mrb[0].mxu0
      %v918 = vadd.f32 %v333, %v917
      %v919 = vpop.f32.mrb[0].mxu0
      %v920 = vpop.f32.mrb[0].mxu0
      %v921 = vadd.f32 %v333, %v920
      %v922 = vpop.f32.mrb[0].mxu0
      %923 = vmatprep.mubr.bf16.mxu0 0
      %924 = vmatmul.mubr.bf16.gmra.mrb[0].mxu0 %v621
      %v925 = vpop.f32.mrb[0].mxu0
      %v926 = vadd.f32 %v333, %v925
      %v927 = vpop.f32.mrb[0].mxu0
      %v928 = vpop.f32.mrb[0].mxu0
      %v929 = vadd.f32 %v333, %v928
      %v930 = vpop.f32.mrb[0].mxu0
      %931 = vmatprep.mubr.bf16.mxu0 0
      %932 = vmatmul.mubr.bf16.gmra.mrb[0].mxu0 %v622
      %v933 = vpop.f32.mrb[0].mxu0
      %v934 = vadd.f32 %v333, %v933
      %v935 = vpop.f32.mrb[0].mxu0
      %v936 = vpop.f32.mrb[0].mxu0
      %v937 = vadd.f32 %v333, %v936
      %v938 = vpop.f32.mrb[0].mxu0
      %939 = vmatprep.mubr.bf16.mxu0 0
      %940 = vmatmul.mubr.bf16.gmra.mrb[0].mxu0 %v623
      %v941 = vpop.f32.mrb[0].mxu0
      %v942 = vadd.f32 %v333, %v941
      %v943 = vpop.f32.mrb[0].mxu0
      %v944 = vpop.f32.mrb[0].mxu0
      %v945 = vadd.f32 %v333, %v944
      %v946 = vpop.f32.mrb[0].mxu0
      %947 = vmatprep.mubr.bf16.mxu0 0
      %948 = vmatmul.mubr.bf16.gmra.mrb[0].mxu0 %v624
      %v949 = vpop.f32.mrb[0].mxu0
      %v950 = vadd.f32 %v333, %v949
      %v951 = vpop.f32.mrb[0].mxu0
      %v952 = vpop.f32.mrb[0].mxu0
      %v953 = vadd.f32 %v333, %v952
      %v954 = vpop.f32.mrb[0].mxu0
      %955 = vmatprep.mubr.bf16.mxu0 0
      %956 = vmatmul.mubr.bf16.gmra.mrb[0].mxu0 %v625
      %v957 = vpop.f32.mrb[0].mxu0
      %v958 = vadd.f32 %v333, %v957
      %v959 = vpop.f32.mrb[0].mxu0
      %v960 = vpop.f32.mrb[0].mxu0
      %v961 = vadd.f32 %v333, %v960
      %v962 = vpop.f32.mrb[0].mxu0
      %963 = vmatprep.mubr.bf16.mxu0 0
      %964 = vmatmul.mubr.bf16.gmra.mrb[0].mxu0 %v626
      %v965 = vpop.f32.mrb[0].mxu0
      %v966 = vadd.f32 %v333, %v965
      %v967 = vpop.f32.mrb[0].mxu0
      %v968 = vpop.f32.mrb[0].mxu0
      %v969 = vadd.f32 %v333, %v968
      %v970 = vpop.f32.mrb[0].mxu0
      %971 = vmatprep.mubr.bf16.mxu0 0
      %972 = vmatmul.mubr.bf16.gmra.mrb[0].mxu0 %v627
      %v973 = vpop.f32.mrb[0].mxu0
      %v974 = vadd.f32 %v333, %v973
      %v975 = vpop.f32.mrb[0].mxu0
      %v976 = vpop.f32.mrb[0].mxu0
      %v977 = vadd.f32 %v333, %v976
      %v978 = vpop.f32.mrb[0].mxu0
      %979 = vmatprep.mubr.bf16.mxu0 0
      %980 = vmatmul.mubr.bf16.gmra.mrb[0].mxu0 %v628
      %v981 = vpop.f32.mrb[0].mxu0
      %v982 = vadd.f32 %v333, %v981
      %v983 = vpop.f32.mrb[0].mxu0
      %v984 = vpop.f32.mrb[0].mxu0
      %v985 = vadd.f32 %v333, %v984
      %v986 = vpop.f32.mrb[0].mxu0
      %987 = vmatprep.mubr.bf16.mxu0 0
      %988 = vmatmul.mubr.bf16.gmra.mrb[0].mxu0 %v629
      %v989 = vpop.f32.mrb[0].mxu0
      %v990 = vadd.f32 %v333, %v989
      %v991 = vpop.f32.mrb[0].mxu0
      %v992 = vpop.f32.mrb[0].mxu0
      %v993 = vadd.f32 %v333, %v992
      %v994 = vpop.f32.mrb[0].mxu0
      %995 = vmatprep.mubr.bf16.mxu0 0
      %996 = vmatmul.mubr.bf16.gmra.mrb[0].mxu0 %v630
      %v997 = vpop.f32.mrb[0].mxu0
      %v998 = vadd.f32 %v333, %v997
      %v999 = vpop.f32.mrb[0].mxu0
      %v1000 = vpop.f32.mrb[0].mxu0
      %v1001 = vadd.f32 %v333, %v1000
      %v1002 = vpop.f32.mrb[0].mxu0
      %1003 = vmatprep.mubr.bf16.mxu0 0
      %1004 = vmatmul.mubr.bf16.gmra.mrb[0].mxu0 %v631
      %v1005 = vpop.f32.mrb[0].mxu0
      %v1006 = vadd.f32 %v333, %v1005
      %v1007 = vpop.f32.mrb[0].mxu0
      %v1008 = vpop.f32.mrb[0].mxu0
      %v1009 = vadd.f32 %v333, %v1008
      %v1010 = vpop.f32.mrb[0].mxu0
      %1011 = vmatprep.mubr.bf16.mxu0 0
      %1012 = vmatmul.mubr.bf16.gmra.mrb[0].mxu0 %v632
      %v1013 = vpop.f32.mrb[0].mxu0
      %v1014 = vadd.f32 %v333, %v1013
      %v1015 = vpop.f32.mrb[0].mxu0
      %v1016 = vpop.f32.mrb[0].mxu0
      %v1017 = vadd.f32 %v333, %v1016
      %v1018 = vpop.f32.mrb[0].mxu0
      %1019 = vmatprep.mubr.bf16.mxu0 0
      %1020 = vmatmul.mubr.bf16.gmra.mrb[0].mxu0 %v633
      %v1021 = vpop.f32.mrb[0].mxu0
      %v1022 = vadd.f32 %v333, %v1021
      %v1023 = vpop.f32.mrb[0].mxu0
      %v1024 = vpop.f32.mrb[0].mxu0
      %v1025 = vadd.f32 %v333, %v1024
      %v1026 = vpop.f32.mrb[0].mxu0
      %1027 = vmatprep.mubr.bf16.mxu0 0
      %1028 = vmatmul.mubr.bf16.gmra.mrb[0].mxu0 %v634
      %v1029 = vpop.f32.mrb[0].mxu0
      %v1030 = vadd.f32 %v333, %v1029
      %v1031 = vpop.f32.mrb[0].mxu0
      %v1032 = vpop.f32.mrb[0].mxu0
      %v1033 = vadd.f32 %v333, %v1032
      %v1034 = vpop.f32.mrb[0].mxu0
      %1035 = vmatprep.mubr.bf16.mxu0 0
      %1036 = vmatmul.mubr.bf16.gmra.mrb[0].mxu0 %v635
      %v1037 = vpop.f32.mrb[0].mxu0
      %v1038 = vadd.f32 %v333, %v1037
      %v1039 = vpop.f32.mrb[0].mxu0
      %v1040 = vpop.f32.mrb[0].mxu0
      %v1041 = vadd.f32 %v333, %v1040
      %v1042 = vpop.f32.mrb[0].mxu0
      %1043 = vmatprep.mubr.bf16.mxu0 0
      %1044 = vmatmul.mubr.bf16.gmra.mrb[0].mxu0 %v636
      %v1045 = vpop.f32.mrb[0].mxu0
      %v1046 = vadd.f32 %v333, %v1045
      %v1047 = vpop.f32.mrb[0].mxu0
      %v1048 = vpop.f32.mrb[0].mxu0
      %v1049 = vadd.f32 %v333, %v1048
      %v1050 = vpop.f32.mrb[0].mxu0
      %1051 = vmatprep.mubr.bf16.mxu0 0
      %1052 = vmatmul.mubr.bf16.gmra.mrb[0].mxu0 %v637
      %v1053 = vpop.f32.mrb[0].mxu0
      %v1054 = vadd.f32 %v333, %v1053
      %v1055 = vpop.f32.mrb[0].mxu0
      %v1056 = vpop.f32.mrb[0].mxu0
      %v1057 = vadd.f32 %v333, %v1056
      %v1058 = vpop.f32.mrb[0].mxu0
      %1059 = vmatprep.mubr.bf16.mxu0 0
      %1060 = vmatmul.mubr.bf16.gmra.mrb[0].mxu0 %v638
      %v1061 = vpop.f32.mrb[0].mxu0
      %v1062 = vadd.f32 %v333, %v1061
      %v1063 = vpop.f32.mrb[0].mxu0
      %v1064 = vpop.f32.mrb[0].mxu0
      %v1065 = vadd.f32 %v333, %v1064
      %v1066 = vpop.f32.mrb[0].mxu0
      %1067 = vmatprep.mubr.bf16.mxu0 0
      %1068 = vmatmul.mubr.bf16.gmra.mrb[0].mxu0 %v639
      %v1069 = vpop.f32.mrb[0].mxu0
      %v1070 = vadd.f32 %v333, %v1069
      %v1071 = vpop.f32.mrb[0].mxu0
      %v1072 = vpop.f32.mrb[0].mxu0
      %v1073 = vadd.f32 %v333, %v1072
      %v1074 = vpop.f32.mrb[0].mxu0
      %1075 = vmatprep.mubr.bf16.mxu0 0
      %1076 = vmatmul.mubr.bf16.gmra.mrb[0].mxu0 %v640
      %v1077 = vpop.f32.mrb[0].mxu0
      %v1078 = vadd.f32 %v333, %v1077
      %v1079 = vpop.f32.mrb[0].mxu0
      %v1080 = vpop.f32.mrb[0].mxu0
      %v1081 = vadd.f32 %v333, %v1080
      %v1082 = vpop.f32.mrb[0].mxu0
      %1083 = vmatprep.mubr.bf16.mxu0 0
      %1084 = vmatmul.mubr.bf16.gmra.mrb[0].mxu0 %v641
      %v1085 = vpop.f32.mrb[0].mxu0
      %v1086 = vadd.f32 %v333, %v1085
      %v1087 = vpop.f32.mrb[0].mxu0
      %v1088 = vpop.f32.mrb[0].mxu0
      %v1089 = vadd.f32 %v333, %v1088
      %v1090 = vpop.f32.mrb[0].mxu0
      %1091 = vmatprep.mubr.bf16.mxu0 0
      %1092 = vmatmul.mubr.bf16.gmra.mrb[0].mxu0 %v642
      %v1093 = vpop.f32.mrb[0].mxu0
      %v1094 = vadd.f32 %v333, %v1093
      %v1095 = vpop.f32.mrb[0].mxu0
      %v1096 = vpop.f32.mrb[0].mxu0
      %v1097 = vadd.f32 %v333, %v1096
      %v1098 = vpop.f32.mrb[0].mxu0
      %1099 = vmatprep.mubr.bf16.mxu0 0
      %1100 = vmatmul.mubr.bf16.gmra.mrb[0].mxu0 %v643
      %v1101 = vpop.f32.mrb[0].mxu0
      %v1102 = vadd.f32 %v333, %v1101
      %v1103 = vpop.f32.mrb[0].mxu0
      %v1104 = vpop.f32.mrb[0].mxu0
      %v1105 = vadd.f32 %v333, %v1104
      %v1106 = vpop.f32.mrb[0].mxu0
      %1107 = vmatprep.mubr.bf16.mxu0 0
      %1108 = vmatmul.mubr.bf16.gmra.mrb[0].mxu0 %v644
      %v1109 = vpop.f32.mrb[0].mxu0
      %v1110 = vadd.f32 %v333, %v1109
      %v1111 = vpop.f32.mrb[0].mxu0
      %v1112 = vpop.f32.mrb[0].mxu0
      %v1113 = vadd.f32 %v333, %v1112
      %v1114 = vpop.f32.mrb[0].mxu0
      %1115 = vmatprep.mubr.bf16.mxu0 0
      %1116 = vmatmul.mubr.bf16.gmra.mrb[0].mxu0 %v645
      %v1117 = vpop.f32.mrb[0].mxu0
      %v1118 = vadd.f32 %v333, %v1117
      %v1119 = vpop.f32.mrb[0].mxu0
      %v1120 = vpop.f32.mrb[0].mxu0
      %v1121 = vadd.f32 %v333, %v1120
      %v1122 = vpop.f32.mrb[0].mxu0
      %1123 = vmatprep.mubr.bf16.mxu0 0
      %1124 = vmatmul.mubr.bf16.gmra.mrb[0].mxu0 %v646
      %v1125 = vpop.f32.mrb[0].mxu0
      %v1126 = vadd.f32 %v333, %v1125
      %v1127 = vpop.f32.mrb[0].mxu0
      %v1128 = vpop.f32.mrb[0].mxu0
      %v1129 = vadd.f32 %v333, %v1128
      %v1130 = vpop.f32.mrb[0].mxu0
      %1131 = vmatprep.mubr.bf16.mxu0 0
      %1132 = vmatmul.mubr.bf16.gmra.mrb[0].mxu0 %v647
      %v1133 = vpop.f32.mrb[0].mxu0
      %v1134 = vadd.f32 %v333, %v1133
      %v1135 = vpop.f32.mrb[0].mxu0
      %v1136 = vpop.f32.mrb[0].mxu0
      %v1137 = vadd.f32 %v333, %v1136
      %v1138 = vpop.f32.mrb[0].mxu0
      %1139 = vmatprep.mubr.bf16.mxu0 0
      %1140 = vmatmul.mubr.bf16.gmra.mrb[0].mxu0 %v648
      %v1141 = vpop.f32.mrb[0].mxu0
      %v1142 = vadd.f32 %v333, %v1141
      %v1143 = vpop.f32.mrb[0].mxu0
      %v1144 = vpop.f32.mrb[0].mxu0
      %v1145 = vadd.f32 %v333, %v1144
      %v1146 = vpop.f32.mrb[0].mxu0
      %1147 = vmatprep.mubr.bf16.mxu0 0
      %1148 = vmatmul.mubr.bf16.gmra.mrb[0].mxu0 %v649
      %v1149 = vpop.f32.mrb[0].mxu0
      %v1150 = vadd.f32 %v333, %v1149
      %v1151 = vpop.f32.mrb[0].mxu0
      %v1152 = vpop.f32.mrb[0].mxu0
      %v1153 = vadd.f32 %v333, %v1152
      %v1154 = vpop.f32.mrb[0].mxu0
      %1155 = vmatprep.mubr.bf16.mxu0 0
      %1156 = vmatmul.mubr.bf16.gmra.mrb[0].mxu0 %v650
      %v1157 = vpop.f32.mrb[0].mxu0
      %v1158 = vadd.f32 %v333, %v1157
      %v1159 = vpop.f32.mrb[0].mxu0
      %v1160 = vpop.f32.mrb[0].mxu0
      %v1161 = vadd.f32 %v333, %v1160
      %v1162 = vpop.f32.mrb[0].mxu0
      %1163 = vmatprep.mubr.bf16.mxu0 0
      %1164 = vmatmul.mubr.bf16.gmra.mrb[0].mxu0 %v651
      %v1165 = vpop.f32.mrb[0].mxu0
      %v1166 = vadd.f32 %v333, %v1165
      %v1167 = vpop.f32.mrb[0].mxu0
      %v1168 = vpop.f32.mrb[0].mxu0
      %v1169 = vadd.f32 %v333, %v1168
      %v1170 = vpop.f32.mrb[0].mxu0
      %1171 = vmatprep.mubr.bf16.mxu0 0
      %1172 = vmatmul.mubr.bf16.gmra.mrb[0].mxu0 %v652
      %v1173 = vpop.f32.mrb[0].mxu0
      %v1174 = vadd.f32 %v333, %v1173
      %v1175 = vpop.f32.mrb[0].mxu0
      %v1176 = vpop.f32.mrb[0].mxu0
      %v1177 = vadd.f32 %v333, %v1176
      %v1178 = vpop.f32.mrb[0].mxu0
      %1179 = vmatprep.mubr.bf16.mxu0 0
      %1180 = vmatmul.mubr.bf16.gmra.mrb[0].mxu0 %v653
      %v1181 = vpop.f32.mrb[0].mxu0
      %v1182 = vadd.f32 %v333, %v1181
      %v1183 = vpop.f32.mrb[0].mxu0
      %v1184 = vpop.f32.mrb[0].mxu0
      %v1185 = vadd.f32 %v333, %v1184
      %v1186 = vpop.f32.mrb[0].mxu0
      %1187 = vmatprep.mubr.bf16.mxu0 0
      %1188 = vmatmul.mubr.bf16.gmra.mrb[0].mxu0 %v654
      %v1189 = vpop.f32.mrb[0].mxu0
      %v1190 = vadd.f32 %v333, %v1189
      %v1191 = vpop.f32.mrb[0].mxu0
      %v1192 = vpop.f32.mrb[0].mxu0
      %v1193 = vadd.f32 %v333, %v1192
      %v1194 = vpop.f32.mrb[0].mxu0
      %1195 = vmatprep.mubr.bf16.mxu0 0
      %1196 = vmatmul.mubr.bf16.gmra.mrb[0].mxu0 %v655
      %v1197 = vpop.f32.mrb[0].mxu0
      %v1198 = vadd.f32 %v333, %v1197
      %v1199 = vpop.f32.mrb[0].mxu0
      %v1200 = vpop.f32.mrb[0].mxu0
      %v1201 = vadd.f32 %v333, %v1200
      %v1202 = vpop.f32.mrb[0].mxu0
      %1203 = vmatprep.mubr.bf16.mxu0 0
      %1204 = vmatmul.mubr.bf16.gmra.mrb[0].mxu0 %v656
      %v1205 = vpop.f32.mrb[0].mxu0
      %v1206 = vadd.f32 %v333, %v1205
      %v1207 = vpop.f32.mrb[0].mxu0
      %v1208 = vpop.f32.mrb[0].mxu0
      %v1209 = vadd.f32 %v333, %v1208
      %v1210 = vpop.f32.mrb[0].mxu0
      %1211 = vmatprep.mubr.bf16.mxu0 0
      %1212 = vmatmul.mubr.bf16.gmra.mrb[0].mxu0 %v657
      %v1213 = vpop.f32.mrb[0].mxu0
      %v1214 = vadd.f32 %v333, %v1213
      %v1215 = vpop.f32.mrb[0].mxu0
      %v1216 = vpop.f32.mrb[0].mxu0
      %v1217 = vadd.f32 %v333, %v1216
      %v1218 = vpop.f32.mrb[0].mxu0
      %1219 = vmatprep.mubr.bf16.mxu0 0
      %1220 = vmatmul.mubr.bf16.gmra.mrb[0].mxu0 %v658
      %v1221 = vpop.f32.mrb[0].mxu0
      %v1222 = vadd.f32 %v333, %v1221
      %v1223 = vpop.f32.mrb[0].mxu0
      %v1224 = vpop.f32.mrb[0].mxu0
      %v1225 = vadd.f32 %v333, %v1224
      %v1226 = vpop.f32.mrb[0].mxu0
      %1227 = vmatprep.mubr.bf16.mxu0 0
      %1228 = vmatmul.mubr.bf16.gmra.mrb[0].mxu0 %v659
      %v1229 = vpop.f32.mrb[0].mxu0
      %v1230 = vadd.f32 %v333, %v1229
      %v1231 = vpop.f32.mrb[0].mxu0
      %v1232 = vpop.f32.mrb[0].mxu0
      %v1233 = vadd.f32 %v333, %v1232
      %v1234 = vpop.f32.mrb[0].mxu0
      %1235 = vmatprep.mubr.bf16.mxu0 0
      %1236 = vmatmul.mubr.bf16.gmra.mrb[0].mxu0 %v660
      %v1237 = vpop.f32.mrb[0].mxu0
      %v1238 = vadd.f32 %v333, %v1237
      %v1239 = vpop.f32.mrb[0].mxu0
      %v1240 = vpop.f32.mrb[0].mxu0
      %v1241 = vadd.f32 %v333, %v1240
      %v1242 = vpop.f32.mrb[0].mxu0
      %1243 = vmatprep.mubr.bf16.mxu0 0
      %1244 = vmatmul.mubr.bf16.gmra.mrb[0].mxu0 %v661
      %v1245 = vpop.f32.mrb[0].mxu0
      %v1246 = vadd.f32 %v333, %v1245
      %v1247 = vpop.f32.mrb[0].mxu0
      %v1248 = vpop.f32.mrb[0].mxu0
      %v1249 = vadd.f32 %v333, %v1248
      %v1250 = vpop.f32.mrb[0].mxu0
      %1251 = vmatprep.mubr.bf16.mxu0 0
      %1252 = vmatmul.mubr.bf16.gmra.mrb[0].mxu0 %v662
      %v1253 = vpop.f32.mrb[0].mxu0
      %v1254 = vadd.f32 %v333, %v1253
      %v1255 = vpop.f32.mrb[0].mxu0
      %v1256 = vpop.f32.mrb[0].mxu0
      %v1257 = vadd.f32 %v333, %v1256
      %v1258 = vpop.f32.mrb[0].mxu0
      %1259 = vmatprep.mubr.bf16.mxu0 0
      %1260 = vmatmul.mubr.bf16.gmra.mrb[0].mxu0 %v663
      %v1261 = vpop.f32.mrb[0].mxu0
      %v1262 = vadd.f32 %v333, %v1261
      %v1263 = vpop.f32.mrb[0].mxu0
      %v1264 = vpop.f32.mrb[0].mxu0
      %v1265 = vadd.f32 %v333, %v1264
      %v1266 = vpop.f32.mrb[0].mxu0
      %1267 = vmatprep.mubr.bf16.mxu0 0
      %1268 = vmatmul.mubr.bf16.gmra.mrb[0].mxu0 %v664
      %v1269 = vpop.f32.mrb[0].mxu0
      %v1270 = vadd.f32 %v333, %v1269
      %v1271 = vpop.f32.mrb[0].mxu0
      %v1272 = vpop.f32.mrb[0].mxu0
      %v1273 = vadd.f32 %v333, %v1272
      %v1274 = vpop.f32.mrb[0].mxu0
      %1275 = vmatprep.mubr.bf16.mxu0 0
      %1276 = vmatmul.mubr.bf16.gmra.mrb[0].mxu0 %v665
      %v1277 = vpop.f32.mrb[0].mxu0
      %v1278 = vadd.f32 %v333, %v1277
      %v1279 = vpop.f32.mrb[0].mxu0
      %v1280 = vpop.f32.mrb[0].mxu0
      %v1281 = vadd.f32 %v333, %v1280
      %v1282 = vpop.f32.mrb[0].mxu0
      %1283 = vmatprep.mubr.bf16.mxu0 0
      %1284 = vmatmul.mubr.bf16.gmra.mrb[0].mxu0 %v666
      %v1285 = vpop.f32.mrb[0].mxu0
      %v1286 = vadd.f32 %v333, %v1285
      %v1287 = vpop.f32.mrb[0].mxu0
      %v1288 = vpop.f32.mrb[0].mxu0
      %v1289 = vadd.f32 %v333, %v1288
      %v1290 = vpop.f32.mrb[0].mxu0
      %1291 = vmatprep.mubr.bf16.mxu0 0
      %1292 = vmatmul.mubr.bf16.gmra.mrb[0].mxu0 %v667
      %v1293 = vpop.f32.mrb[0].mxu0
      %v1294 = vadd.f32 %v333, %v1293
      %v1295 = vpop.f32.mrb[0].mxu0
      %v1296 = vpop.f32.mrb[0].mxu0
      %v1297 = vadd.f32 %v333, %v1296
      %v1298 = vpop.f32.mrb[0].mxu0
      %1299 = vmatprep.mubr.bf16.mxu0 0
      %1300 = vmatmul.mubr.bf16.gmra.mrb[0].mxu0 %v668
      %v1301 = vpop.f32.mrb[0].mxu0
      %v1302 = vadd.f32 %v333, %v1301
      %v1303 = vpop.f32.mrb[0].mxu0
      %v1304 = vpop.f32.mrb[0].mxu0
      %v1305 = vadd.f32 %v333, %v1304
      %v1306 = vpop.f32.mrb[0].mxu0
      %1307 = vmatprep.mubr.bf16.mxu0 0
      %1308 = vmatmul.mubr.bf16.gmra.mrb[0].mxu0 %v669
      %v1309 = vpop.f32.mrb[0].mxu0
      %v1310 = vadd.f32 %v333, %v1309
      %v1311 = vpop.f32.mrb[0].mxu0
      %v1312 = vpop.f32.mrb[0].mxu0
      %v1313 = vadd.f32 %v333, %v1312
      %v1314 = vpop.f32.mrb[0].mxu0
      %1315 = vmatprep.mubr.bf16.mxu0 0
      %1316 = vmatmul.mubr.bf16.gmra.mrb[0].mxu0 %v670
      %v1317 = vpop.f32.mrb[0].mxu0
      %v1318 = vadd.f32 %v333, %v1317
      %v1319 = vpop.f32.mrb[0].mxu0
      %v1320 = vpop.f32.mrb[0].mxu0
      %v1321 = vadd.f32 %v333, %v1320
      %v1322 = vpop.f32.mrb[0].mxu0
      %1323 = vmatprep.mubr.bf16.mxu0 0
      %1324 = vmatmul.mubr.bf16.gmra.mrb[0].mxu0 %v671
      %v1325 = vpop.f32.mrb[0].mxu0
      %v1326 = vadd.f32 %v333, %v1325
      %v1327 = vpop.f32.mrb[0].mxu0
      %v1328 = vpop.f32.mrb[0].mxu0
      %v1329 = vadd.f32 %v333, %v1328
      %v1330 = vpop.f32.mrb[0].mxu0
      %1331 = vmatprep.mubr.bf16.mxu0 0
      %1332 = vmatmul.mubr.bf16.gmra.mrb[0].mxu0 %v672
      %v1333 = vpop.f32.mrb[0].mxu0
      %v1334 = vadd.f32 %v333, %v1333
      %v1335 = vpop.f32.mrb[0].mxu0
      %v1336 = vpop.f32.mrb[0].mxu0
      %v1337 = vadd.f32 %v333, %v1336
      %v1338 = vpop.f32.mrb[0].mxu0
      %1339 = vmatprep.mubr.bf16.mxu0 0
      %1340 = vmatmul.mubr.bf16.gmra.mrb[0].mxu0 %v673
      %v1341 = vpop.f32.mrb[0].mxu0
      %v1342 = vadd.f32 %v333, %v1341
      %v1343 = vpop.f32.mrb[0].mxu0
      %v1344 = vpop.f32.mrb[0].mxu0
      %v1345 = vadd.f32 %v333, %v1344
      %v1346 = vpop.f32.mrb[0].mxu0
      %1347 = vmatprep.mubr.bf16.mxu0 0
      %1348 = vmatmul.mubr.bf16.gmra.mrb[0].mxu0 %v674
      %v1349 = vpop.f32.mrb[0].mxu0
      %v1350 = vadd.f32 %v333, %v1349
      %v1351 = vpop.f32.mrb[0].mxu0
      %v1352 = vpop.f32.mrb[0].mxu0
      %v1353 = vadd.f32 %v333, %v1352
      %v1354 = vpop.f32.mrb[0].mxu0
      %1355 = vmatprep.mubr.bf16.mxu0 0
      %1356 = vmatmul.mubr.bf16.gmra.mrb[0].mxu0 %v675
      %v1357 = vpop.f32.mrb[0].mxu0
      %v1358 = vadd.f32 %v333, %v1357
      %v1359 = vpop.f32.mrb[0].mxu0
      %v1360 = vpop.f32.mrb[0].mxu0
      %v1361 = vadd.f32 %v333, %v1360
      %v1362 = vpop.f32.mrb[0].mxu0
      %1363 = vmatprep.mubr.bf16.mxu0 0
      %1364 = vmatmul.mubr.bf16.gmra.mrb[0].mxu0 %v676
      %v1365 = vpop.f32.mrb[0].mxu0
      %v1366 = vadd.f32 %v333, %v1365
      %v1367 = vpop.f32.mrb[0].mxu0
      %v1368 = vpop.f32.mrb[0].mxu0
      %v1369 = vadd.f32 %v333, %v1368
      %v1370 = vpop.f32.mrb[0].mxu0
      %1371 = vmatprep.mubr.bf16.mxu0 0
      %1372 = vmatmul.mubr.bf16.gmra.mrb[0].mxu0 %v677
      %v1373 = vpop.f32.mrb[0].mxu0
      %v1374 = vadd.f32 %v333, %v1373
      %v1375 = vpop.f32.mrb[0].mxu0
      %v1376 = vpop.f32.mrb[0].mxu0
      %v1377 = vpop.f32.mrb[0].mxu0
      %1378 = vdwg.mxu0
      %v1379 = vsub.f32 0.0, %v830
      %v1380 = vsub.f32 0.0, %v833
      %v1381 = vsub.f32 0.0, %v838
      %v1382 = vsub.f32 0.0, %v841
      %v1383 = vsub.f32 0.0, %v846
      %v1384 = vsub.f32 0.0, %v849
      %v1385 = vsub.f32 0.0, %v854
      %v1386 = vsub.f32 0.0, %v857
      %v1387 = vsub.f32 0.0, %v862
      %v1388 = vsub.f32 0.0, %v865
      %v1389 = vsub.f32 0.0, %v870
      %v1390 = vsub.f32 0.0, %v873
      %v1391 = vsub.f32 0.0, %v878
      %v1392 = vsub.f32 0.0, %v881
      %v1393 = vsub.f32 0.0, %v886
      %v1394 = vsub.f32 0.0, %v889
      %v1395 = vsub.f32 0.0, %v894
      %v1396 = vsub.f32 0.0, %v897
      %v1397 = vsub.f32 0.0, %v902
      %v1398 = vsub.f32 0.0, %v905
      %v1399 = vsub.f32 0.0, %v910
      %v1400 = vsub.f32 0.0, %v913
      %v1401 = vsub.f32 0.0, %v918
      %v1402 = vsub.f32 0.0, %v921
      %v1403 = vsub.f32 0.0, %v926
      %v1404 = vsub.f32 0.0, %v929
      %v1405 = vsub.f32 0.0, %v934
      %v1406 = vsub.f32 0.0, %v937
      %v1407 = vsub.f32 0.0, %v942
      %v1408 = vsub.f32 0.0, %v945
      %v1409 = vsub.f32 0.0, %v950
      %v1410 = vsub.f32 0.0, %v953
      %v1411 = vsub.f32 0.0, %v958
      %v1412 = vsub.f32 0.0, %v961
      %v1413 = vsub.f32 0.0, %v966
      %v1414 = vsub.f32 0.0, %v969
      %v1415 = vsub.f32 0.0, %v974
      %v1416 = vsub.f32 0.0, %v977
      %v1417 = vsub.f32 0.0, %v982
      %v1418 = vsub.f32 0.0, %v985
      %v1419 = vsub.f32 0.0, %v990
      %v1420 = vsub.f32 0.0, %v993
      %v1421 = vsub.f32 0.0, %v998
      %v1422 = vsub.f32 0.0, %v1001
      %v1423 = vsub.f32 0.0, %v1006
      %v1424 = vsub.f32 0.0, %v1009
      %v1425 = vsub.f32 0.0, %v1014
      %v1426 = vsub.f32 0.0, %v1017
      %v1427 = vsub.f32 0.0, %v1022
      %v1428 = vsub.f32 0.0, %v1025
      %v1429 = vsub.f32 0.0, %v1030
      %v1430 = vsub.f32 0.0, %v1033
      %v1431 = vsub.f32 0.0, %v1038
      %v1432 = vsub.f32 0.0, %v1041
      %v1433 = vsub.f32 0.0, %v1046
      %v1434 = vsub.f32 0.0, %v1049
      %v1435 = vsub.f32 0.0, %v1054
      %v1436 = vsub.f32 0.0, %v1057
      %v1437 = vsub.f32 0.0, %v1062
      %v1438 = vsub.f32 0.0, %v1065
      %v1439 = vsub.f32 0.0, %v1070
      %v1440 = vsub.f32 0.0, %v1073
      %v1441 = vsub.f32 0.0, %v1078
      %v1442 = vsub.f32 0.0, %v1081
      %v1443 = vsub.f32 0.0, %v1086
      %v1444 = vsub.f32 0.0, %v1089
      %v1445 = vsub.f32 0.0, %v1094
      %v1446 = vsub.f32 0.0, %v1097
      %v1447 = vsub.f32 0.0, %v1102
      %v1448 = vsub.f32 0.0, %v1105
      %v1449 = vsub.f32 0.0, %v1110
      %v1450 = vsub.f32 0.0, %v1113
      %v1451 = vsub.f32 0.0, %v1118
      %v1452 = vsub.f32 0.0, %v1121
      %v1453 = vsub.f32 0.0, %v1126
      %v1454 = vsub.f32 0.0, %v1129
      %v1455 = vsub.f32 0.0, %v1134
      %v1456 = vsub.f32 0.0, %v1137
      %v1457 = vsub.f32 0.0, %v1142
      %v1458 = vsub.f32 0.0, %v1145
      %v1459 = vsub.f32 0.0, %v1150
      %v1460 = vsub.f32 0.0, %v1153
      %v1461 = vsub.f32 0.0, %v1158
      %v1462 = vsub.f32 0.0, %v1161
      %v1463 = vsub.f32 0.0, %v1166
      %v1464 = vsub.f32 0.0, %v1169
      %v1465 = vsub.f32 0.0, %v1174
      %v1466 = vsub.f32 0.0, %v1177
      %v1467 = vsub.f32 0.0, %v1182
      %v1468 = vsub.f32 0.0, %v1185
      %v1469 = vsub.f32 0.0, %v1190
      %v1470 = vsub.f32 0.0, %v1193
      %v1471 = vsub.f32 0.0, %v1198
      %v1472 = vsub.f32 0.0, %v1201
      %v1473 = vsub.f32 0.0, %v1206
      %v1474 = vsub.f32 0.0, %v1209
      %v1475 = vsub.f32 0.0, %v1214
      %v1476 = vsub.f32 0.0, %v1217
      %v1477 = vsub.f32 0.0, %v1222
      %v1478 = vsub.f32 0.0, %v1225
      %v1479 = vsub.f32 0.0, %v1230
      %v1480 = vsub.f32 0.0, %v1233
      %v1481 = vsub.f32 0.0, %v1238
      %v1482 = vsub.f32 0.0, %v1241
      %v1483 = vsub.f32 0.0, %v1246
      %v1484 = vsub.f32 0.0, %v1249
      %v1485 = vsub.f32 0.0, %v1254
      %v1486 = vsub.f32 0.0, %v1257
      %v1487 = vsub.f32 0.0, %v1262
      %v1488 = vsub.f32 0.0, %v1265
      %v1489 = vsub.f32 0.0, %v1270
      %v1490 = vsub.f32 0.0, %v1273
      %v1491 = vsub.f32 0.0, %v1278
      %v1492 = vsub.f32 0.0, %v1281
      %v1493 = vsub.f32 0.0, %v1286
      %v1494 = vsub.f32 0.0, %v1289
      %v1495 = vsub.f32 0.0, %v1294
      %v1496 = vsub.f32 0.0, %v1297
      %v1497 = vsub.f32 0.0, %v1302
      %v1498 = vsub.f32 0.0, %v1305
      %v1499 = vsub.f32 0.0, %v1310
      %v1500 = vsub.f32 0.0, %v1313
      %v1501 = vsub.f32 0.0, %v1318
      %v1502 = vsub.f32 0.0, %v1321
      %v1503 = vsub.f32 0.0, %v1326
      %v1504 = vsub.f32 0.0, %v1329
      %v1505 = vsub.f32 0.0, %v1334
      %v1506 = vsub.f32 0.0, %v1337
      %v1507 = vsub.f32 0.0, %v1342
      %v1508 = vsub.f32 0.0, %v1345
      %v1509 = vsub.f32 0.0, %v1350
      %v1510 = vsub.f32 0.0, %v1353
      %v1511 = vsub.f32 0.0, %v1358
      %v1512 = vsub.f32 0.0, %v1361
      %v1513 = vsub.f32 0.0, %v1366
      %v1514 = vsub.f32 0.0, %v1369
      %v1515 = vsub.f32 0.0, %v1374
      %v1516 = vmul.f32 %v1379, 1.442695
      %v1517 = vpow.pop %v1516
      %v1518 = vmul.f32 %v1380, 1.442695
      %v1519 = vpow.pop %v1518
      %v1520 = vmul.f32 %v1381, 1.442695
      %v1521 = vpow.pop %v1520
      %v1522 = vmul.f32 %v1382, 1.442695
      %v1523 = vpow.pop %v1522
      %v1524 = vmul.f32 %v1383, 1.442695
      %v1525 = vpow.pop %v1524
      %v1526 = vmul.f32 %v1384, 1.442695
      %v1527 = vpow.pop %v1526
      %v1528 = vmul.f32 %v1385, 1.442695
      %v1529 = vpow.pop %v1528
      %v1530 = vmul.f32 %v1386, 1.442695
      %v1531 = vpow.pop %v1530
      %v1532 = vmul.f32 %v1387, 1.442695
      %v1533 = vpow.pop %v1532
      %v1534 = vmul.f32 %v1388, 1.442695
      %v1535 = vpow.pop %v1534
      %v1536 = vmul.f32 %v1389, 1.442695
      %v1537 = vpow.pop %v1536
      %v1538 = vmul.f32 %v1390, 1.442695
      %v1539 = vpow.pop %v1538
      %v1540 = vmul.f32 %v1391, 1.442695
      %v1541 = vpow.pop %v1540
      %v1542 = vmul.f32 %v1392, 1.442695
      %v1543 = vpow.pop %v1542
      %v1544 = vmul.f32 %v1393, 1.442695
      %v1545 = vpow.pop %v1544
      %v1546 = vmul.f32 %v1394, 1.442695
      %v1547 = vpow.pop %v1546
      %v1548 = vmul.f32 %v1395, 1.442695
      %v1549 = vpow.pop %v1548
      %v1550 = vmul.f32 %v1396, 1.442695
      %v1551 = vpow.pop %v1550
      %v1552 = vmul.f32 %v1397, 1.442695
      %v1553 = vpow.pop %v1552
      %v1554 = vmul.f32 %v1398, 1.442695
      %v1555 = vpow.pop %v1554
      %v1556 = vmul.f32 %v1399, 1.442695
      %v1557 = vpow.pop %v1556
      %v1558 = vmul.f32 %v1400, 1.442695
      %v1559 = vpow.pop %v1558
      %v1560 = vmul.f32 %v1401, 1.442695
      %v1561 = vpow.pop %v1560
      %v1562 = vmul.f32 %v1402, 1.442695
      %v1563 = vpow.pop %v1562
      %v1564 = vmul.f32 %v1403, 1.442695
      %v1565 = vpow.pop %v1564
      %v1566 = vmul.f32 %v1404, 1.442695
      %v1567 = vpow.pop %v1566
      %v1568 = vmul.f32 %v1405, 1.442695
      %v1569 = vpow.pop %v1568
      %v1570 = vmul.f32 %v1406, 1.442695
      %v1571 = vpow.pop %v1570
      %v1572 = vmul.f32 %v1407, 1.442695
      %v1573 = vpow.pop %v1572
      %v1574 = vmul.f32 %v1408, 1.442695
      %v1575 = vpow.pop %v1574
      %v1576 = vmul.f32 %v1409, 1.442695
      %v1577 = vpow.pop %v1576
      %v1578 = vmul.f32 %v1410, 1.442695
      %v1579 = vpow.pop %v1578
      %v1580 = vmul.f32 %v1411, 1.442695
      %v1581 = vpow.pop %v1580
      %v1582 = vmul.f32 %v1412, 1.442695
      %v1583 = vpow.pop %v1582
      %v1584 = vmul.f32 %v1413, 1.442695
      %v1585 = vpow.pop %v1584
      %v1586 = vmul.f32 %v1414, 1.442695
      %v1587 = vpow.pop %v1586
      %v1588 = vmul.f32 %v1415, 1.442695
      %v1589 = vpow.pop %v1588
      %v1590 = vmul.f32 %v1416, 1.442695
      %v1591 = vpow.pop %v1590
      %v1592 = vmul.f32 %v1417, 1.442695
      %v1593 = vpow.pop %v1592
      %v1594 = vmul.f32 %v1418, 1.442695
      %v1595 = vpow.pop %v1594
      %v1596 = vmul.f32 %v1419, 1.442695
      %v1597 = vpow.pop %v1596
      %v1598 = vmul.f32 %v1420, 1.442695
      %v1599 = vpow.pop %v1598
      %v1600 = vmul.f32 %v1421, 1.442695
      %v1601 = vpow.pop %v1600
      %v1602 = vmul.f32 %v1422, 1.442695
      %v1603 = vpow.pop %v1602
      %v1604 = vmul.f32 %v1423, 1.442695
      %v1605 = vpow.pop %v1604
      %v1606 = vmul.f32 %v1424, 1.442695
      %v1607 = vpow.pop %v1606
      %v1608 = vmul.f32 %v1425, 1.442695
      %v1609 = vpow.pop %v1608
      %v1610 = vmul.f32 %v1426, 1.442695
      %v1611 = vpow.pop %v1610
      %v1612 = vmul.f32 %v1427, 1.442695
      %v1613 = vpow.pop %v1612
      %v1614 = vmul.f32 %v1428, 1.442695
      %v1615 = vpow.pop %v1614
      %v1616 = vmul.f32 %v1429, 1.442695
      %v1617 = vpow.pop %v1616
      %v1618 = vmul.f32 %v1430, 1.442695
      %v1619 = vpow.pop %v1618
      %v1620 = vmul.f32 %v1431, 1.442695
      %v1621 = vpow.pop %v1620
      %v1622 = vmul.f32 %v1432, 1.442695
      %v1623 = vpow.pop %v1622
      %v1624 = vmul.f32 %v1433, 1.442695
      %v1625 = vpow.pop %v1624
      %v1626 = vmul.f32 %v1434, 1.442695
      %v1627 = vpow.pop %v1626
      %v1628 = vmul.f32 %v1435, 1.442695
      %v1629 = vpow.pop %v1628
      %v1630 = vmul.f32 %v1436, 1.442695
      %v1631 = vpow.pop %v1630
      %v1632 = vmul.f32 %v1437, 1.442695
      %v1633 = vpow.pop %v1632
      %v1634 = vmul.f32 %v1438, 1.442695
      %v1635 = vpow.pop %v1634
      %v1636 = vmul.f32 %v1439, 1.442695
      %v1637 = vpow.pop %v1636
      %v1638 = vmul.f32 %v1440, 1.442695
      %v1639 = vpow.pop %v1638
      %v1640 = vmul.f32 %v1441, 1.442695
      %v1641 = vpow.pop %v1640
      %v1642 = vmul.f32 %v1442, 1.442695
      %v1643 = vpow.pop %v1642
      %v1644 = vmul.f32 %v1443, 1.442695
      %v1645 = vpow.pop %v1644
      %v1646 = vmul.f32 %v1444, 1.442695
      %v1647 = vpow.pop %v1646
      %v1648 = vmul.f32 %v1445, 1.442695
      %v1649 = vpow.pop %v1648
      %v1650 = vmul.f32 %v1446, 1.442695
      %v1651 = vpow.pop %v1650
      %v1652 = vmul.f32 %v1447, 1.442695
      %v1653 = vpow.pop %v1652
      %v1654 = vmul.f32 %v1448, 1.442695
      %v1655 = vpow.pop %v1654
      %v1656 = vmul.f32 %v1449, 1.442695
      %v1657 = vpow.pop %v1656
      %v1658 = vmul.f32 %v1450, 1.442695
      %v1659 = vpow.pop %v1658
      %v1660 = vmul.f32 %v1451, 1.442695
      %v1661 = vpow.pop %v1660
      %v1662 = vmul.f32 %v1452, 1.442695
      %v1663 = vpow.pop %v1662
      %v1664 = vmul.f32 %v1453, 1.442695
      %v1665 = vpow.pop %v1664
      %v1666 = vmul.f32 %v1454, 1.442695
      %v1667 = vpow.pop %v1666
      %v1668 = vmul.f32 %v1455, 1.442695
      %v1669 = vpow.pop %v1668
      %v1670 = vmul.f32 %v1456, 1.442695
      %v1671 = vpow.pop %v1670
      %v1672 = vmul.f32 %v1457, 1.442695
      %v1673 = vpow.pop %v1672
      %v1674 = vmul.f32 %v1458, 1.442695
      %v1675 = vpow.pop %v1674
      %v1676 = vmul.f32 %v1459, 1.442695
      %v1677 = vpow.pop %v1676
      %v1678 = vmul.f32 %v1460, 1.442695
      %v1679 = vpow.pop %v1678
      %v1680 = vmul.f32 %v1461, 1.442695
      %v1681 = vpow.pop %v1680
      %v1682 = vmul.f32 %v1462, 1.442695
      %v1683 = vpow.pop %v1682
      %v1684 = vmul.f32 %v1463, 1.442695
      %v1685 = vpow.pop %v1684
      %v1686 = vmul.f32 %v1464, 1.442695
      %v1687 = vpow.pop %v1686
      %v1688 = vmul.f32 %v1465, 1.442695
      %v1689 = vpow.pop %v1688
      %v1690 = vmul.f32 %v1466, 1.442695
      %v1691 = vpow.pop %v1690
      %v1692 = vmul.f32 %v1467, 1.442695
      %v1693 = vpow.pop %v1692
      %v1694 = vmul.f32 %v1468, 1.442695
      %v1695 = vpow.pop %v1694
      %v1696 = vmul.f32 %v1469, 1.442695
      %v1697 = vpow.pop %v1696
      %v1698 = vmul.f32 %v1470, 1.442695
      %v1699 = vpow.pop %v1698
      %v1700 = vmul.f32 %v1471, 1.442695
      %v1701 = vpow.pop %v1700
      %v1702 = vmul.f32 %v1472, 1.442695
      %v1703 = vpow.pop %v1702
      %v1704 = vmul.f32 %v1473, 1.442695
      %v1705 = vpow.pop %v1704
      %v1706 = vmul.f32 %v1474, 1.442695
      %v1707 = vpow.pop %v1706
      %v1708 = vmul.f32 %v1475, 1.442695
      %v1709 = vpow.pop %v1708
      %v1710 = vmul.f32 %v1476, 1.442695
      %v1711 = vpow.pop %v1710
      %v1712 = vmul.f32 %v1477, 1.442695
      %v1713 = vpow.pop %v1712
      %v1714 = vmul.f32 %v1478, 1.442695
      %v1715 = vpow.pop %v1714
      %v1716 = vmul.f32 %v1479, 1.442695
      %v1717 = vpow.pop %v1716
      %v1718 = vmul.f32 %v1480, 1.442695
      %v1719 = vpow.pop %v1718
      %v1720 = vmul.f32 %v1481, 1.442695
      %v1721 = vpow.pop %v1720
      %v1722 = vmul.f32 %v1482, 1.442695
      %v1723 = vpow.pop %v1722
      %v1724 = vmul.f32 %v1483, 1.442695
      %v1725 = vpow.pop %v1724
      %v1726 = vmul.f32 %v1484, 1.442695
      %v1727 = vpow.pop %v1726
      %v1728 = vmul.f32 %v1485, 1.442695
      %v1729 = vpow.pop %v1728
      %v1730 = vmul.f32 %v1486, 1.442695
      %v1731 = vpow.pop %v1730
      %v1732 = vmul.f32 %v1487, 1.442695
      %v1733 = vpow.pop %v1732
      %v1734 = vmul.f32 %v1488, 1.442695
      %v1735 = vpow.pop %v1734
      %v1736 = vmul.f32 %v1489, 1.442695
      %v1737 = vpow.pop %v1736
      %v1738 = vmul.f32 %v1490, 1.442695
      %v1739 = vpow.pop %v1738
      %v1740 = vmul.f32 %v1491, 1.442695
      %v1741 = vpow.pop %v1740
      %v1742 = vmul.f32 %v1492, 1.442695
      %v1743 = vpow.pop %v1742
      %v1744 = vmul.f32 %v1493, 1.442695
      %v1745 = vpow.pop %v1744
      %v1746 = vmul.f32 %v1494, 1.442695
      %v1747 = vpow.pop %v1746
      %v1748 = vmul.f32 %v1495, 1.442695
      %v1749 = vpow.pop %v1748
      %v1750 = vmul.f32 %v1496, 1.442695
      %v1751 = vpow.pop %v1750
      %v1752 = vmul.f32 %v1497, 1.442695
      %v1753 = vpow.pop %v1752
      %v1754 = vmul.f32 %v1498, 1.442695
      %v1755 = vpow.pop %v1754
      %v1756 = vmul.f32 %v1499, 1.442695
      %v1757 = vpow.pop %v1756
      %v1758 = vmul.f32 %v1500, 1.442695
      %v1759 = vpow.pop %v1758
      %v1760 = vmul.f32 %v1501, 1.442695
      %v1761 = vpow.pop %v1760
      %v1762 = vmul.f32 %v1502, 1.442695
      %v1763 = vpow.pop %v1762
      %v1764 = vmul.f32 %v1503, 1.442695
      %v1765 = vpow.pop %v1764
      %v1766 = vmul.f32 %v1504, 1.442695
      %v1767 = vpow.pop %v1766
      %v1768 = vmul.f32 %v1505, 1.442695
      %v1769 = vpow.pop %v1768
      %v1770 = vmul.f32 %v1506, 1.442695
      %v1771 = vpow.pop %v1770
      %v1772 = vmul.f32 %v1507, 1.442695
      %v1773 = vpow.pop %v1772
      %v1774 = vmul.f32 %v1508, 1.442695
      %v1775 = vpow.pop %v1774
      %v1776 = vmul.f32 %v1509, 1.442695
      %v1777 = vpow.pop %v1776
      %v1778 = vmul.f32 %v1510, 1.442695
      %v1779 = vpow.pop %v1778
      %v1780 = vmul.f32 %v1511, 1.442695
      %v1781 = vpow.pop %v1780
      %v1782 = vmul.f32 %v1512, 1.442695
      %v1783 = vpow.pop %v1782
      %v1784 = vmul.f32 %v1513, 1.442695
      %v1785 = vpow.pop %v1784
      %v1786 = vmul.f32 %v1514, 1.442695
      %v1787 = vpow.pop %v1786
      %v1788 = vmul.f32 %v1515, 1.442695
      %v1789 = vpow.pop %v1788
      %v1790 = vadd.f32 %v1517, 1.0
      %v1791 = vadd.f32 %v1519, 1.0
      %v1792 = vadd.f32 %v1521, 1.0
      %v1793 = vadd.f32 %v1523, 1.0
      %v1794 = vadd.f32 %v1525, 1.0
      %v1795 = vadd.f32 %v1527, 1.0
      %v1796 = vadd.f32 %v1529, 1.0
      %v1797 = vadd.f32 %v1531, 1.0
      %v1798 = vadd.f32 %v1533, 1.0
      %v1799 = vadd.f32 %v1535, 1.0
      %v1800 = vadd.f32 %v1537, 1.0
      %v1801 = vadd.f32 %v1539, 1.0
      %v1802 = vadd.f32 %v1541, 1.0
      %v1803 = vadd.f32 %v1543, 1.0
      %v1804 = vadd.f32 %v1545, 1.0
      %v1805 = vadd.f32 %v1547, 1.0
      %v1806 = vadd.f32 %v1549, 1.0
      %v1807 = vadd.f32 %v1551, 1.0
      %v1808 = vadd.f32 %v1553, 1.0
      %v1809 = vadd.f32 %v1555, 1.0
      %v1810 = vadd.f32 %v1557, 1.0
      %v1811 = vadd.f32 %v1559, 1.0
      %v1812 = vadd.f32 %v1561, 1.0
      %v1813 = vadd.f32 %v1563, 1.0
      %v1814 = vadd.f32 %v1565, 1.0
      %v1815 = vadd.f32 %v1567, 1.0
      %v1816 = vadd.f32 %v1569, 1.0
      %v1817 = vadd.f32 %v1571, 1.0
      %v1818 = vadd.f32 %v1573, 1.0
      %v1819 = vadd.f32 %v1575, 1.0
      %v1820 = vadd.f32 %v1577, 1.0
      %v1821 = vadd.f32 %v1579, 1.0
      %v1822 = vadd.f32 %v1581, 1.0
      %v1823 = vadd.f32 %v1583, 1.0
      %v1824 = vadd.f32 %v1585, 1.0
      %v1825 = vadd.f32 %v1587, 1.0
      %v1826 = vadd.f32 %v1589, 1.0
      %v1827 = vadd.f32 %v1591, 1.0
      %v1828 = vadd.f32 %v1593, 1.0
      %v1829 = vadd.f32 %v1595, 1.0
      %v1830 = vadd.f32 %v1597, 1.0
      %v1831 = vadd.f32 %v1599, 1.0
      %v1832 = vadd.f32 %v1601, 1.0
      %v1833 = vadd.f32 %v1603, 1.0
      %v1834 = vadd.f32 %v1605, 1.0
      %v1835 = vadd.f32 %v1607, 1.0
      %v1836 = vadd.f32 %v1609, 1.0
      %v1837 = vadd.f32 %v1611, 1.0
      %v1838 = vadd.f32 %v1613, 1.0
      %v1839 = vadd.f32 %v1615, 1.0
      %v1840 = vadd.f32 %v1617, 1.0
      %v1841 = vadd.f32 %v1619, 1.0
      %v1842 = vadd.f32 %v1621, 1.0
      %v1843 = vadd.f32 %v1623, 1.0
      %v1844 = vadd.f32 %v1625, 1.0
      %v1845 = vadd.f32 %v1627, 1.0
      %v1846 = vadd.f32 %v1629, 1.0
      %v1847 = vadd.f32 %v1631, 1.0
      %v1848 = vadd.f32 %v1633, 1.0
      %v1849 = vadd.f32 %v1635, 1.0
      %v1850 = vadd.f32 %v1637, 1.0
      %v1851 = vadd.f32 %v1639, 1.0
      %v1852 = vadd.f32 %v1641, 1.0
      %v1853 = vadd.f32 %v1643, 1.0
      %v1854 = vadd.f32 %v1645, 1.0
      %v1855 = vadd.f32 %v1647, 1.0
      %v1856 = vadd.f32 %v1649, 1.0
      %v1857 = vadd.f32 %v1651, 1.0
      %v1858 = vadd.f32 %v1653, 1.0
      %v1859 = vadd.f32 %v1655, 1.0
      %v1860 = vadd.f32 %v1657, 1.0
      %v1861 = vadd.f32 %v1659, 1.0
      %v1862 = vadd.f32 %v1661, 1.0
      %v1863 = vadd.f32 %v1663, 1.0
      %v1864 = vadd.f32 %v1665, 1.0
      %v1865 = vadd.f32 %v1667, 1.0
      %v1866 = vadd.f32 %v1669, 1.0
      %v1867 = vadd.f32 %v1671, 1.0
      %v1868 = vadd.f32 %v1673, 1.0
      %v1869 = vadd.f32 %v1675, 1.0
      %v1870 = vadd.f32 %v1677, 1.0
      %v1871 = vadd.f32 %v1679, 1.0
      %v1872 = vadd.f32 %v1681, 1.0
      %v1873 = vadd.f32 %v1683, 1.0
      %v1874 = vadd.f32 %v1685, 1.0
      %v1875 = vadd.f32 %v1687, 1.0
      %v1876 = vadd.f32 %v1689, 1.0
      %v1877 = vadd.f32 %v1691, 1.0
      %v1878 = vadd.f32 %v1693, 1.0
      %v1879 = vadd.f32 %v1695, 1.0
      %v1880 = vadd.f32 %v1697, 1.0
      %v1881 = vadd.f32 %v1699, 1.0
      %v1882 = vadd.f32 %v1701, 1.0
      %v1883 = vadd.f32 %v1703, 1.0
      %v1884 = vadd.f32 %v1705, 1.0
      %v1885 = vadd.f32 %v1707, 1.0
      %v1886 = vadd.f32 %v1709, 1.0
      %v1887 = vadd.f32 %v1711, 1.0
      %v1888 = vadd.f32 %v1713, 1.0
      %v1889 = vadd.f32 %v1715, 1.0
      %v1890 = vadd.f32 %v1717, 1.0
      %v1891 = vadd.f32 %v1719, 1.0
      %v1892 = vadd.f32 %v1721, 1.0
      %v1893 = vadd.f32 %v1723, 1.0
      %v1894 = vadd.f32 %v1725, 1.0
      %v1895 = vadd.f32 %v1727, 1.0
      %v1896 = vadd.f32 %v1729, 1.0
      %v1897 = vadd.f32 %v1731, 1.0
      %v1898 = vadd.f32 %v1733, 1.0
      %v1899 = vadd.f32 %v1735, 1.0
      %v1900 = vadd.f32 %v1737, 1.0
      %v1901 = vadd.f32 %v1739, 1.0
      %v1902 = vadd.f32 %v1741, 1.0
      %v1903 = vadd.f32 %v1743, 1.0
      %v1904 = vadd.f32 %v1745, 1.0
      %v1905 = vadd.f32 %v1747, 1.0
      %v1906 = vadd.f32 %v1749, 1.0
      %v1907 = vadd.f32 %v1751, 1.0
      %v1908 = vadd.f32 %v1753, 1.0
      %v1909 = vadd.f32 %v1755, 1.0
      %v1910 = vadd.f32 %v1757, 1.0
      %v1911 = vadd.f32 %v1759, 1.0
      %v1912 = vadd.f32 %v1761, 1.0
      %v1913 = vadd.f32 %v1763, 1.0
      %v1914 = vadd.f32 %v1765, 1.0
      %v1915 = vadd.f32 %v1767, 1.0
      %v1916 = vadd.f32 %v1769, 1.0
      %v1917 = vadd.f32 %v1771, 1.0
      %v1918 = vadd.f32 %v1773, 1.0
      %v1919 = vadd.f32 %v1775, 1.0
      %v1920 = vadd.f32 %v1777, 1.0
      %v1921 = vadd.f32 %v1779, 1.0
      %v1922 = vadd.f32 %v1781, 1.0
      %v1923 = vadd.f32 %v1783, 1.0
      %v1924 = vadd.f32 %v1785, 1.0
      %v1925 = vadd.f32 %v1787, 1.0
      %v1926 = vadd.f32 %v1789, 1.0
      %v1927 = vrcp.pop %v1790
      %v1928 = vrcp.pop %v1791
      %v1929 = vrcp.pop %v1792
      %v1930 = vrcp.pop %v1793
      %v1931 = vrcp.pop %v1794
      %v1932 = vrcp.pop %v1795
      %v1933 = vrcp.pop %v1796
      %v1934 = vrcp.pop %v1797
      %v1935 = vrcp.pop %v1798
      %v1936 = vrcp.pop %v1799
      %v1937 = vrcp.pop %v1800
      %v1938 = vrcp.pop %v1801
      %v1939 = vrcp.pop %v1802
      %v1940 = vrcp.pop %v1803
      %v1941 = vrcp.pop %v1804
      %v1942 = vrcp.pop %v1805
      %v1943 = vrcp.pop %v1806
      %v1944 = vrcp.pop %v1807
      %v1945 = vrcp.pop %v1808
      %v1946 = vrcp.pop %v1809
      %v1947 = vrcp.pop %v1810
      %v1948 = vrcp.pop %v1811
      %v1949 = vrcp.pop %v1812
      %v1950 = vrcp.pop %v1813
      %v1951 = vrcp.pop %v1814
      %v1952 = vrcp.pop %v1815
      %v1953 = vrcp.pop %v1816
      %v1954 = vrcp.pop %v1817
      %v1955 = vrcp.pop %v1818
      %v1956 = vrcp.pop %v1819
      %v1957 = vrcp.pop %v1820
      %v1958 = vrcp.pop %v1821
      %v1959 = vrcp.pop %v1822
      %v1960 = vrcp.pop %v1823
      %v1961 = vrcp.pop %v1824
      %v1962 = vrcp.pop %v1825
      %v1963 = vrcp.pop %v1826
      %v1964 = vrcp.pop %v1827
      %v1965 = vrcp.pop %v1828
      %v1966 = vrcp.pop %v1829
      %v1967 = vrcp.pop %v1830
      %v1968 = vrcp.pop %v1831
      %v1969 = vrcp.pop %v1832
      %v1970 = vrcp.pop %v1833
      %v1971 = vrcp.pop %v1834
      %v1972 = vrcp.pop %v1835
      %v1973 = vrcp.pop %v1836
      %v1974 = vrcp.pop %v1837
      %v1975 = vrcp.pop %v1838
      %v1976 = vrcp.pop %v1839
      %v1977 = vrcp.pop %v1840
      %v1978 = vrcp.pop %v1841
      %v1979 = vrcp.pop %v1842
      %v1980 = vrcp.pop %v1843
      %v1981 = vrcp.pop %v1844
      %v1982 = vrcp.pop %v1845
      %v1983 = vrcp.pop %v1846
      %v1984 = vrcp.pop %v1847
      %v1985 = vrcp.pop %v1848
      %v1986 = vrcp.pop %v1849
      %v1987 = vrcp.pop %v1850
      %v1988 = vrcp.pop %v1851
      %v1989 = vrcp.pop %v1852
      %v1990 = vrcp.pop %v1853
      %v1991 = vrcp.pop %v1854
      %v1992 = vrcp.pop %v1855
      %v1993 = vrcp.pop %v1856
      %v1994 = vrcp.pop %v1857
      %v1995 = vrcp.pop %v1858
      %v1996 = vrcp.pop %v1859
      %v1997 = vrcp.pop %v1860
      %v1998 = vrcp.pop %v1861
      %v1999 = vrcp.pop %v1862
      %v2000 = vrcp.pop %v1863
      %v2001 = vrcp.pop %v1864
      %v2002 = vrcp.pop %v1865
      %v2003 = vrcp.pop %v1866
      %v2004 = vrcp.pop %v1867
      %v2005 = vrcp.pop %v1868
      %v2006 = vrcp.pop %v1869
      %v2007 = vrcp.pop %v1870
      %v2008 = vrcp.pop %v1871
      %v2009 = vrcp.pop %v1872
      %v2010 = vrcp.pop %v1873
      %v2011 = vrcp.pop %v1874
      %v2012 = vrcp.pop %v1875
      %v2013 = vrcp.pop %v1876
      %v2014 = vrcp.pop %v1877
      %v2015 = vrcp.pop %v1878
      %v2016 = vrcp.pop %v1879
      %v2017 = vrcp.pop %v1880
      %v2018 = vrcp.pop %v1881
      %v2019 = vrcp.pop %v1882
      %v2020 = vrcp.pop %v1883
      %v2021 = vrcp.pop %v1884
      %v2022 = vrcp.pop %v1885
      %v2023 = vrcp.pop %v1886
      %v2024 = vrcp.pop %v1887
      %v2025 = vrcp.pop %v1888
      %v2026 = vrcp.pop %v1889
      %v2027 = vrcp.pop %v1890
      %v2028 = vrcp.pop %v1891
      %v2029 = vrcp.pop %v1892
      %v2030 = vrcp.pop %v1893
      %v2031 = vrcp.pop %v1894
      %v2032 = vrcp.pop %v1895
      %v2033 = vrcp.pop %v1896
      %v2034 = vrcp.pop %v1897
      %v2035 = vrcp.pop %v1898
      %v2036 = vrcp.pop %v1899
      %v2037 = vrcp.pop %v1900
      %v2038 = vrcp.pop %v1901
      %v2039 = vrcp.pop %v1902
      %v2040 = vrcp.pop %v1903
      %v2041 = vrcp.pop %v1904
      %v2042 = vrcp.pop %v1905
      %v2043 = vrcp.pop %v1906
      %v2044 = vrcp.pop %v1907
      %v2045 = vrcp.pop %v1908
      %v2046 = vrcp.pop %v1909
      %v2047 = vrcp.pop %v1910
      %v2048 = vrcp.pop %v1911
      %v2049 = vrcp.pop %v1912
      %v2050 = vrcp.pop %v1913
      %v2051 = vrcp.pop %v1914
      %v2052 = vrcp.pop %v1915
      %v2053 = vrcp.pop %v1916
      %v2054 = vrcp.pop %v1917
      %v2055 = vrcp.pop %v1918
      %v2056 = vrcp.pop %v1919
      %v2057 = vrcp.pop %v1920
      %v2058 = vrcp.pop %v1921
      %v2059 = vrcp.pop %v1922
      %v2060 = vrcp.pop %v1923
      %v2061 = vrcp.pop %v1924
      %v2062 = vrcp.pop %v1925
      %v2063 = vrcp.pop %v1926
      %2064 = vst [vmem:[%s172] sm:$0xff] %v1927
      %2065 = vst [vmem:[%s172 + $0x8] sm:$0xff] %v1928
      %2066 = vst [vmem:[%s172 + $0x10] sm:$0xff] %v1929
      %2067 = vst [vmem:[%s172 + $0x18] sm:$0xff] %v1930
      %2068 = vst [vmem:[%s172 + $0x20] sm:$0xff] %v1931
      %2069 = vst [vmem:[%s172 + $0x28] sm:$0xff] %v1932
      %2070 = vst [vmem:[%s172 + $0x30] sm:$0xff] %v1933
      %2071 = vst [vmem:[%s172 + $0x38] sm:$0xff] %v1934
      %2072 = vst [vmem:[%s172 + $0x40] sm:$0xff] %v1935
      %2073 = vst [vmem:[%s172 + $0x48] sm:$0xff] %v1936
      %2074 = vst [vmem:[%s172 + $0x50] sm:$0xff] %v1937
      %2075 = vst [vmem:[%s172 + $0x58] sm:$0xff] %v1938
      %2076 = vst [vmem:[%s172 + $0x60] sm:$0xff] %v1939
      %2077 = vst [vmem:[%s172 + $0x68] sm:$0xff] %v1940
      %2078 = vst [vmem:[%s172 + $0x70] sm:$0xff] %v1941
      %2079 = vst [vmem:[%s172 + $0x78] sm:$0xff] %v1942
      %2080 = vst [vmem:[%s172 + $0x80] sm:$0xff] %v1943
      %2081 = vst [vmem:[%s172 + $0x88] sm:$0xff] %v1944
      %2082 = vst [vmem:[%s172 + $0x90] sm:$0xff] %v1945
      %2083 = vst [vmem:[%s172 + $0x98] sm:$0xff] %v1946
      %2084 = vst [vmem:[%s172 + $0xa0] sm:$0xff] %v1947
      %2085 = vst [vmem:[%s172 + $0xa8] sm:$0xff] %v1948
      %2086 = vst [vmem:[%s172 + $0xb0] sm:$0xff] %v1949
      %2087 = vst [vmem:[%s172 + $0xb8] sm:$0xff] %v1950
      %2088 = vst [vmem:[%s172 + $0xc0] sm:$0xff] %v1951
      %2089 = vst [vmem:[%s172 + $0xc8] sm:$0xff] %v1952
      %2090 = vst [vmem:[%s172 + $0xd0] sm:$0xff] %v1953
      %2091 = vst [vmem:[%s172 + $0xd8] sm:$0xff] %v1954
      %2092 = vst [vmem:[%s172 + $0xe0] sm:$0xff] %v1955
      %2093 = vst [vmem:[%s172 + $0xe8] sm:$0xff] %v1956
      %2094 = vst [vmem:[%s172 + $0xf0] sm:$0xff] %v1957
      %2095 = vst [vmem:[%s172 + $0xf8] sm:$0xff] %v1958
      %2096 = vst [vmem:[%s172 + $0x100] sm:$0xff] %v1959
      %2097 = vst [vmem:[%s172 + $0x108] sm:$0xff] %v1960
      %2098 = vst [vmem:[%s172 + $0x110] sm:$0xff] %v1961
      %2099 = vst [vmem:[%s172 + $0x118] sm:$0xff] %v1962
      %2100 = vst [vmem:[%s172 + $0x120] sm:$0xff] %v1963
      %2101 = vst [vmem:[%s172 + $0x128] sm:$0xff] %v1964
      %2102 = vst [vmem:[%s172 + $0x130] sm:$0xff] %v1965
      %2103 = vst [vmem:[%s172 + $0x138] sm:$0xff] %v1966
      %2104 = vst [vmem:[%s172 + $0x140] sm:$0xff] %v1967
      %2105 = vst [vmem:[%s172 + $0x148] sm:$0xff] %v1968
      %2106 = vst [vmem:[%s172 + $0x150] sm:$0xff] %v1969
      %2107 = vst [vmem:[%s172 + $0x158] sm:$0xff] %v1970
      %2108 = vst [vmem:[%s172 + $0x160] sm:$0xff] %v1971
      %2109 = vst [vmem:[%s172 + $0x168] sm:$0xff] %v1972
      %2110 = vst [vmem:[%s172 + $0x170] sm:$0xff] %v1973
      %2111 = vst [vmem:[%s172 + $0x178] sm:$0xff] %v1974
      %2112 = vst [vmem:[%s172 + $0x180] sm:$0xff] %v1975
      %2113 = vst [vmem:[%s172 + $0x188] sm:$0xff] %v1976
      %2114 = vst [vmem:[%s172 + $0x190] sm:$0xff] %v1977
      %2115 = vst [vmem:[%s172 + $0x198] sm:$0xff] %v1978
      %2116 = vst [vmem:[%s172 + $0x1a0] sm:$0xff] %v1979
      %2117 = vst [vmem:[%s172 + $0x1a8] sm:$0xff] %v1980
      %2118 = vst [vmem:[%s172 + $0x1b0] sm:$0xff] %v1981
      %2119 = vst [vmem:[%s172 + $0x1b8] sm:$0xff] %v1982
      %2120 = vst [vmem:[%s172 + $0x1c0] sm:$0xff] %v1983
      %2121 = vst [vmem:[%s172 + $0x1c8] sm:$0xff] %v1984
      %2122 = vst [vmem:[%s172 + $0x1d0] sm:$0xff] %v1985
      %2123 = vst [vmem:[%s172 + $0x1d8] sm:$0xff] %v1986
      %2124 = vst [vmem:[%s172 + $0x1e0] sm:$0xff] %v1987
      %2125 = vst [vmem:[%s172 + $0x1e8] sm:$0xff] %v1988
      %2126 = vst [vmem:[%s172 + $0x1f0] sm:$0xff] %v1989
      %2127 = vst [vmem:[%s172 + $0x1f8] sm:$0xff] %v1990
      %2128 = vst [vmem:[%s172 + $0x200] sm:$0xff] %v1991
      %2129 = vst [vmem:[%s172 + $0x208] sm:$0xff] %v1992
      %2130 = vst [vmem:[%s172 + $0x210] sm:$0xff] %v1993
      %2131 = vst [vmem:[%s172 + $0x218] sm:$0xff] %v1994
      %2132 = vst [vmem:[%s172 + $0x220] sm:$0xff] %v1995
      %2133 = vst [vmem:[%s172 + $0x228] sm:$0xff] %v1996
      %2134 = vst [vmem:[%s172 + $0x230] sm:$0xff] %v1997
      %2135 = vst [vmem:[%s172 + $0x238] sm:$0xff] %v1998
      %2136 = vst [vmem:[%s172 + $0x240] sm:$0xff] %v1999
      %2137 = vst [vmem:[%s172 + $0x248] sm:$0xff] %v2000
      %2138 = vst [vmem:[%s172 + $0x250] sm:$0xff] %v2001
      %2139 = vst [vmem:[%s172 + $0x258] sm:$0xff] %v2002
      %2140 = vst [vmem:[%s172 + $0x260] sm:$0xff] %v2003
      %2141 = vst [vmem:[%s172 + $0x268] sm:$0xff] %v2004
      %2142 = vst [vmem:[%s172 + $0x270] sm:$0xff] %v2005
      %2143 = vst [vmem:[%s172 + $0x278] sm:$0xff] %v2006
      %2144 = vst [vmem:[%s172 + $0x280] sm:$0xff] %v2007
      %2145 = vst [vmem:[%s172 + $0x288] sm:$0xff] %v2008
      %2146 = vst [vmem:[%s172 + $0x290] sm:$0xff] %v2009
      %2147 = vst [vmem:[%s172 + $0x298] sm:$0xff] %v2010
      %2148 = vst [vmem:[%s172 + $0x2a0] sm:$0xff] %v2011
      %2149 = vst [vmem:[%s172 + $0x2a8] sm:$0xff] %v2012
      %2150 = vst [vmem:[%s172 + $0x2b0] sm:$0xff] %v2013
      %2151 = vst [vmem:[%s172 + $0x2b8] sm:$0xff] %v2014
      %2152 = vst [vmem:[%s172 + $0x2c0] sm:$0xff] %v2015
      %2153 = vst [vmem:[%s172 + $0x2c8] sm:$0xff] %v2016
      %2154 = vst [vmem:[%s172 + $0x2d0] sm:$0xff] %v2017
      %2155 = vst [vmem:[%s172 + $0x2d8] sm:$0xff] %v2018
      %2156 = vst [vmem:[%s172 + $0x2e0] sm:$0xff] %v2019
      %2157 = vst [vmem:[%s172 + $0x2e8] sm:$0xff] %v2020
      %2158 = vst [vmem:[%s172 + $0x2f0] sm:$0xff] %v2021
      %2159 = vst [vmem:[%s172 + $0x2f8] sm:$0xff] %v2022
      %2160 = vst [vmem:[%s172 + $0x300] sm:$0xff] %v2023
      %2161 = vst [vmem:[%s172 + $0x308] sm:$0xff] %v2024
      %2162 = vst [vmem:[%s172 + $0x310] sm:$0xff] %v2025
      %2163 = vst [vmem:[%s172 + $0x318] sm:$0xff] %v2026
      %2164 = vst [vmem:[%s172 + $0x320] sm:$0xff] %v2027
      %2165 = vst [vmem:[%s172 + $0x328] sm:$0xff] %v2028
      %2166 = vst [vmem:[%s172 + $0x330] sm:$0xff] %v2029
      %2167 = vst [vmem:[%s172 + $0x338] sm:$0xff] %v2030
      %2168 = vst [vmem:[%s172 + $0x340] sm:$0xff] %v2031
      %2169 = vst [vmem:[%s172 + $0x348] sm:$0xff] %v2032
      %2170 = vst [vmem:[%s172 + $0x350] sm:$0xff] %v2033
      %2171 = vst [vmem:[%s172 + $0x358] sm:$0xff] %v2034
      %2172 = vst [vmem:[%s172 + $0x360] sm:$0xff] %v2035
      %2173 = vst [vmem:[%s172 + $0x368] sm:$0xff] %v2036
      %2174 = vst [vmem:[%s172 + $0x370] sm:$0xff] %v2037
      %2175 = vst [vmem:[%s172 + $0x378] sm:$0xff] %v2038
      %2176 = vst [vmem:[%s172 + $0x380] sm:$0xff] %v2039
      %2177 = vst [vmem:[%s172 + $0x388] sm:$0xff] %v2040
      %2178 = vst [vmem:[%s172 + $0x390] sm:$0xff] %v2041
      %2179 = vst [vmem:[%s172 + $0x398] sm:$0xff] %v2042
      %2180 = vst [vmem:[%s172 + $0x3a0] sm:$0xff] %v2043
      %2181 = vst [vmem:[%s172 + $0x3a8] sm:$0xff] %v2044
      %2182 = vst [vmem:[%s172 + $0x3b0] sm:$0xff] %v2045
      %2183 = vst [vmem:[%s172 + $0x3b8] sm:$0xff] %v2046
      %2184 = vst [vmem:[%s172 + $0x3c0] sm:$0xff] %v2047
      %2185 = vst [vmem:[%s172 + $0x3c8] sm:$0xff] %v2048
      %2186 = vst [vmem:[%s172 + $0x3d0] sm:$0xff] %v2049
      %2187 = vst [vmem:[%s172 + $0x3d8] sm:$0xff] %v2050
      %2188 = vst [vmem:[%s172 + $0x3e0] sm:$0xff] %v2051
      %2189 = vst [vmem:[%s172 + $0x3e8] sm:$0xff] %v2052
      %2190 = vst [vmem:[%s172 + $0x3f0] sm:$0xff] %v2053
      %2191 = vst [vmem:[%s172 + $0x3f8] sm:$0xff] %v2054
      %2192 = vst [vmem:[%s172 + $0x400] sm:$0xff] %v2055
      %2193 = vst [vmem:[%s172 + $0x408] sm:$0xff] %v2056
      %2194 = vst [vmem:[%s172 + $0x410] sm:$0xff] %v2057
      %2195 = vst [vmem:[%s172 + $0x418] sm:$0xff] %v2058
      %2196 = vst [vmem:[%s172 + $0x420] sm:$0xff] %v2059
      %2197 = vst [vmem:[%s172 + $0x428] sm:$0xff] %v2060
      %2198 = vst [vmem:[%s172 + $0x430] sm:$0xff] %v2061
      %2199 = vst [vmem:[%s172 + $0x438] sm:$0xff] %v2062
      %2200 = vst [vmem:[%s172 + $0x440] sm:$0xff] %v2063
      %s2201 = smul.u32 137, %s14
      %p2202 = scmp.lt.s32.totalorder %s2201, 273
      %s2203 = scalar_select %p2202, %s2201, 273
      %s2204 = smul.addr %s2203, 8
      %s2205 = scalar_lea.vmem %s3, %s2204
      // Predicated region
      $region33: #{generator_forward.9} parent=31 // pred_check
        %p2206 = pneg %p100
      $region34: #{generator_forward.9} parent=31 // pred_check_branch
        %2208 = sbr.rel (%p2206) target = $region36
      $region35: #{generator_forward.9} parent=31 // pred_region
        %s2209 = smul.u32 137, %s14
      $region36: #{generator_forward.9} parent=31 // pred_fallthru
        _
    $region32: #{generator_forward.9} parent=5 // pred_fallthru
      _
    %p2210 = scmp.le.s32.totalorder 2, %s9
    // Predicated region
    $region37: #{generator_forward.9} parent=5 // pred_check
      %p2211 = pneg %p2210
    $region38: #{generator_forward.9} parent=5 // pred_check_branch
      %2213 = sbr.rel (%p2211) target = $region40
    $region39: #{generator_forward.9} parent=5 // pred_region
      %s2214 = ssub.s32 %s9, 2
      // Predicated region
      $region41: #{generator_forward.9} parent=39 // pred_check
        %p2215 = pneg %p106
      $region42: #{generator_forward.9} parent=39 // pred_check_branch
        %2217 = sbr.rel (%p2215) target = $region44
      $region43: #{generator_forward.9} parent=39 // pred_region
        %s2218 = smul.u32 137, %s15
        %p2219 = scmp.lt.s32.totalorder %s2218, 273
        %s2220 = scalar_select %p2219, %s2218, 273
        %s2221 = smul.addr %s2220, 8
        %s2222 = scalar_lea.vmem %s3, %s2221
      $region44: #{generator_forward.9} parent=39 // pred_fallthru
        _
    $region40: #{generator_forward.9} parent=5 // pred_fallthru
      _
  $region6: #{generator_forward.9} parent=0 // loop_footer
    %s13 = sadd.s32 1, %s9
  $region7: #{generator_forward.9} parent=0 // loop_footer_branch
    %8 = sbr.rel target = $region3
  $region8: #{generator_forward.9} parent=0 // loop_exit
    _

</llo_original>
